<compile_context>
chip_gen: v6e
topology: v6e:2x2x1
jax: 0.10.0
libtpu: 0.0.40
codegen_flags: <defaults>
</compile_context>

<pallas_src>
import numpy as np
import jax
import jax.numpy as jnp
from jax.experimental import pallas as pl
from jax.experimental.pallas import tpu as pltpu

ACTION_SPACE = 5 * 2          # 10
HIDDEN_SIZE = 48
INCOMING_SIZE = 10 * 128      # 1280
NUM_LAYERS = 1
NUM_SCALARS = 10              # per-branch scalar inputs feeding the feature banks
OUT_WIDTH = 128               # lane-dense packed output slab width
HEAD_WIDTH = 16               # fused actor/critic head output width

_PACKED_ORDER = ('S', 'Bf', 'Wx', 'bx', 'Whh', 'Wlfc', 'blfc', 'Wa1', 'ba1',
                 'Whead', 'bhead')


# ----------------------------------------------------------------------------
# Shared per-step compute (used by both the single-step and rollout kernels)
# ----------------------------------------------------------------------------
def _meta_ac_step(u, h, c, S, Bf, Wx, bx, Whh, Wlfc, blfc, Wa1, ba1,
                  Whead, bhead):
    H = HIDDEN_SIZE
    f32 = jnp.float32

    # 1) Feature banks: x[l] = relu(u[idx[l]] * Wf[l] + Bf[l]); gather + scale
    #    folded into the static bf16 selection matrix S -> one tiny MXU matmul.
    x = jnp.maximum(
        jnp.dot(u.astype(jnp.bfloat16), S, preferred_element_type=f32) + Bf,
        0.0)                                                     # (B,1280) f32
    x_bf = x.astype(jnp.bfloat16)

    # 2) One fused MXU pass of x: cols [0:192) = LSTM gates (w_ih),
    #    cols [192:320) = critic hidden (c_fc1). Recurrence is a separate
    #    192-wide matmul (no zero-padded columns).
    fused = jnp.dot(x_bf, Wx, preferred_element_type=f32) + bx          # (B,320)
    rec = jnp.dot(h.astype(jnp.bfloat16), Whh, preferred_element_type=f32)
    gates = fused[:, 0:4 * H] + rec                                     # (B,192)
    cx = jnp.maximum(fused[:, 4 * H:4 * H + 128], 0.0)                  # (B,128)

    i_g = jax.nn.sigmoid(gates[:, 0 * H:1 * H])
    f_g = jax.nn.sigmoid(gates[:, 1 * H:2 * H])
    g_g = jnp.tanh(gates[:, 2 * H:3 * H])
    o_g = jax.nn.sigmoid(gates[:, 3 * H:4 * H])
    c_new = f_g * c + i_g * g_g
    h_new = o_g * jnp.tanh(c_new)

    # 3) lstm_fc -> a_fc1 (bf16 weights, f32 accumulation).
    lstm_out = jnp.maximum(
        jnp.dot(h_new.astype(jnp.bfloat16), Wlfc, preferred_element_type=f32)
        + blfc, 0.0)
    a = jnp.maximum(
        jnp.dot(lstm_out.astype(jnp.bfloat16), Wa1, preferred_element_type=f32)
        + ba1, 0.0)

    # 4) Fused actor/critic head: concat([a, cx]) (B,256) against a
    #    block-diagonal (256,16) weight -> logits in lanes [0:10), critic lane 10.
    head_in = jnp.concatenate([a, cx], axis=1).astype(jnp.bfloat16)
    head = jnp.dot(head_in, Whead, preferred_element_type=f32) + bhead  # (B,16)
    logits = head[:, 0:ACTION_SPACE]
    critic = head[:, ACTION_SPACE:ACTION_SPACE + 1]

    # Grouped softmax (2 groups of 5 lanes) via masked whole-vector max/sum,
    # exact normalization so each group sums to 1.
    grp0 = jax.lax.broadcasted_iota(jnp.int32, logits.shape, 1) < 5
    neg = jnp.float32(-1e30)
    m0 = jnp.max(jnp.where(grp0, logits, neg), axis=1, keepdims=True)
    m1 = jnp.max(jnp.where(grp0, neg, logits), axis=1, keepdims=True)
    e = jnp.exp(logits - jnp.where(grp0, m0, m1))
    s0 = jnp.sum(jnp.where(grp0, e, 0.0), axis=1, keepdims=True)
    s1 = jnp.sum(jnp.where(grp0, 0.0, e), axis=1, keepdims=True)
    actor = e / jnp.where(grp0, s0, s1)

    return actor, critic, h_new, c_new


def _pack_out(actor, critic, h_new, c_new):
    b = actor.shape[0]
    pad = jnp.zeros((b, OUT_WIDTH - (ACTION_SPACE + 1 + 2 * HIDDEN_SIZE)),
                    jnp.float32)
    return jnp.concatenate([actor, critic, h_new, c_new, pad], axis=1)


# ----------------------------------------------------------------------------
# Pallas kernels
# ----------------------------------------------------------------------------
def meta_ac_step_kernel(u_ref, h0_ref, c0_ref,
                        s_ref, bf_ref, wx_ref, bx_ref, whh_ref,
                        wlfc_ref, blfc_ref, wa1_ref, ba1_ref,
                        whead_ref, bhead_ref, out_ref):
    actor, critic, h_new, c_new = _meta_ac_step(
        u_ref[...], h0_ref[...], c0_ref[...],
        s_ref[...], bf_ref[...], wx_ref[...], bx_ref[...], whh_ref[...],
        wlfc_ref[...], blfc_ref[...], wa1_ref[...], ba1_ref[...],
        whead_ref[...], bhead_ref[...])
    out_ref[...] = _pack_out(actor, critic, h_new, c_new)


def meta_ac_rollout_kernel(u_ref, h0_ref, c0_ref,
                           s_ref, bf_ref, wx_ref, bx_ref, whh_ref,
                           wlfc_ref, blfc_ref, wa1_ref, ba1_ref,
                           whead_ref, bhead_ref,
                           out_ref, h_sc, c_sc):
    t = pl.program_id(0)

    @pl.when(t == 0)
    def _():
        h_sc[...] = h0_ref[...]
        c_sc[...] = c0_ref[...]

    actor, critic, h_new, c_new = _meta_ac_step(
        u_ref[0], h_sc[...], c_sc[...],
        s_ref[...], bf_ref[...], wx_ref[...], bx_ref[...], whh_ref[...],
        wlfc_ref[...], blfc_ref[...], wa1_ref[...], ba1_ref[...],
        whead_ref[...], bhead_ref[...])

    h_sc[...] = h_new
    c_sc[...] = c_new
    out_ref[0] = _pack_out(actor, critic, h_new, c_new)


# ----------------------------------------------------------------------------
# Parameter init (deterministic, PyTorch-like uniform fan-in bounds)
# ----------------------------------------------------------------------------
def init_params(key):
    p = {}

    def dense(k, out_f, in_f):
        k1, k2 = jax.random.split(k)
        bound = 1.0 / np.sqrt(in_f)
        w = jax.random.uniform(k1, (out_f, in_f), jnp.float32, -bound, bound)
        b = jax.random.uniform(k2, (out_f,), jnp.float32, -bound, bound)
        return w, b

    keys = jax.random.split(key, 16)
    p['fc1_w'], p['fc1_b'] = dense(keys[0], 128, 1)
    p['fc2_w'], p['fc2_b'] = dense(keys[1], 128, 1)
    p['fc3_w'], p['fc3_b'] = dense(keys[2], 128, 1)
    p['fc4_w'], p['fc4_b'] = dense(keys[3], 128, 1)
    # Conv1d(1,128,1): weight (128,1,1)
    w, b = dense(keys[4], 128, 1); p['conv1_w'], p['conv1_b'] = w[:, :, None], b
    w, b = dense(keys[5], 128, 1); p['conv2_w'], p['conv2_b'] = w[:, :, None], b
    w, b = dense(keys[6], 128, 1); p['conv3_w'], p['conv3_b'] = w[:, :, None], b
    # LSTM(input=1280, hidden=48): weight_ih (192,1280), weight_hh (192,48)
    p['w_ih'], p['b_ih'] = dense(keys[7], 4 * HIDDEN_SIZE, INCOMING_SIZE)
    p['w_hh'], p['b_hh'] = dense(keys[8], 4 * HIDDEN_SIZE, HIDDEN_SIZE)
    p['lstm_fc_w'], p['lstm_fc_b'] = dense(keys[9], INCOMING_SIZE, HIDDEN_SIZE)
    p['a_fc1_w'], p['a_fc1_b'] = dense(keys[10], 128, INCOMING_SIZE)
    p['a_fc3_w'], p['a_fc3_b'] = dense(keys[11], ACTION_SPACE, 128)
    p['c_fc1_w'], p['c_fc1_b'] = dense(keys[12], 128, INCOMING_SIZE)
    p['c_fc3_w'], p['c_fc3_b'] = dense(keys[13], 1, 128)
    return p


# Gather map reproducing torch.cat([x1,x2,x3,x4,x5,x6,x7], 1) ordering.
# Scalar input vector u = [time_b, buf_b, vp0, vp1, bw0, bw1, reward, a0, a1, time]
_FEATURE_IDX = np.concatenate([
    np.full(128, 0), np.full(128, 1),
    np.tile(np.array([2, 3]), 128), np.tile(np.array([4, 5]), 128),
    np.full(128, 6), np.tile(np.array([7, 8]), 128), np.full(128, 9),
]).astype(np.int32)


def _feature_params(p):
    """Selection+scale matrix S (10,1280) and bias Bf (1,1280): u @ S == U * Wf."""
    Wf = jnp.concatenate([
        p['fc1_w'][:, 0], p['fc2_w'][:, 0],
        jnp.repeat(p['conv1_w'][:, 0, 0], 2), jnp.repeat(p['conv2_w'][:, 0, 0], 2),
        p['fc3_w'][:, 0], jnp.repeat(p['conv3_w'][:, 0, 0], 2), p['fc4_w'][:, 0]])
    Bf = jnp.concatenate([
        p['fc1_b'], p['fc2_b'],
        jnp.repeat(p['conv1_b'], 2), jnp.repeat(p['conv2_b'], 2),
        p['fc3_b'], jnp.repeat(p['conv3_b'], 2), p['fc4_b']])
    S = jax.nn.one_hot(_FEATURE_IDX, NUM_SCALARS, axis=0,
                       dtype=jnp.float32) * Wf[None, :]
    return S, Bf[None, :]


def pack_params(p):
    """One-time packing of the module weights into the kernel layout.
    Hoisted out of the per-step path (transposes / concats / bf16 casts run
    once here, never per forward call)."""
    S, Bf = _feature_params(p)
    # Fused x-consumer: cols [0:192) = LSTM gates (w_ih), [192:320) = c_fc1.
    Wx = jnp.concatenate([p['w_ih'].T, p['c_fc1_w'].T], axis=1)          # (1280,320)
    bx = jnp.concatenate([p['b_ih'] + p['b_hh'], p['c_fc1_b']])[None, :]  # (1,320)
    # Fused block-diagonal head: actor logits cols [0:10), critic col 10.
    Whead = jnp.zeros((256, HEAD_WIDTH), jnp.float32)
    Whead = Whead.at[0:128, 0:ACTION_SPACE].set(p['a_fc3_w'].T)
    Whead = Whead.at[128:256, ACTION_SPACE].set(p['c_fc3_w'][0, :])
    bhead = jnp.zeros((HEAD_WIDTH,), jnp.float32)
    bhead = bhead.at[0:ACTION_SPACE].set(p['a_fc3_b'])
    bhead = bhead.at[ACTION_SPACE].set(p['c_fc3_b'][0])
    return {
        'S': S.astype(jnp.bfloat16),                     # (10,1280)
        'Bf': Bf,                                        # (1,1280) f32
        'Wx': Wx.astype(jnp.bfloat16),                   # (1280,320)
        'bx': bx,                                        # (1,320)  f32
        'Whh': p['w_hh'].T.astype(jnp.bfloat16),         # (48,192)
        'Wlfc': p['lstm_fc_w'].T.astype(jnp.bfloat16),   # (48,1280)
        'blfc': p['lstm_fc_b'][None, :],                 # (1,1280) f32
        'Wa1': p['a_fc1_w'].T.astype(jnp.bfloat16),      # (1280,128)
        'ba1': p['a_fc1_b'][None, :],                    # (1,128)  f32
        'Whead': Whead.astype(jnp.bfloat16),             # (256,16)
        'bhead': bhead[None, :],                         # (1,16)   f32
    }


def _build_u(states, reward, action, time):
    """Per-branch scalar inputs (matches the PyTorch slicing) -> (B,10)."""
    return jnp.concatenate([
        states[:, 0, -1:],      # time_batch   (B,1)
        states[:, 1, -1:],      # buffer_batch (B,1)
        states[:, 2, :2],       # viewport     (B,2)
        states[:, 3, :2],       # bandwidth    (B,2)
        reward,                 # (B,1)
        action[:, 0, :2],       # (B,2)
        time,                   # (B,1)
    ], axis=1).astype(jnp.float32)


def _cost_estimate(batch, steps, weight_args):
    flops_per_step = 2 * batch * (
        NUM_SCALARS * INCOMING_SIZE          # feature build
        + INCOMING_SIZE * 320                # fused gates + critic hidden
        + HIDDEN_SIZE * 4 * HIDDEN_SIZE      # recurrence
        + HIDDEN_SIZE * INCOMING_SIZE        # lstm_fc
        + INCOMING_SIZE * 128                # a_fc1
        + 256 * HEAD_WIDTH)                  # fused actor/critic head
    weight_bytes = int(sum(a.size * a.dtype.itemsize for a in weight_args))
    io_bytes = steps * batch * (NUM_SCALARS + OUT_WIDTH) * 4
    return pl.CostEstimate(
        flops=steps * flops_per_step,
        transcendentals=steps * batch * (5 * HIDDEN_SIZE + ACTION_SPACE),
        bytes_accessed=weight_bytes + io_bytes)


# ----------------------------------------------------------------------------
# Single-step forward (keeps the module's forward semantics)
# ----------------------------------------------------------------------------
def meta_ac_forward(packed, states, reward, action, time, hidden):
    B = states.shape[0]
    u = _build_u(states, reward, action, time)            # (B,10)
    h0 = hidden[0][0]                                     # (B,48)
    c0 = hidden[1][0]
    weights = tuple(packed[k] for k in _PACKED_ORDER)
    inputs = (u, h0, c0) + weights

    vmem = pl.BlockSpec(memory_space=pltpu.MemorySpace.VMEM)
    out = pl.pallas_call(
        meta_ac_step_kernel,
        out_shape=jax.ShapeDtypeStruct((B, OUT_WIDTH), jnp.float32),
        in_specs=[vmem] * len(inputs),
        out_specs=vmem,
        cost_estimate=_cost_estimate(B, 1, weights),
    )(*inputs)

    actor = out[:, 0:ACTION_SPACE]
    critic = out[:, ACTION_SPACE:ACTION_SPACE + 1]
    h_new = out[:, ACTION_SPACE + 1:ACTION_SPACE + 1 + HIDDEN_SIZE]
    c_new = out[:, ACTION_SPACE + 1 + HIDDEN_SIZE:ACTION_SPACE + 1 + 2 * HIDDEN_SIZE]
    return actor, critic, (h_new[None, :, :], c_new[None, :, :])


# ----------------------------------------------------------------------------
# In-kernel T-step rollout: weights resident in VMEM, h/c carried in scratch,
# per-step scalar inputs streamed, per-step outputs written to a (T,B,128) slab.
# Amortizes weight DMA (~1.3 MiB) and pallas_call overhead over T steps.
# ----------------------------------------------------------------------------
def meta_ac_rollout(packed, u_seq, hidden):
    T, B, _ = u_seq.shape
    h0 = hidden[0][0]
    c0 = hidden[1][0]
    weights = tuple(packed[k] for k in _PACKED_ORDER)

    def resident(arr):   # constant index map -> DMA'd once, stays in VMEM
        nd = arr.ndim
        return pl.BlockSpec(arr.shape, lambda t, _nd=nd: (0,) * _nd)

    in_specs = ([pl.BlockSpec((1, B, NUM_SCALARS), lambda t: (t, 0, 0)),
                 resident(h0), resident(c0)]
                + [resident(w) for w in weights])
    out_specs = pl.BlockSpec((1, B, OUT_WIDTH), lambda t: (t, 0, 0))

    out = pl.pallas_call(
        meta_ac_rollout_kernel,
        out_shape=jax.ShapeDtypeStruct((T, B, OUT_WIDTH), jnp.float32),
        grid_spec=pltpu.PrefetchScalarGridSpec(
            num_scalar_prefetch=0,
            grid=(T,),
            in_specs=in_specs,
            out_specs=out_specs,
            scratch_shapes=[pltpu.VMEM((B, HIDDEN_SIZE), jnp.float32),
                            pltpu.VMEM((B, HIDDEN_SIZE), jnp.float32)]),
        compiler_params=pltpu.CompilerParams(
            dimension_semantics=("arbitrary",)),
        cost_estimate=_cost_estimate(B, T, weights),
    )(u_seq, h0, c0, *weights)

    actor_seq = out[:, :, 0:ACTION_SPACE]
    critic_seq = out[:, :, ACTION_SPACE:ACTION_SPACE + 1]
    h_seq = out[:, :, ACTION_SPACE + 1:ACTION_SPACE + 1 + HIDDEN_SIZE]
    c_seq = out[:, :, ACTION_SPACE + 1 + HIDDEN_SIZE:ACTION_SPACE + 1 + 2 * HIDDEN_SIZE]
    return actor_seq, critic_seq, (h_seq[-1][None], c_seq[-1][None])


# ----------------------------------------------------------------------------
# Pure-JAX f32 reference (mirrors the PyTorch forward) for a correctness check.
# ----------------------------------------------------------------------------
def meta_ac_ref(p, states, reward, action, time, hidden):
    relu = jax.nn.relu

    def lin(x, w, b):
        return x @ w.T + b

    def conv1(x2, w, b):   # x2: (B,2), pointwise Conv1d(1,128,1) -> (B,128,2)
        return relu(x2[:, None, :] * w[None, :, 0, :] + b[None, :, None])

    B = states.shape[0]
    x1 = relu(lin(states[:, 0, -1:], p['fc1_w'], p['fc1_b']))
    x2 = relu(lin(states[:, 1, -1:], p['fc2_w'], p['fc2_b']))
    x3 = conv1(states[:, 2, :2], p['conv1_w'], p['conv1_b']).reshape(B, -1)
    x4 = conv1(states[:, 3, :2], p['conv2_w'], p['conv2_b']).reshape(B, -1)
    x5 = relu(lin(reward, p['fc3_w'], p['fc3_b']))
    x6 = conv1(action[:, 0, :2], p['conv3_w'], p['conv3_b']).reshape(B, -1)
    x7 = relu(lin(time, p['fc4_w'], p['fc4_b']))
    x = jnp.concatenate([x1, x2, x3, x4, x5, x6, x7], axis=1)   # (B,1280)

    h, c = hidden[0][0], hidden[1][0]
    gates = x @ p['w_ih'].T + p['b_ih'] + h @ p['w_hh'].T + p['b_hh']
    H = HIDDEN_SIZE
    i_g = jax.nn.sigmoid(gates[:, 0:H])
    f_g = jax.nn.sigmoid(gates[:, H:2 * H])
    g_g = jnp.tanh(gates[:, 2 * H:3 * H])
    o_g = jax.nn.sigmoid(gates[:, 3 * H:4 * H])
    c_new = f_g * c + i_g * g_g
    h_new = o_g * jnp.tanh(c_new)

    lstm_out = relu(lin(h_new, p['lstm_fc_w'], p['lstm_fc_b']))
    a = relu(lin(lstm_out, p['a_fc1_w'], p['a_fc1_b']))
    logits = lin(a, p['a_fc3_w'], p['a_fc3_b']).reshape(B, 2, 5)
    actor = jax.nn.softmax(logits, axis=2).reshape(B, -1)
    cx = relu(lin(x, p['c_fc1_w'], p['c_fc1_b']))
    critic = lin(cx, p['c_fc3_w'], p['c_fc3_b'])
    return actor, critic, (h_new[None], c_new[None])


if __name__ == "__main__":
    key = jax.random.PRNGKey(0)
    kp, k1, k2, k3, k4, k5, k6, k7 = jax.random.split(key, 8)
    params = init_params(kp)
    packed = pack_params(params)          # one-time weight packing (hoisted)
    jax.block_until_ready(packed)

    B, S = 2, 8
    states = jax.random.normal(k1, (B, 4, S), jnp.float32)
    reward = jax.random.normal(k2, (B, 1), jnp.float32)
    action = jax.random.normal(k3, (B, 1, 2), jnp.float32)
    time = jax.random.normal(k4, (B, 1), jnp.float32)
    hidden = (0.1 * jax.random.normal(k5, (NUM_LAYERS, B, HIDDEN_SIZE), jnp.float32),
              0.1 * jax.random.normal(k6, (NUM_LAYERS, B, HIDDEN_SIZE), jnp.float32))

    # --- single-step forward (module semantics) vs pure-JAX f32 reference ----
    fwd = jax.jit(meta_ac_forward)
    actor, critic, (h_out, c_out) = fwd(packed, states, reward, action, time, hidden)
    jax.block_until_ready((actor, critic, h_out, c_out))

    actor_r, critic_r, (h_r, c_r) = meta_ac_ref(params, states, reward, action,
                                                time, hidden)
    np.testing.assert_allclose(np.asarray(actor), np.asarray(actor_r), rtol=3e-2, atol=3e-2)
    np.testing.assert_allclose(np.asarray(critic), np.asarray(critic_r), rtol=3e-2, atol=3e-2)
    np.testing.assert_allclose(np.asarray(h_out), np.asarray(h_r), rtol=3e-2, atol=3e-2)
    np.testing.assert_allclose(np.asarray(c_out), np.asarray(c_r), rtol=3e-2, atol=3e-2)

    # --- in-kernel T-step rollout vs a Python loop of the single-step kernel --
    T = 6
    step_inputs = []
    keys_t = jax.random.split(k7, T)
    for t in range(T):
        kk = jax.random.split(keys_t[t], 4)
        step_inputs.append((
            jax.random.normal(kk[0], (B, 4, S), jnp.float32),
            jax.random.normal(kk[1], (B, 1), jnp.float32),
            jax.random.normal(kk[2], (B, 1, 2), jnp.float32),
            jax.random.normal(kk[3], (B, 1), jnp.float32)))
    u_seq = jnp.stack([_build_u(*si) for si in step_inputs], axis=0)   # (T,B,10)

    rollout = jax.jit(meta_ac_rollout)
    actor_seq, critic_seq, (h_T, c_T) = rollout(packed, u_seq, hidden)
    jax.block_until_ready((actor_seq, critic_seq, h_T, c_T))

    hid = hidden
    for t in range(T):
        st, rw, ac, tm = step_inputs[t]
        a_t, c_t, hid = fwd(packed, st, rw, ac, tm, hid)
        np.testing.assert_allclose(np.asarray(actor_seq[t]), np.asarray(a_t),
                                   rtol=1e-3, atol=1e-3)
        np.testing.assert_allclose(np.asarray(critic_seq[t]), np.asarray(c_t),
                                   rtol=1e-3, atol=1e-3)
    np.testing.assert_allclose(np.asarray(h_T), np.asarray(hid[0]), rtol=1e-3, atol=1e-3)
    np.testing.assert_allclose(np.asarray(c_T), np.asarray(hid[1]), rtol=1e-3, atol=1e-3)

    print("KERNEL_OK")
</pallas_src>

<mosaic_0001>
module attributes {stable_mosaic.version = 11 : i64} {
  func.func @meta_ac_step_kernel(%arg0: memref<2x10xf32, #tpu.memory_space<vmem>>, %arg1: memref<2x48xf32, #tpu.memory_space<vmem>>, %arg2: memref<2x48xf32, #tpu.memory_space<vmem>>, %arg3: memref<10x1280xbf16, #tpu.memory_space<vmem>>, %arg4: memref<1x1280xf32, #tpu.memory_space<vmem>>, %arg5: memref<1280x320xbf16, #tpu.memory_space<vmem>>, %arg6: memref<1x320xf32, #tpu.memory_space<vmem>>, %arg7: memref<48x192xbf16, #tpu.memory_space<vmem>>, %arg8: memref<48x1280xbf16, #tpu.memory_space<vmem>>, %arg9: memref<1x1280xf32, #tpu.memory_space<vmem>>, %arg10: memref<1280x128xbf16, #tpu.memory_space<vmem>>, %arg11: memref<1x128xf32, #tpu.memory_space<vmem>>, %arg12: memref<256x16xbf16, #tpu.memory_space<vmem>>, %arg13: memref<1x16xf32, #tpu.memory_space<vmem>>, %arg14: memref<2x128xf32, #tpu.memory_space<vmem>>) attributes {dimension_semantics = [], scalar_prefetch = 0 : i64, scratch_operands = 0 : i64, tpu.core_type = #tpu.core_type<tc>} {
    %c0 = arith.constant 0 : index
    %c0_0 = arith.constant 0 : index
    %0 = vector.load %arg0[%c0, %c0_0] : memref<2x10xf32, #tpu.memory_space<vmem>>, vector<2x10xf32>
    %c0_1 = arith.constant 0 : index
    %c0_2 = arith.constant 0 : index
    %1 = vector.load %arg1[%c0_1, %c0_2] : memref<2x48xf32, #tpu.memory_space<vmem>>, vector<2x48xf32>
    %c0_3 = arith.constant 0 : index
    %c0_4 = arith.constant 0 : index
    %2 = vector.load %arg2[%c0_3, %c0_4] : memref<2x48xf32, #tpu.memory_space<vmem>>, vector<2x48xf32>
    %c0_5 = arith.constant 0 : index
    %c0_6 = arith.constant 0 : index
    %3 = vector.load %arg3[%c0_5, %c0_6] : memref<10x1280xbf16, #tpu.memory_space<vmem>>, vector<10x1280xbf16>
    %c0_7 = arith.constant 0 : index
    %c0_8 = arith.constant 0 : index
    %4 = vector.load %arg4[%c0_7, %c0_8] : memref<1x1280xf32, #tpu.memory_space<vmem>>, vector<1x1280xf32>
    %c0_9 = arith.constant 0 : index
    %c0_10 = arith.constant 0 : index
    %5 = vector.load %arg5[%c0_9, %c0_10] : memref<1280x320xbf16, #tpu.memory_space<vmem>>, vector<1280x320xbf16>
    %c0_11 = arith.constant 0 : index
    %c0_12 = arith.constant 0 : index
    %6 = vector.load %arg6[%c0_11, %c0_12] : memref<1x320xf32, #tpu.memory_space<vmem>>, vector<1x320xf32>
    %c0_13 = arith.constant 0 : index
    %c0_14 = arith.constant 0 : index
    %7 = vector.load %arg7[%c0_13, %c0_14] : memref<48x192xbf16, #tpu.memory_space<vmem>>, vector<48x192xbf16>
    %c0_15 = arith.constant 0 : index
    %c0_16 = arith.constant 0 : index
    %8 = vector.load %arg8[%c0_15, %c0_16] : memref<48x1280xbf16, #tpu.memory_space<vmem>>, vector<48x1280xbf16>
    %c0_17 = arith.constant 0 : index
    %c0_18 = arith.constant 0 : index
    %9 = vector.load %arg9[%c0_17, %c0_18] : memref<1x1280xf32, #tpu.memory_space<vmem>>, vector<1x1280xf32>
    %c0_19 = arith.constant 0 : index
    %c0_20 = arith.constant 0 : index
    %10 = vector.load %arg10[%c0_19, %c0_20] : memref<1280x128xbf16, #tpu.memory_space<vmem>>, vector<1280x128xbf16>
    %c0_21 = arith.constant 0 : index
    %c0_22 = arith.constant 0 : index
    %11 = vector.load %arg11[%c0_21, %c0_22] : memref<1x128xf32, #tpu.memory_space<vmem>>, vector<1x128xf32>
    %c0_23 = arith.constant 0 : index
    %c0_24 = arith.constant 0 : index
    %12 = vector.load %arg12[%c0_23, %c0_24] : memref<256x16xbf16, #tpu.memory_space<vmem>>, vector<256x16xbf16>
    %c0_25 = arith.constant 0 : index
    %c0_26 = arith.constant 0 : index
    %13 = vector.load %arg13[%c0_25, %c0_26] : memref<1x16xf32, #tpu.memory_space<vmem>>, vector<1x16xf32>
    %14 = arith.truncf %0 : vector<2x10xf32> to vector<2x10xbf16>
    %cst = arith.constant dense<0.000000e+00> : vector<2x1280xf32>
    %15 = tpu.matmul %14, %3, %cst {dimension_numbers = #tpu.dot_dimension_numbers<[1], [0], [0], [1], [0, 0, 1, 1], [], []>} : vector<2x10xbf16>, vector<10x1280xbf16>, vector<2x1280xf32> -> vector<2x1280xf32>
    %16 = vector.broadcast %4 : vector<1x1280xf32> to vector<2x1280xf32>
    %17 = arith.addf %15, %16 : vector<2x1280xf32>
    %cst_27 = arith.constant 0.000000e+00 : f32
    %18 = vector.broadcast %cst_27 : f32 to vector<2x1280xf32>
    %19 = arith.maximumf %17, %18 : vector<2x1280xf32>
    %20 = arith.truncf %19 : vector<2x1280xf32> to vector<2x1280xbf16>
    %cst_28 = arith.constant dense<0.000000e+00> : vector<2x320xf32>
    %21 = tpu.matmul %20, %5, %cst_28 {dimension_numbers = #tpu.dot_dimension_numbers<[1], [0], [0], [1], [0, 0, 1, 1], [], []>} : vector<2x1280xbf16>, vector<1280x320xbf16>, vector<2x320xf32> -> vector<2x320xf32>
    %22 = vector.broadcast %6 : vector<1x320xf32> to vector<2x320xf32>
    %23 = arith.addf %21, %22 : vector<2x320xf32>
    %24 = arith.truncf %1 : vector<2x48xf32> to vector<2x48xbf16>
    %cst_29 = arith.constant dense<0.000000e+00> : vector<2x192xf32>
    %25 = tpu.matmul %24, %7, %cst_29 {dimension_numbers = #tpu.dot_dimension_numbers<[1], [0], [0], [1], [0, 0, 1, 1], [], []>} : vector<2x48xbf16>, vector<48x192xbf16>, vector<2x192xf32> -> vector<2x192xf32>
    %26 = vector.extract_strided_slice %23 {offsets = [0, 0], sizes = [2, 192], strides = [1, 1]} : vector<2x320xf32> to vector<2x192xf32>
    %27 = arith.addf %26, %25 : vector<2x192xf32>
    %28 = vector.extract_strided_slice %23 {offsets = [0, 192], sizes = [2, 128], strides = [1, 1]} : vector<2x320xf32> to vector<2x128xf32>
    %cst_30 = arith.constant 0.000000e+00 : f32
    %29 = vector.broadcast %cst_30 : f32 to vector<2x128xf32>
    %30 = arith.maximumf %28, %29 : vector<2x128xf32>
    %31 = vector.extract_strided_slice %27 {offsets = [0, 0], sizes = [2, 48], strides = [1, 1]} : vector<2x192xf32> to vector<2x48xf32>
    %32 = arith.negf %31 : vector<2x48xf32>
    %33 = math.exp %32 : vector<2x48xf32>
    %cst_31 = arith.constant 1.000000e+00 : f32
    %34 = vector.broadcast %cst_31 : f32 to vector<2x48xf32>
    %35 = arith.addf %34, %33 : vector<2x48xf32>
    %36 = arith.divf %34, %35 : vector<2x48xf32>
    %37 = vector.extract_strided_slice %27 {offsets = [0, 48], sizes = [2, 48], strides = [1, 1]} : vector<2x192xf32> to vector<2x48xf32>
    %38 = arith.negf %37 : vector<2x48xf32>
    %39 = math.exp %38 : vector<2x48xf32>
    %cst_32 = arith.constant 1.000000e+00 : f32
    %40 = vector.broadcast %cst_32 : f32 to vector<2x48xf32>
    %41 = arith.addf %40, %39 : vector<2x48xf32>
    %42 = arith.divf %40, %41 : vector<2x48xf32>
    %43 = vector.extract_strided_slice %27 {offsets = [0, 96], sizes = [2, 48], strides = [1, 1]} : vector<2x192xf32> to vector<2x48xf32>
    %44 = math.tanh %43 : vector<2x48xf32>
    %45 = vector.extract_strided_slice %27 {offsets = [0, 144], sizes = [2, 48], strides = [1, 1]} : vector<2x192xf32> to vector<2x48xf32>
    %46 = arith.negf %45 : vector<2x48xf32>
    %47 = math.exp %46 : vector<2x48xf32>
    %cst_33 = arith.constant 1.000000e+00 : f32
    %48 = vector.broadcast %cst_33 : f32 to vector<2x48xf32>
    %49 = arith.addf %48, %47 : vector<2x48xf32>
    %50 = arith.divf %48, %49 : vector<2x48xf32>
    %51 = arith.mulf %42, %2 : vector<2x48xf32>
    %52 = arith.mulf %36, %44 : vector<2x48xf32>
    %53 = arith.addf %51, %52 : vector<2x48xf32>
    %54 = math.tanh %53 : vector<2x48xf32>
    %55 = arith.mulf %50, %54 : vector<2x48xf32>
    %56 = arith.truncf %55 : vector<2x48xf32> to vector<2x48xbf16>
    %cst_34 = arith.constant dense<0.000000e+00> : vector<2x1280xf32>
    %57 = tpu.matmul %56, %8, %cst_34 {dimension_numbers = #tpu.dot_dimension_numbers<[1], [0], [0], [1], [0, 0, 1, 1], [], []>} : vector<2x48xbf16>, vector<48x1280xbf16>, vector<2x1280xf32> -> vector<2x1280xf32>
    %58 = vector.broadcast %9 : vector<1x1280xf32> to vector<2x1280xf32>
    %59 = arith.addf %57, %58 : vector<2x1280xf32>
    %cst_35 = arith.constant 0.000000e+00 : f32
    %60 = vector.broadcast %cst_35 : f32 to vector<2x1280xf32>
    %61 = arith.maximumf %59, %60 : vector<2x1280xf32>
    %62 = arith.truncf %61 : vector<2x1280xf32> to vector<2x1280xbf16>
    %cst_36 = arith.constant dense<0.000000e+00> : vector<2x128xf32>
    %63 = tpu.matmul %62, %10, %cst_36 {dimension_numbers = #tpu.dot_dimension_numbers<[1], [0], [0], [1], [0, 0, 1, 1], [], []>} : vector<2x1280xbf16>, vector<1280x128xbf16>, vector<2x128xf32> -> vector<2x128xf32>
    %64 = vector.broadcast %11 : vector<1x128xf32> to vector<2x128xf32>
    %65 = arith.addf %63, %64 : vector<2x128xf32>
    %cst_37 = arith.constant 0.000000e+00 : f32
    %66 = vector.broadcast %cst_37 : f32 to vector<2x128xf32>
    %67 = arith.maximumf %65, %66 : vector<2x128xf32>
    %68 = tpu.concatenate %67, %30 in 1 : vector<2x128xf32>, vector<2x128xf32> -> vector<2x256xf32>
    %69 = arith.truncf %68 : vector<2x256xf32> to vector<2x256xbf16>
    %cst_38 = arith.constant dense<0.000000e+00> : vector<2x16xf32>
    %70 = tpu.matmul %69, %12, %cst_38 {dimension_numbers = #tpu.dot_dimension_numbers<[1], [0], [0], [1], [0, 0, 1, 1], [], []>} : vector<2x256xbf16>, vector<256x16xbf16>, vector<2x16xf32> -> vector<2x16xf32>
    %71 = vector.broadcast %13 : vector<1x16xf32> to vector<2x16xf32>
    %72 = arith.addf %70, %71 : vector<2x16xf32>
    %73 = vector.extract_strided_slice %72 {offsets = [0, 0], sizes = [2, 10], strides = [1, 1]} : vector<2x16xf32> to vector<2x10xf32>
    %74 = vector.extract_strided_slice %72 {offsets = [0, 10], sizes = [2, 1], strides = [1, 1]} : vector<2x16xf32> to vector<2x1xf32>
    %75 = tpu.iota {dimensions = array<i32: 1>} : vector<2x10xi32>
    %c5_i32 = arith.constant 5 : i32
    %76 = vector.broadcast %c5_i32 : i32 to vector<2x10xi32>
    %77 = arith.cmpi slt, %75, %76 : vector<2x10xi32>
    %cst_39 = arith.constant -1.000000e+30 : f32
    %78 = vector.broadcast %cst_39 : f32 to vector<2x10xf32>
    %79 = arith.select %77, %73, %78 : vector<2x10xi1>, vector<2x10xf32>
    %cst_40 = arith.constant dense<0xFF800000> : vector<2xf32>
    %80 = vector.multi_reduction <maximumf>, %79, %cst_40 [1] : vector<2x10xf32> to vector<2xf32>
    %81 = vector.shape_cast %80 : vector<2xf32> to vector<2x1xf32>
    %cst_41 = arith.constant -1.000000e+30 : f32
    %82 = vector.broadcast %cst_41 : f32 to vector<2x10xf32>
    %83 = arith.select %77, %82, %73 : vector<2x10xi1>, vector<2x10xf32>
    %cst_42 = arith.constant dense<0xFF800000> : vector<2xf32>
    %84 = vector.multi_reduction <maximumf>, %83, %cst_42 [1] : vector<2x10xf32> to vector<2xf32>
    %85 = vector.shape_cast %84 : vector<2xf32> to vector<2x1xf32>
    %86 = vector.shape_cast %81 : vector<2x1xf32> to vector<2x1xf32>
    %87 = vector.broadcast %86 : vector<2x1xf32> to vector<2x10xf32>
    %88 = vector.shape_cast %85 : vector<2x1xf32> to vector<2x1xf32>
    %89 = vector.broadcast %88 : vector<2x1xf32> to vector<2x10xf32>
    %90 = arith.select %77, %87, %89 : vector<2x10xi1>, vector<2x10xf32>
    %91 = arith.subf %73, %90 : vector<2x10xf32>
    %92 = math.exp %91 : vector<2x10xf32>
    %cst_43 = arith.constant 0.000000e+00 : f32
    %93 = vector.broadcast %cst_43 : f32 to vector<2x10xf32>
    %94 = arith.select %77, %92, %93 : vector<2x10xi1>, vector<2x10xf32>
    %cst_44 = arith.constant dense<0.000000e+00> : vector<2xf32>
    %95 = vector.multi_reduction <add>, %94, %cst_44 [1] : vector<2x10xf32> to vector<2xf32>
    %96 = vector.shape_cast %95 : vector<2xf32> to vector<2x1xf32>
    %cst_45 = arith.constant 0.000000e+00 : f32
    %97 = vector.broadcast %cst_45 : f32 to vector<2x10xf32>
    %98 = arith.select %77, %97, %92 : vector<2x10xi1>, vector<2x10xf32>
    %cst_46 = arith.constant dense<0.000000e+00> : vector<2xf32>
    %99 = vector.multi_reduction <add>, %98, %cst_46 [1] : vector<2x10xf32> to vector<2xf32>
    %100 = vector.shape_cast %99 : vector<2xf32> to vector<2x1xf32>
    %101 = vector.shape_cast %96 : vector<2x1xf32> to vector<2x1xf32>
    %102 = vector.broadcast %101 : vector<2x1xf32> to vector<2x10xf32>
    %103 = vector.shape_cast %100 : vector<2x1xf32> to vector<2x1xf32>
    %104 = vector.broadcast %103 : vector<2x1xf32> to vector<2x10xf32>
    %105 = arith.select %77, %102, %104 : vector<2x10xi1>, vector<2x10xf32>
    %106 = arith.divf %92, %105 : vector<2x10xf32>
    %cst_47 = arith.constant 0.000000e+00 : f32
    %107 = vector.broadcast %cst_47 : f32 to vector<2x21xf32>
    %108 = tpu.concatenate %106, %74, %55, %53, %107 in 1 : vector<2x10xf32>, vector<2x1xf32>, vector<2x48xf32>, vector<2x48xf32>, vector<2x21xf32> -> vector<2x128xf32>
    %c0_48 = arith.constant 0 : index
    %c0_49 = arith.constant 0 : index
    %109 = vector.load %arg14[%c0_48, %c0_49] : memref<2x128xf32, #tpu.memory_space<vmem>>, vector<2x128xf32>
    tpu.vector_store %arg14[%c0_48, %c0_49], %108 {strides = array<i32>} : memref<2x128xf32, #tpu.memory_space<vmem>>, vector<2x128xf32>,
    return
  }
}

</mosaic_0001>

<llo_original>
// kernel: meta_ac_forward.1
$region0: #{meta_ac_forward.1}
  #allocation0 [shape = 'u32[]', space=smem, size = 0x4, offset = 0x4, fixed_abs, tag = 'smem constant byte address 0x4 - core index']
  #allocation1 [shape = 'u32[144,128]{1,0:T(1,128)}', space=vmem, size = 0x12000, scoped, tag = 'internal scratch']
  %s0 = inlined_call_operand.vmem [shape: f32[2,10], index: 0, kind: input, shape index: {}]
  %s1 = inlined_call_operand.vmem [shape: f32[2,48], index: 1, kind: input, shape index: {}]
  %s2 = inlined_call_operand.vmem [shape: f32[2,48], index: 2, kind: input, shape index: {}]
  %s3 = inlined_call_operand.vmem [shape: bf16[10,1280], index: 3, kind: input, shape index: {}]
  %s4 = inlined_call_operand.vmem [shape: f32[1,1280], index: 4, kind: input, shape index: {}]
  %s5 = inlined_call_operand.vmem [shape: bf16[1280,320], index: 5, kind: input, shape index: {}]
  %s6 = inlined_call_operand.vmem [shape: f32[1,320], index: 6, kind: input, shape index: {}]
  %s7 = inlined_call_operand.vmem [shape: bf16[48,192], index: 7, kind: input, shape index: {}]
  %s8 = inlined_call_operand.vmem [shape: bf16[48,1280], index: 8, kind: input, shape index: {}]
  %s9 = inlined_call_operand.vmem [shape: f32[1,1280], index: 9, kind: input, shape index: {}]
  %s10 = inlined_call_operand.vmem [shape: bf16[1280,128], index: 10, kind: input, shape index: {}]
  %s11 = inlined_call_operand.vmem [shape: f32[1,128], index: 11, kind: input, shape index: {}]
  %s12 = inlined_call_operand.vmem [shape: bf16[256,16], index: 12, kind: input, shape index: {}]
  %s13 = inlined_call_operand.vmem [shape: f32[1,16], index: 13, kind: input, shape index: {}]
  %s14 = inlined_call_operand.vmem [shape: f32[2,128], index: 14, kind: output, shape index: {}]
  %s15 = sld [smem:[#allocation0]]
  $region66: #{meta_ac_forward.1} parent=0
    _
  %s17 = ssub.s32 1, %s15
  %s18 = scalar_select 0, %s17, %s15
  // Predicated region
  $region2: #{meta_ac_forward.1} parent=0 // pred_check
    _
  $region3: #{meta_ac_forward.1} parent=0 // pred_check_branch
    %20 = sbr.rel (0) target = $region5
  $region4: #{meta_ac_forward.1} parent=0 // pred_region
    _
  $region5: #{meta_ac_forward.1} parent=0 // pred_fallthru
    _
  // Predicated region
  $region6: #{meta_ac_forward.1} parent=0 // pred_check
    _
  $region7: #{meta_ac_forward.1} parent=0 // pred_check_branch
    %22 = sbr.rel (0) target = $region9
  $region8: #{meta_ac_forward.1} parent=0 // pred_region
    _
  $region9: #{meta_ac_forward.1} parent=0 // pred_fallthru
    _
  // Predicated region
  $region10: #{meta_ac_forward.1} parent=0 // pred_check
    _
  $region11: #{meta_ac_forward.1} parent=0 // pred_check_branch
    %24 = sbr.rel (0) target = $region13
  $region12: #{meta_ac_forward.1} parent=0 // pred_region
    _
  $region13: #{meta_ac_forward.1} parent=0 // pred_fallthru
    _
  // Predicated region
  $region14: #{meta_ac_forward.1} parent=0 // pred_check
    _
  $region15: #{meta_ac_forward.1} parent=0 // pred_check_branch
    %26 = sbr.rel (0) target = $region17
  $region16: #{meta_ac_forward.1} parent=0 // pred_region
    _
  $region17: #{meta_ac_forward.1} parent=0 // pred_fallthru
    _
  // Predicated region
  $region18: #{meta_ac_forward.1} parent=0 // pred_check
    _
  $region19: #{meta_ac_forward.1} parent=0 // pred_check_branch
    %28 = sbr.rel (0) target = $region21
  $region20: #{meta_ac_forward.1} parent=0 // pred_region
    _
  $region21: #{meta_ac_forward.1} parent=0 // pred_fallthru
    _
  // Predicated region
  $region22: #{meta_ac_forward.1} parent=0 // pred_check
    _
  $region23: #{meta_ac_forward.1} parent=0 // pred_check_branch
    %30 = sbr.rel (0) target = $region25
  $region24: #{meta_ac_forward.1} parent=0 // pred_region
    _
  $region25: #{meta_ac_forward.1} parent=0 // pred_fallthru
    _
  // Predicated region
  $region26: #{meta_ac_forward.1} parent=0 // pred_check
    _
  $region27: #{meta_ac_forward.1} parent=0 // pred_check_branch
    %32 = sbr.rel (0) target = $region29
  $region28: #{meta_ac_forward.1} parent=0 // pred_region
    _
  $region29: #{meta_ac_forward.1} parent=0 // pred_fallthru
    _
  // Predicated region
  $region30: #{meta_ac_forward.1} parent=0 // pred_check
    _
  $region31: #{meta_ac_forward.1} parent=0 // pred_check_branch
    %34 = sbr.rel (0) target = $region33
  $region32: #{meta_ac_forward.1} parent=0 // pred_region
    _
  $region33: #{meta_ac_forward.1} parent=0 // pred_fallthru
    _
  // Predicated region
  $region34: #{meta_ac_forward.1} parent=0 // pred_check
    _
  $region35: #{meta_ac_forward.1} parent=0 // pred_check_branch
    %36 = sbr.rel (0) target = $region37
  $region36: #{meta_ac_forward.1} parent=0 // pred_region
    _
  $region37: #{meta_ac_forward.1} parent=0 // pred_fallthru
    _
  // Predicated region
  $region38: #{meta_ac_forward.1} parent=0 // pred_check
    _
  $region39: #{meta_ac_forward.1} parent=0 // pred_check_branch
    %38 = sbr.rel (0) target = $region41
  $region40: #{meta_ac_forward.1} parent=0 // pred_region
    _
  $region41: #{meta_ac_forward.1} parent=0 // pred_fallthru
    _
  // Predicated region
  $region42: #{meta_ac_forward.1} parent=0 // pred_check
    _
  $region43: #{meta_ac_forward.1} parent=0 // pred_check_branch
    %40 = sbr.rel (0) target = $region45
  $region44: #{meta_ac_forward.1} parent=0 // pred_region
    _
  $region45: #{meta_ac_forward.1} parent=0 // pred_fallthru
    _
  // Predicated region
  $region46: #{meta_ac_forward.1} parent=0 // pred_check
    _
  $region47: #{meta_ac_forward.1} parent=0 // pred_check_branch
    %42 = sbr.rel (0) target = $region49
  $region48: #{meta_ac_forward.1} parent=0 // pred_region
    _
  $region49: #{meta_ac_forward.1} parent=0 // pred_fallthru
    _
  // Predicated region
  $region50: #{meta_ac_forward.1} parent=0 // pred_check
    _
  $region51: #{meta_ac_forward.1} parent=0 // pred_check_branch
    %44 = sbr.rel (0) target = $region53
  $region52: #{meta_ac_forward.1} parent=0 // pred_region
    _
  $region53: #{meta_ac_forward.1} parent=0 // pred_fallthru
    _
  // Predicated region
  $region54: #{meta_ac_forward.1} parent=0 // pred_check
    _
  $region55: #{meta_ac_forward.1} parent=0 // pred_check_branch
    %46 = sbr.rel (0) target = $region57
  $region56: #{meta_ac_forward.1} parent=0 // pred_region
    _
  $region57: #{meta_ac_forward.1} parent=0 // pred_fallthru
    _
  %v48 = vld [vmem:[%s0] sm:$0x3]
  %v49 = vld [vmem:[%s1] sm:$0x3]
  %v50 = vld [vmem:[%s2] sm:$0x3]
  %v51 = vld [vmem:[%s3] sm:$0xff]
  %v52 = vld [vmem:[%s3 + $0x8] sm:$0xff]
  %v53 = vld [vmem:[%s3 + $0x10] sm:$0xff]
  %v54 = vld [vmem:[%s3 + $0x18] sm:$0xff]
  %v55 = vld [vmem:[%s3 + $0x20] sm:$0xff]
  %v56 = vld [vmem:[%s3 + $0x28] sm:$0x11]
  %v57 = vld [vmem:[%s3 + $0x30] sm:$0x11]
  %v58 = vld [vmem:[%s3 + $0x38] sm:$0x11]
  %v59 = vld [vmem:[%s3 + $0x40] sm:$0x11]
  %v60 = vld [vmem:[%s3 + $0x48] sm:$0x11]
  %v61 = vld [vmem:[%s4] sm:$0xff]
  %v62 = vld [vmem:[%s4 + $0x8] sm:$0x3]
  %v63 = vld [vmem:[%s5] sm:$0xff]
  %v64 = vld [vmem:[%s5 + $0x8] sm:$0xf]
  %v65 = vld [vmem:[%s5 + $0xc] sm:$0xff]
  %v66 = vld [vmem:[%s5 + $0x14] sm:$0xf]
  %v67 = vld [vmem:[%s5 + $0x18] sm:$0xff]
  %v68 = vld [vmem:[%s5 + $0x20] sm:$0xf]
  %v69 = vld [vmem:[%s5 + $0x24] sm:$0xff]
  %v70 = vld [vmem:[%s5 + $0x2c] sm:$0xf]
  %v71 = vld [vmem:[%s5 + $0x30] sm:$0xff]
  %v72 = vld [vmem:[%s5 + $0x38] sm:$0xf]
  %v73 = vld [vmem:[%s5 + $0x3c] sm:$0xff]
  %v74 = vld [vmem:[%s5 + $0x44] sm:$0xf]
  %v75 = vld [vmem:[%s5 + $0x48] sm:$0xff]
  %v76 = vld [vmem:[%s5 + $0x50] sm:$0xf]
  %v77 = vld [vmem:[%s5 + $0x54] sm:$0xff]
  %v78 = vld [vmem:[%s5 + $0x5c] sm:$0xf]
  %v79 = vld [vmem:[%s5 + $0x60] sm:$0xff]
  %v80 = vld [vmem:[%s5 + $0x68] sm:$0xf]
  %v81 = vld [vmem:[%s5 + $0x6c] sm:$0xff]
  %v82 = vld [vmem:[%s5 + $0x74] sm:$0xf]
  %v83 = vld [vmem:[%s5 + $0x78] sm:$0xff]
  %v84 = vld [vmem:[%s5 + $0x80] sm:$0xf]
  %v85 = vld [vmem:[%s5 + $0x84] sm:$0xff]
  %v86 = vld [vmem:[%s5 + $0x8c] sm:$0xf]
  %v87 = vld [vmem:[%s5 + $0x90] sm:$0xff]
  %v88 = vld [vmem:[%s5 + $0x98] sm:$0xf]
  %v89 = vld [vmem:[%s5 + $0x9c] sm:$0xff]
  %v90 = vld [vmem:[%s5 + $0xa4] sm:$0xf]
  %v91 = vld [vmem:[%s5 + $0xa8] sm:$0xff]
  %v92 = vld [vmem:[%s5 + $0xb0] sm:$0xf]
  %v93 = vld [vmem:[%s5 + $0xb4] sm:$0xff]
  %v94 = vld [vmem:[%s5 + $0xbc] sm:$0xf]
  %v95 = vld [vmem:[%s5 + $0xc0] sm:$0xff]
  %v96 = vld [vmem:[%s5 + $0xc8] sm:$0xf]
  %v97 = vld [vmem:[%s5 + $0xcc] sm:$0xff]
  %v98 = vld [vmem:[%s5 + $0xd4] sm:$0xf]
  %v99 = vld [vmem:[%s5 + $0xd8] sm:$0xff]
  %v100 = vld [vmem:[%s5 + $0xe0] sm:$0xf]
  %v101 = vld [vmem:[%s5 + $0xe4] sm:$0xff]
  %v102 = vld [vmem:[%s5 + $0xec] sm:$0xf]
  %v103 = vld [vmem:[%s5 + $0xf0] sm:$0xff]
  %v104 = vld [vmem:[%s5 + $0xf8] sm:$0xf]
  %v105 = vld [vmem:[%s5 + $0xfc] sm:$0xff]
  %v106 = vld [vmem:[%s5 + $0x104] sm:$0xf]
  %v107 = vld [vmem:[%s5 + $0x108] sm:$0xff]
  %v108 = vld [vmem:[%s5 + $0x110] sm:$0xf]
  %v109 = vld [vmem:[%s5 + $0x114] sm:$0xff]
  %v110 = vld [vmem:[%s5 + $0x11c] sm:$0xf]
  %v111 = vld [vmem:[%s5 + $0x120] sm:$0xff]
  %v112 = vld [vmem:[%s5 + $0x128] sm:$0xf]
  %v113 = vld [vmem:[%s5 + $0x12c] sm:$0xff]
  %v114 = vld [vmem:[%s5 + $0x134] sm:$0xf]
  %v115 = vld [vmem:[%s5 + $0x138] sm:$0xff]
  %v116 = vld [vmem:[%s5 + $0x140] sm:$0xf]
  %v117 = vld [vmem:[%s5 + $0x144] sm:$0xff]
  %v118 = vld [vmem:[%s5 + $0x14c] sm:$0xf]
  %v119 = vld [vmem:[%s5 + $0x150] sm:$0xff]
  %v120 = vld [vmem:[%s5 + $0x158] sm:$0xf]
  %v121 = vld [vmem:[%s5 + $0x15c] sm:$0xff]
  %v122 = vld [vmem:[%s5 + $0x164] sm:$0xf]
  %v123 = vld [vmem:[%s5 + $0x168] sm:$0xff]
  %v124 = vld [vmem:[%s5 + $0x170] sm:$0xf]
  %v125 = vld [vmem:[%s5 + $0x174] sm:$0xff]
  %v126 = vld [vmem:[%s5 + $0x17c] sm:$0xf]
  %v127 = vld [vmem:[%s5 + $0x180] sm:$0xff]
  %v128 = vld [vmem:[%s5 + $0x188] sm:$0xf]
  %v129 = vld [vmem:[%s5 + $0x18c] sm:$0xff]
  %v130 = vld [vmem:[%s5 + $0x194] sm:$0xf]
  %v131 = vld [vmem:[%s5 + $0x198] sm:$0xff]
  %v132 = vld [vmem:[%s5 + $0x1a0] sm:$0xf]
  %v133 = vld [vmem:[%s5 + $0x1a4] sm:$0xff]
  %v134 = vld [vmem:[%s5 + $0x1ac] sm:$0xf]
  %v135 = vld [vmem:[%s5 + $0x1b0] sm:$0xff]
  %v136 = vld [vmem:[%s5 + $0x1b8] sm:$0xf]
  %v137 = vld [vmem:[%s5 + $0x1bc] sm:$0xff]
  %v138 = vld [vmem:[%s5 + $0x1c4] sm:$0xf]
  %v139 = vld [vmem:[%s5 + $0x1c8] sm:$0xff]
  %v140 = vld [vmem:[%s5 + $0x1d0] sm:$0xf]
  %v141 = vld [vmem:[%s5 + $0x1d4] sm:$0xff]
  %v142 = vld [vmem:[%s5 + $0x1dc] sm:$0xf]
  %v143 = vld [vmem:[%s5 + $0x1e0] sm:$0xff]
  %v144 = vld [vmem:[%s5 + $0x1e8] sm:$0xf]
  %v145 = vld [vmem:[%s5 + $0x1ec] sm:$0xff]
  %v146 = vld [vmem:[%s5 + $0x1f4] sm:$0xf]
  %v147 = vld [vmem:[%s5 + $0x1f8] sm:$0xff]
  %v148 = vld [vmem:[%s5 + $0x200] sm:$0xf]
  %v149 = vld [vmem:[%s5 + $0x204] sm:$0xff]
  %v150 = vld [vmem:[%s5 + $0x20c] sm:$0xf]
  %v151 = vld [vmem:[%s5 + $0x210] sm:$0xff]
  %v152 = vld [vmem:[%s5 + $0x218] sm:$0xf]
  %v153 = vld [vmem:[%s5 + $0x21c] sm:$0xff]
  %v154 = vld [vmem:[%s5 + $0x224] sm:$0xf]
  %v155 = vld [vmem:[%s5 + $0x228] sm:$0xff]
  %v156 = vld [vmem:[%s5 + $0x230] sm:$0xf]
  %v157 = vld [vmem:[%s5 + $0x234] sm:$0xff]
  %v158 = vld [vmem:[%s5 + $0x23c] sm:$0xf]
  %v159 = vld [vmem:[%s5 + $0x240] sm:$0xff]
  %v160 = vld [vmem:[%s5 + $0x248] sm:$0xf]
  %v161 = vld [vmem:[%s5 + $0x24c] sm:$0xff]
  %v162 = vld [vmem:[%s5 + $0x254] sm:$0xf]
  %v163 = vld [vmem:[%s5 + $0x258] sm:$0xff]
  %v164 = vld [vmem:[%s5 + $0x260] sm:$0xf]
  %v165 = vld [vmem:[%s5 + $0x264] sm:$0xff]
  %v166 = vld [vmem:[%s5 + $0x26c] sm:$0xf]
  %v167 = vld [vmem:[%s5 + $0x270] sm:$0xff]
  %v168 = vld [vmem:[%s5 + $0x278] sm:$0xf]
  %v169 = vld [vmem:[%s5 + $0x27c] sm:$0xff]
  %v170 = vld [vmem:[%s5 + $0x284] sm:$0xf]
  %v171 = vld [vmem:[%s5 + $0x288] sm:$0xff]
  %v172 = vld [vmem:[%s5 + $0x290] sm:$0xf]
  %v173 = vld [vmem:[%s5 + $0x294] sm:$0xff]
  %v174 = vld [vmem:[%s5 + $0x29c] sm:$0xf]
  %v175 = vld [vmem:[%s5 + $0x2a0] sm:$0xff]
  %v176 = vld [vmem:[%s5 + $0x2a8] sm:$0xf]
  %v177 = vld [vmem:[%s5 + $0x2ac] sm:$0xff]
  %v178 = vld [vmem:[%s5 + $0x2b4] sm:$0xf]
  %v179 = vld [vmem:[%s5 + $0x2b8] sm:$0xff]
  %v180 = vld [vmem:[%s5 + $0x2c0] sm:$0xf]
  %v181 = vld [vmem:[%s5 + $0x2c4] sm:$0xff]
  %v182 = vld [vmem:[%s5 + $0x2cc] sm:$0xf]
  %v183 = vld [vmem:[%s5 + $0x2d0] sm:$0xff]
  %v184 = vld [vmem:[%s5 + $0x2d8] sm:$0xf]
  %v185 = vld [vmem:[%s5 + $0x2dc] sm:$0xff]
  %v186 = vld [vmem:[%s5 + $0x2e4] sm:$0xf]
  %v187 = vld [vmem:[%s5 + $0x2e8] sm:$0xff]
  %v188 = vld [vmem:[%s5 + $0x2f0] sm:$0xf]
  %v189 = vld [vmem:[%s5 + $0x2f4] sm:$0xff]
  %v190 = vld [vmem:[%s5 + $0x2fc] sm:$0xf]
  %v191 = vld [vmem:[%s5 + $0x300] sm:$0xff]
  %v192 = vld [vmem:[%s5 + $0x308] sm:$0xf]
  %v193 = vld [vmem:[%s5 + $0x30c] sm:$0xff]
  %v194 = vld [vmem:[%s5 + $0x314] sm:$0xf]
  %v195 = vld [vmem:[%s5 + $0x318] sm:$0xff]
  %v196 = vld [vmem:[%s5 + $0x320] sm:$0xf]
  %v197 = vld [vmem:[%s5 + $0x324] sm:$0xff]
  %v198 = vld [vmem:[%s5 + $0x32c] sm:$0xf]
  %v199 = vld [vmem:[%s5 + $0x330] sm:$0xff]
  %v200 = vld [vmem:[%s5 + $0x338] sm:$0xf]
  %v201 = vld [vmem:[%s5 + $0x33c] sm:$0xff]
  %v202 = vld [vmem:[%s5 + $0x344] sm:$0xf]
  %v203 = vld [vmem:[%s5 + $0x348] sm:$0xff]
  %v204 = vld [vmem:[%s5 + $0x350] sm:$0xf]
  %v205 = vld [vmem:[%s5 + $0x354] sm:$0xff]
  %v206 = vld [vmem:[%s5 + $0x35c] sm:$0xf]
  %v207 = vld [vmem:[%s5 + $0x360] sm:$0xff]
  %v208 = vld [vmem:[%s5 + $0x368] sm:$0xf]
  %v209 = vld [vmem:[%s5 + $0x36c] sm:$0xff]
  %v210 = vld [vmem:[%s5 + $0x374] sm:$0xf]
  %v211 = vld [vmem:[%s5 + $0x378] sm:$0xff]
  %v212 = vld [vmem:[%s5 + $0x380] sm:$0xf]
  %v213 = vld [vmem:[%s5 + $0x384] sm:$0xff]
  %v214 = vld [vmem:[%s5 + $0x38c] sm:$0xf]
  %v215 = vld [vmem:[%s5 + $0x390] sm:$0xff]
  %v216 = vld [vmem:[%s5 + $0x398] sm:$0xf]
  %v217 = vld [vmem:[%s5 + $0x39c] sm:$0xff]
  %v218 = vld [vmem:[%s5 + $0x3a4] sm:$0xf]
  %v219 = vld [vmem:[%s5 + $0x3a8] sm:$0xff]
  %v220 = vld [vmem:[%s5 + $0x3b0] sm:$0xf]
  %v221 = vld [vmem:[%s5 + $0x3b4] sm:$0xff]
  %v222 = vld [vmem:[%s5 + $0x3bc] sm:$0xf]
  %v223 = vld [vmem:[%s5 + $0x3c0] sm:$0xff]
  %v224 = vld [vmem:[%s5 + $0x3c8] sm:$0xf]
  %v225 = vld [vmem:[%s5 + $0x3cc] sm:$0xff]
  %v226 = vld [vmem:[%s5 + $0x3d4] sm:$0xf]
  %v227 = vld [vmem:[%s5 + $0x3d8] sm:$0xff]
  %v228 = vld [vmem:[%s5 + $0x3e0] sm:$0xf]
  %v229 = vld [vmem:[%s5 + $0x3e4] sm:$0xff]
  %v230 = vld [vmem:[%s5 + $0x3ec] sm:$0xf]
  %v231 = vld [vmem:[%s5 + $0x3f0] sm:$0xff]
  %v232 = vld [vmem:[%s5 + $0x3f8] sm:$0xf]
  %v233 = vld [vmem:[%s5 + $0x3fc] sm:$0xff]
  %v234 = vld [vmem:[%s5 + $0x404] sm:$0xf]
  %v235 = vld [vmem:[%s5 + $0x408] sm:$0xff]
  %v236 = vld [vmem:[%s5 + $0x410] sm:$0xf]
  %v237 = vld [vmem:[%s5 + $0x414] sm:$0xff]
  %v238 = vld [vmem:[%s5 + $0x41c] sm:$0xf]
  %v239 = vld [vmem:[%s5 + $0x420] sm:$0xff]
  %v240 = vld [vmem:[%s5 + $0x428] sm:$0xf]
  %v241 = vld [vmem:[%s5 + $0x42c] sm:$0xff]
  %v242 = vld [vmem:[%s5 + $0x434] sm:$0xf]
  %v243 = vld [vmem:[%s5 + $0x438] sm:$0xff]
  %v244 = vld [vmem:[%s5 + $0x440] sm:$0xf]
  %v245 = vld [vmem:[%s5 + $0x444] sm:$0xff]
  %v246 = vld [vmem:[%s5 + $0x44c] sm:$0xf]
  %v247 = vld [vmem:[%s5 + $0x450] sm:$0xff]
  %v248 = vld [vmem:[%s5 + $0x458] sm:$0xf]
  %v249 = vld [vmem:[%s5 + $0x45c] sm:$0xff]
  %v250 = vld [vmem:[%s5 + $0x464] sm:$0xf]
  %v251 = vld [vmem:[%s5 + $0x468] sm:$0xff]
  %v252 = vld [vmem:[%s5 + $0x470] sm:$0xf]
  %v253 = vld [vmem:[%s5 + $0x474] sm:$0xff]
  %v254 = vld [vmem:[%s5 + $0x47c] sm:$0xf]
  %v255 = vld [vmem:[%s5 + $0x480] sm:$0xff]
  %v256 = vld [vmem:[%s5 + $0x488] sm:$0xf]
  %v257 = vld [vmem:[%s5 + $0x48c] sm:$0xff]
  %v258 = vld [vmem:[%s5 + $0x494] sm:$0xf]
  %v259 = vld [vmem:[%s5 + $0x498] sm:$0xff]
  %v260 = vld [vmem:[%s5 + $0x4a0] sm:$0xf]
  %v261 = vld [vmem:[%s5 + $0x4a4] sm:$0xff]
  %v262 = vld [vmem:[%s5 + $0x4ac] sm:$0xf]
  %v263 = vld [vmem:[%s5 + $0x4b0] sm:$0xff]
  %v264 = vld [vmem:[%s5 + $0x4b8] sm:$0xf]
  %v265 = vld [vmem:[%s5 + $0x4bc] sm:$0xff]
  %v266 = vld [vmem:[%s5 + $0x4c4] sm:$0xf]
  %v267 = vld [vmem:[%s5 + $0x4c8] sm:$0xff]
  %v268 = vld [vmem:[%s5 + $0x4d0] sm:$0xf]
  %v269 = vld [vmem:[%s5 + $0x4d4] sm:$0xff]
  %v270 = vld [vmem:[%s5 + $0x4dc] sm:$0xf]
  %v271 = vld [vmem:[%s5 + $0x4e0] sm:$0xff]
  %v272 = vld [vmem:[%s5 + $0x4e8] sm:$0xf]
  %v273 = vld [vmem:[%s5 + $0x4ec] sm:$0xff]
  %v274 = vld [vmem:[%s5 + $0x4f4] sm:$0xf]
  %v275 = vld [vmem:[%s5 + $0x4f8] sm:$0xff]
  %v276 = vld [vmem:[%s5 + $0x500] sm:$0xf]
  %v277 = vld [vmem:[%s5 + $0x504] sm:$0xff]
  %v278 = vld [vmem:[%s5 + $0x50c] sm:$0xf]
  %v279 = vld [vmem:[%s5 + $0x510] sm:$0xff]
  %v280 = vld [vmem:[%s5 + $0x518] sm:$0xf]
  %v281 = vld [vmem:[%s5 + $0x51c] sm:$0xff]
  %v282 = vld [vmem:[%s5 + $0x524] sm:$0xf]
  %v283 = vld [vmem:[%s5 + $0x528] sm:$0xff]
  %v284 = vld [vmem:[%s5 + $0x530] sm:$0xf]
  %v285 = vld [vmem:[%s5 + $0x534] sm:$0xff]
  %v286 = vld [vmem:[%s5 + $0x53c] sm:$0xf]
  %v287 = vld [vmem:[%s5 + $0x540] sm:$0xff]
  %v288 = vld [vmem:[%s5 + $0x548] sm:$0xf]
  %v289 = vld [vmem:[%s5 + $0x54c] sm:$0xff]
  %v290 = vld [vmem:[%s5 + $0x554] sm:$0xf]
  %v291 = vld [vmem:[%s5 + $0x558] sm:$0xff]
  %v292 = vld [vmem:[%s5 + $0x560] sm:$0xf]
  %v293 = vld [vmem:[%s5 + $0x564] sm:$0xff]
  %v294 = vld [vmem:[%s5 + $0x56c] sm:$0xf]
  %v295 = vld [vmem:[%s5 + $0x570] sm:$0xff]
  %v296 = vld [vmem:[%s5 + $0x578] sm:$0xf]
  %v297 = vld [vmem:[%s5 + $0x57c] sm:$0xff]
  %v298 = vld [vmem:[%s5 + $0x584] sm:$0xf]
  %v299 = vld [vmem:[%s5 + $0x588] sm:$0xff]
  %v300 = vld [vmem:[%s5 + $0x590] sm:$0xf]
  %v301 = vld [vmem:[%s5 + $0x594] sm:$0xff]
  %v302 = vld [vmem:[%s5 + $0x59c] sm:$0xf]
  %v303 = vld [vmem:[%s5 + $0x5a0] sm:$0xff]
  %v304 = vld [vmem:[%s5 + $0x5a8] sm:$0xf]
  %v305 = vld [vmem:[%s5 + $0x5ac] sm:$0xff]
  %v306 = vld [vmem:[%s5 + $0x5b4] sm:$0xf]
  %v307 = vld [vmem:[%s5 + $0x5b8] sm:$0xff]
  %v308 = vld [vmem:[%s5 + $0x5c0] sm:$0xf]
  %v309 = vld [vmem:[%s5 + $0x5c4] sm:$0xff]
  %v310 = vld [vmem:[%s5 + $0x5cc] sm:$0xf]
  %v311 = vld [vmem:[%s5 + $0x5d0] sm:$0xff]
  %v312 = vld [vmem:[%s5 + $0x5d8] sm:$0xf]
  %v313 = vld [vmem:[%s5 + $0x5dc] sm:$0xff]
  %v314 = vld [vmem:[%s5 + $0x5e4] sm:$0xf]
  %v315 = vld [vmem:[%s5 + $0x5e8] sm:$0xff]
  %v316 = vld [vmem:[%s5 + $0x5f0] sm:$0xf]
  %v317 = vld [vmem:[%s5 + $0x5f4] sm:$0xff]
  %v318 = vld [vmem:[%s5 + $0x5fc] sm:$0xf]
  %v319 = vld [vmem:[%s5 + $0x600] sm:$0xff]
  %v320 = vld [vmem:[%s5 + $0x608] sm:$0xf]
  %v321 = vld [vmem:[%s5 + $0x60c] sm:$0xff]
  %v322 = vld [vmem:[%s5 + $0x614] sm:$0xf]
  %v323 = vld [vmem:[%s5 + $0x618] sm:$0xff]
  %v324 = vld [vmem:[%s5 + $0x620] sm:$0xf]
  %v325 = vld [vmem:[%s5 + $0x624] sm:$0xff]
  %v326 = vld [vmem:[%s5 + $0x62c] sm:$0xf]
  %v327 = vld [vmem:[%s5 + $0x630] sm:$0xff]
  %v328 = vld [vmem:[%s5 + $0x638] sm:$0xf]
  %v329 = vld [vmem:[%s5 + $0x63c] sm:$0xff]
  %v330 = vld [vmem:[%s5 + $0x644] sm:$0xf]
  %v331 = vld [vmem:[%s5 + $0x648] sm:$0xff]
  %v332 = vld [vmem:[%s5 + $0x650] sm:$0xf]
  %v333 = vld [vmem:[%s5 + $0x654] sm:$0xff]
  %v334 = vld [vmem:[%s5 + $0x65c] sm:$0xf]
  %v335 = vld [vmem:[%s5 + $0x660] sm:$0xff]
  %v336 = vld [vmem:[%s5 + $0x668] sm:$0xf]
  %v337 = vld [vmem:[%s5 + $0x66c] sm:$0xff]
  %v338 = vld [vmem:[%s5 + $0x674] sm:$0xf]
  %v339 = vld [vmem:[%s5 + $0x678] sm:$0xff]
  %v340 = vld [vmem:[%s5 + $0x680] sm:$0xf]
  %v341 = vld [vmem:[%s5 + $0x684] sm:$0xff]
  %v342 = vld [vmem:[%s5 + $0x68c] sm:$0xf]
  %v343 = vld [vmem:[%s5 + $0x690] sm:$0xff]
  %v344 = vld [vmem:[%s5 + $0x698] sm:$0xf]
  %v345 = vld [vmem:[%s5 + $0x69c] sm:$0xff]
  %v346 = vld [vmem:[%s5 + $0x6a4] sm:$0xf]
  %v347 = vld [vmem:[%s5 + $0x6a8] sm:$0xff]
  %v348 = vld [vmem:[%s5 + $0x6b0] sm:$0xf]
  %v349 = vld [vmem:[%s5 + $0x6b4] sm:$0xff]
  %v350 = vld [vmem:[%s5 + $0x6bc] sm:$0xf]
  %v351 = vld [vmem:[%s5 + $0x6c0] sm:$0xff]
  %v352 = vld [vmem:[%s5 + $0x6c8] sm:$0xf]
  %v353 = vld [vmem:[%s5 + $0x6cc] sm:$0xff]
  %v354 = vld [vmem:[%s5 + $0x6d4] sm:$0xf]
  %v355 = vld [vmem:[%s5 + $0x6d8] sm:$0xff]
  %v356 = vld [vmem:[%s5 + $0x6e0] sm:$0xf]
  %v357 = vld [vmem:[%s5 + $0x6e4] sm:$0xff]
  %v358 = vld [vmem:[%s5 + $0x6ec] sm:$0xf]
  %v359 = vld [vmem:[%s5 + $0x6f0] sm:$0xff]
  %v360 = vld [vmem:[%s5 + $0x6f8] sm:$0xf]
  %v361 = vld [vmem:[%s5 + $0x6fc] sm:$0xff]
  %v362 = vld [vmem:[%s5 + $0x704] sm:$0xf]
  %v363 = vld [vmem:[%s5 + $0x708] sm:$0xff]
  %v364 = vld [vmem:[%s5 + $0x710] sm:$0xf]
  %v365 = vld [vmem:[%s5 + $0x714] sm:$0xff]
  %v366 = vld [vmem:[%s5 + $0x71c] sm:$0xf]
  %v367 = vld [vmem:[%s5 + $0x720] sm:$0xff]
  %v368 = vld [vmem:[%s5 + $0x728] sm:$0xf]
  %v369 = vld [vmem:[%s5 + $0x72c] sm:$0xff]
  %v370 = vld [vmem:[%s5 + $0x734] sm:$0xf]
  %v371 = vld [vmem:[%s5 + $0x738] sm:$0xff]
  %v372 = vld [vmem:[%s5 + $0x740] sm:$0xf]
  %v373 = vld [vmem:[%s5 + $0x744] sm:$0xff]
  %v374 = vld [vmem:[%s5 + $0x74c] sm:$0xf]
  %v375 = vld [vmem:[%s5 + $0x750] sm:$0xff]
  %v376 = vld [vmem:[%s5 + $0x758] sm:$0xf]
  %v377 = vld [vmem:[%s5 + $0x75c] sm:$0xff]
  %v378 = vld [vmem:[%s5 + $0x764] sm:$0xf]
  %v379 = vld [vmem:[%s5 + $0x768] sm:$0xff]
  %v380 = vld [vmem:[%s5 + $0x770] sm:$0xf]
  %v381 = vld [vmem:[%s5 + $0x774] sm:$0xff]
  %v382 = vld [vmem:[%s5 + $0x77c] sm:$0xf]
  %v383 = vld [vmem:[%s6] sm:$0x7]
  %v384 = vld [vmem:[%s7] sm:$0xff]
  %v385 = vld [vmem:[%s7 + $0x8] sm:$0xff]
  %v386 = vld [vmem:[%s7 + $0x10] sm:$0xff]
  %v387 = vld [vmem:[%s7 + $0x18] sm:$0xff]
  %v388 = vld [vmem:[%s7 + $0x20] sm:$0xff]
  %v389 = vld [vmem:[%s7 + $0x28] sm:$0xff]
  %v390 = vld [vmem:[%s8] sm:$0xff]
  %v391 = vld [vmem:[%s8 + $0x8] sm:$0xff]
  %v392 = vld [vmem:[%s8 + $0x10] sm:$0xff]
  %v393 = vld [vmem:[%s8 + $0x18] sm:$0xff]
  %v394 = vld [vmem:[%s8 + $0x20] sm:$0xff]
  %v395 = vld [vmem:[%s8 + $0x28] sm:$0xff]
  %v396 = vld [vmem:[%s8 + $0x30] sm:$0xff]
  %v397 = vld [vmem:[%s8 + $0x38] sm:$0xff]
  %v398 = vld [vmem:[%s8 + $0x40] sm:$0xff]
  %v399 = vld [vmem:[%s8 + $0x48] sm:$0xff]
  %v400 = vld [vmem:[%s8 + $0x50] sm:$0xff]
  %v401 = vld [vmem:[%s8 + $0x58] sm:$0xff]
  %v402 = vld [vmem:[%s8 + $0x60] sm:$0xff]
  %v403 = vld [vmem:[%s8 + $0x68] sm:$0xff]
  %v404 = vld [vmem:[%s8 + $0x70] sm:$0xff]
  %v405 = vld [vmem:[%s8 + $0x78] sm:$0xff]
  %v406 = vld [vmem:[%s8 + $0x80] sm:$0xff]
  %v407 = vld [vmem:[%s8 + $0x88] sm:$0xff]
  %v408 = vld [vmem:[%s8 + $0x90] sm:$0xff]
  %v409 = vld [vmem:[%s8 + $0x98] sm:$0xff]
  %v410 = vld [vmem:[%s8 + $0xa0] sm:$0xff]
  %v411 = vld [vmem:[%s8 + $0xa8] sm:$0xff]
  %v412 = vld [vmem:[%s8 + $0xb0] sm:$0xff]
  %v413 = vld [vmem:[%s8 + $0xb8] sm:$0xff]
  %v414 = vld [vmem:[%s8 + $0xc0] sm:$0xff]
  %v415 = vld [vmem:[%s8 + $0xc8] sm:$0xff]
  %v416 = vld [vmem:[%s8 + $0xd0] sm:$0xff]
  %v417 = vld [vmem:[%s8 + $0xd8] sm:$0xff]
  %v418 = vld [vmem:[%s8 + $0xe0] sm:$0xff]
  %v419 = vld [vmem:[%s8 + $0xe8] sm:$0xff]
  %v420 = vld [vmem:[%s9] sm:$0xff]
  %v421 = vld [vmem:[%s9 + $0x8] sm:$0x3]
  %v422 = vld [vmem:[%s10] sm:$0xf]
  %v423 = vld [vmem:[%s10 + $0x4] sm:$0xf]
  %v424 = vld [vmem:[%s10 + $0x8] sm:$0xf]
  %v425 = vld [vmem:[%s10 + $0xc] sm:$0xf]
  %v426 = vld [vmem:[%s10 + $0x10] sm:$0xf]
  %v427 = vld [vmem:[%s10 + $0x14] sm:$0xf]
  %v428 = vld [vmem:[%s10 + $0x18] sm:$0xf]
  %v429 = vld [vmem:[%s10 + $0x1c] sm:$0xf]
  %v430 = vld [vmem:[%s10 + $0x20] sm:$0xf]
  %v431 = vld [vmem:[%s10 + $0x24] sm:$0xf]
  %v432 = vld [vmem:[%s10 + $0x28] sm:$0xf]
  %v433 = vld [vmem:[%s10 + $0x2c] sm:$0xf]
  %v434 = vld [vmem:[%s10 + $0x30] sm:$0xf]
  %v435 = vld [vmem:[%s10 + $0x34] sm:$0xf]
  %v436 = vld [vmem:[%s10 + $0x38] sm:$0xf]
  %v437 = vld [vmem:[%s10 + $0x3c] sm:$0xf]
  %v438 = vld [vmem:[%s10 + $0x40] sm:$0xf]
  %v439 = vld [vmem:[%s10 + $0x44] sm:$0xf]
  %v440 = vld [vmem:[%s10 + $0x48] sm:$0xf]
  %v441 = vld [vmem:[%s10 + $0x4c] sm:$0xf]
  %v442 = vld [vmem:[%s10 + $0x50] sm:$0xf]
  %v443 = vld [vmem:[%s10 + $0x54] sm:$0xf]
  %v444 = vld [vmem:[%s10 + $0x58] sm:$0xf]
  %v445 = vld [vmem:[%s10 + $0x5c] sm:$0xf]
  %v446 = vld [vmem:[%s10 + $0x60] sm:$0xf]
  %v447 = vld [vmem:[%s10 + $0x64] sm:$0xf]
  %v448 = vld [vmem:[%s10 + $0x68] sm:$0xf]
  %v449 = vld [vmem:[%s10 + $0x6c] sm:$0xf]
  %v450 = vld [vmem:[%s10 + $0x70] sm:$0xf]
  %v451 = vld [vmem:[%s10 + $0x74] sm:$0xf]
  %v452 = vld [vmem:[%s10 + $0x78] sm:$0xf]
  %v453 = vld [vmem:[%s10 + $0x7c] sm:$0xf]
  %v454 = vld [vmem:[%s10 + $0x80] sm:$0xf]
  %v455 = vld [vmem:[%s10 + $0x84] sm:$0xf]
  %v456 = vld [vmem:[%s10 + $0x88] sm:$0xf]
  %v457 = vld [vmem:[%s10 + $0x8c] sm:$0xf]
  %v458 = vld [vmem:[%s10 + $0x90] sm:$0xf]
  %v459 = vld [vmem:[%s10 + $0x94] sm:$0xf]
  %v460 = vld [vmem:[%s10 + $0x98] sm:$0xf]
  %v461 = vld [vmem:[%s10 + $0x9c] sm:$0xf]
  %v462 = vld [vmem:[%s10 + $0xa0] sm:$0xf]
  %v463 = vld [vmem:[%s10 + $0xa4] sm:$0xf]
  %v464 = vld [vmem:[%s10 + $0xa8] sm:$0xf]
  %v465 = vld [vmem:[%s10 + $0xac] sm:$0xf]
  %v466 = vld [vmem:[%s10 + $0xb0] sm:$0xf]
  %v467 = vld [vmem:[%s10 + $0xb4] sm:$0xf]
  %v468 = vld [vmem:[%s10 + $0xb8] sm:$0xf]
  %v469 = vld [vmem:[%s10 + $0xbc] sm:$0xf]
  %v470 = vld [vmem:[%s10 + $0xc0] sm:$0xf]
  %v471 = vld [vmem:[%s10 + $0xc4] sm:$0xf]
  %v472 = vld [vmem:[%s10 + $0xc8] sm:$0xf]
  %v473 = vld [vmem:[%s10 + $0xcc] sm:$0xf]
  %v474 = vld [vmem:[%s10 + $0xd0] sm:$0xf]
  %v475 = vld [vmem:[%s10 + $0xd4] sm:$0xf]
  %v476 = vld [vmem:[%s10 + $0xd8] sm:$0xf]
  %v477 = vld [vmem:[%s10 + $0xdc] sm:$0xf]
  %v478 = vld [vmem:[%s10 + $0xe0] sm:$0xf]
  %v479 = vld [vmem:[%s10 + $0xe4] sm:$0xf]
  %v480 = vld [vmem:[%s10 + $0xe8] sm:$0xf]
  %v481 = vld [vmem:[%s10 + $0xec] sm:$0xf]
  %v482 = vld [vmem:[%s10 + $0xf0] sm:$0xf]
  %v483 = vld [vmem:[%s10 + $0xf4] sm:$0xf]
  %v484 = vld [vmem:[%s10 + $0xf8] sm:$0xf]
  %v485 = vld [vmem:[%s10 + $0xfc] sm:$0xf]
  %v486 = vld [vmem:[%s10 + $0x100] sm:$0xf]
  %v487 = vld [vmem:[%s10 + $0x104] sm:$0xf]
  %v488 = vld [vmem:[%s10 + $0x108] sm:$0xf]
  %v489 = vld [vmem:[%s10 + $0x10c] sm:$0xf]
  %v490 = vld [vmem:[%s10 + $0x110] sm:$0xf]
  %v491 = vld [vmem:[%s10 + $0x114] sm:$0xf]
  %v492 = vld [vmem:[%s10 + $0x118] sm:$0xf]
  %v493 = vld [vmem:[%s10 + $0x11c] sm:$0xf]
  %v494 = vld [vmem:[%s10 + $0x120] sm:$0xf]
  %v495 = vld [vmem:[%s10 + $0x124] sm:$0xf]
  %v496 = vld [vmem:[%s10 + $0x128] sm:$0xf]
  %v497 = vld [vmem:[%s10 + $0x12c] sm:$0xf]
  %v498 = vld [vmem:[%s10 + $0x130] sm:$0xf]
  %v499 = vld [vmem:[%s10 + $0x134] sm:$0xf]
  %v500 = vld [vmem:[%s10 + $0x138] sm:$0xf]
  %v501 = vld [vmem:[%s10 + $0x13c] sm:$0xf]
  %v502 = vld [vmem:[%s10 + $0x140] sm:$0xf]
  %v503 = vld [vmem:[%s10 + $0x144] sm:$0xf]
  %v504 = vld [vmem:[%s10 + $0x148] sm:$0xf]
  %v505 = vld [vmem:[%s10 + $0x14c] sm:$0xf]
  %v506 = vld [vmem:[%s10 + $0x150] sm:$0xf]
  %v507 = vld [vmem:[%s10 + $0x154] sm:$0xf]
  %v508 = vld [vmem:[%s10 + $0x158] sm:$0xf]
  %v509 = vld [vmem:[%s10 + $0x15c] sm:$0xf]
  %v510 = vld [vmem:[%s10 + $0x160] sm:$0xf]
  %v511 = vld [vmem:[%s10 + $0x164] sm:$0xf]
  %v512 = vld [vmem:[%s10 + $0x168] sm:$0xf]
  %v513 = vld [vmem:[%s10 + $0x16c] sm:$0xf]
  %v514 = vld [vmem:[%s10 + $0x170] sm:$0xf]
  %v515 = vld [vmem:[%s10 + $0x174] sm:$0xf]
  %v516 = vld [vmem:[%s10 + $0x178] sm:$0xf]
  %v517 = vld [vmem:[%s10 + $0x17c] sm:$0xf]
  %v518 = vld [vmem:[%s10 + $0x180] sm:$0xf]
  %v519 = vld [vmem:[%s10 + $0x184] sm:$0xf]
  %v520 = vld [vmem:[%s10 + $0x188] sm:$0xf]
  %v521 = vld [vmem:[%s10 + $0x18c] sm:$0xf]
  %v522 = vld [vmem:[%s10 + $0x190] sm:$0xf]
  %v523 = vld [vmem:[%s10 + $0x194] sm:$0xf]
  %v524 = vld [vmem:[%s10 + $0x198] sm:$0xf]
  %v525 = vld [vmem:[%s10 + $0x19c] sm:$0xf]
  %v526 = vld [vmem:[%s10 + $0x1a0] sm:$0xf]
  %v527 = vld [vmem:[%s10 + $0x1a4] sm:$0xf]
  %v528 = vld [vmem:[%s10 + $0x1a8] sm:$0xf]
  %v529 = vld [vmem:[%s10 + $0x1ac] sm:$0xf]
  %v530 = vld [vmem:[%s10 + $0x1b0] sm:$0xf]
  %v531 = vld [vmem:[%s10 + $0x1b4] sm:$0xf]
  %v532 = vld [vmem:[%s10 + $0x1b8] sm:$0xf]
  %v533 = vld [vmem:[%s10 + $0x1bc] sm:$0xf]
  %v534 = vld [vmem:[%s10 + $0x1c0] sm:$0xf]
  %v535 = vld [vmem:[%s10 + $0x1c4] sm:$0xf]
  %v536 = vld [vmem:[%s10 + $0x1c8] sm:$0xf]
  %v537 = vld [vmem:[%s10 + $0x1cc] sm:$0xf]
  %v538 = vld [vmem:[%s10 + $0x1d0] sm:$0xf]
  %v539 = vld [vmem:[%s10 + $0x1d4] sm:$0xf]
  %v540 = vld [vmem:[%s10 + $0x1d8] sm:$0xf]
  %v541 = vld [vmem:[%s10 + $0x1dc] sm:$0xf]
  %v542 = vld [vmem:[%s10 + $0x1e0] sm:$0xf]
  %v543 = vld [vmem:[%s10 + $0x1e4] sm:$0xf]
  %v544 = vld [vmem:[%s10 + $0x1e8] sm:$0xf]
  %v545 = vld [vmem:[%s10 + $0x1ec] sm:$0xf]
  %v546 = vld [vmem:[%s10 + $0x1f0] sm:$0xf]
  %v547 = vld [vmem:[%s10 + $0x1f4] sm:$0xf]
  %v548 = vld [vmem:[%s10 + $0x1f8] sm:$0xf]
  %v549 = vld [vmem:[%s10 + $0x1fc] sm:$0xf]
  %v550 = vld [vmem:[%s10 + $0x200] sm:$0xf]
  %v551 = vld [vmem:[%s10 + $0x204] sm:$0xf]
  %v552 = vld [vmem:[%s10 + $0x208] sm:$0xf]
  %v553 = vld [vmem:[%s10 + $0x20c] sm:$0xf]
  %v554 = vld [vmem:[%s10 + $0x210] sm:$0xf]
  %v555 = vld [vmem:[%s10 + $0x214] sm:$0xf]
  %v556 = vld [vmem:[%s10 + $0x218] sm:$0xf]
  %v557 = vld [vmem:[%s10 + $0x21c] sm:$0xf]
  %v558 = vld [vmem:[%s10 + $0x220] sm:$0xf]
  %v559 = vld [vmem:[%s10 + $0x224] sm:$0xf]
  %v560 = vld [vmem:[%s10 + $0x228] sm:$0xf]
  %v561 = vld [vmem:[%s10 + $0x22c] sm:$0xf]
  %v562 = vld [vmem:[%s10 + $0x230] sm:$0xf]
  %v563 = vld [vmem:[%s10 + $0x234] sm:$0xf]
  %v564 = vld [vmem:[%s10 + $0x238] sm:$0xf]
  %v565 = vld [vmem:[%s10 + $0x23c] sm:$0xf]
  %v566 = vld [vmem:[%s10 + $0x240] sm:$0xf]
  %v567 = vld [vmem:[%s10 + $0x244] sm:$0xf]
  %v568 = vld [vmem:[%s10 + $0x248] sm:$0xf]
  %v569 = vld [vmem:[%s10 + $0x24c] sm:$0xf]
  %v570 = vld [vmem:[%s10 + $0x250] sm:$0xf]
  %v571 = vld [vmem:[%s10 + $0x254] sm:$0xf]
  %v572 = vld [vmem:[%s10 + $0x258] sm:$0xf]
  %v573 = vld [vmem:[%s10 + $0x25c] sm:$0xf]
  %v574 = vld [vmem:[%s10 + $0x260] sm:$0xf]
  %v575 = vld [vmem:[%s10 + $0x264] sm:$0xf]
  %v576 = vld [vmem:[%s10 + $0x268] sm:$0xf]
  %v577 = vld [vmem:[%s10 + $0x26c] sm:$0xf]
  %v578 = vld [vmem:[%s10 + $0x270] sm:$0xf]
  %v579 = vld [vmem:[%s10 + $0x274] sm:$0xf]
  %v580 = vld [vmem:[%s10 + $0x278] sm:$0xf]
  %v581 = vld [vmem:[%s10 + $0x27c] sm:$0xf]
  %v582 = vld [vmem:[%s11] sm:$0x1]
  %v583 = vld [vmem:[%s12] sm:$0xf]
  %v584 = vld [vmem:[%s12 + $0x4] sm:$0xf]
  %v585 = vld [vmem:[%s12 + $0x8] sm:$0xf]
  %v586 = vld [vmem:[%s12 + $0xc] sm:$0xf]
  %v587 = vld [vmem:[%s12 + $0x10] sm:$0xf]
  %v588 = vld [vmem:[%s12 + $0x14] sm:$0xf]
  %v589 = vld [vmem:[%s12 + $0x18] sm:$0xf]
  %v590 = vld [vmem:[%s12 + $0x1c] sm:$0xf]
  %v591 = vld [vmem:[%s12 + $0x20] sm:$0xf]
  %v592 = vld [vmem:[%s12 + $0x24] sm:$0xf]
  %v593 = vld [vmem:[%s12 + $0x28] sm:$0xf]
  %v594 = vld [vmem:[%s12 + $0x2c] sm:$0xf]
  %v595 = vld [vmem:[%s12 + $0x30] sm:$0xf]
  %v596 = vld [vmem:[%s12 + $0x34] sm:$0xf]
  %v597 = vld [vmem:[%s12 + $0x38] sm:$0xf]
  %v598 = vld [vmem:[%s12 + $0x3c] sm:$0xf]
  %v599 = vld [vmem:[%s12 + $0x40] sm:$0xf]
  %v600 = vld [vmem:[%s12 + $0x44] sm:$0xf]
  %v601 = vld [vmem:[%s12 + $0x48] sm:$0xf]
  %v602 = vld [vmem:[%s12 + $0x4c] sm:$0xf]
  %v603 = vld [vmem:[%s12 + $0x50] sm:$0xf]
  %v604 = vld [vmem:[%s12 + $0x54] sm:$0xf]
  %v605 = vld [vmem:[%s12 + $0x58] sm:$0xf]
  %v606 = vld [vmem:[%s12 + $0x5c] sm:$0xf]
  %v607 = vld [vmem:[%s12 + $0x60] sm:$0xf]
  %v608 = vld [vmem:[%s12 + $0x64] sm:$0xf]
  %v609 = vld [vmem:[%s12 + $0x68] sm:$0xf]
  %v610 = vld [vmem:[%s12 + $0x6c] sm:$0xf]
  %v611 = vld [vmem:[%s12 + $0x70] sm:$0xf]
  %v612 = vld [vmem:[%s12 + $0x74] sm:$0xf]
  %v613 = vld [vmem:[%s12 + $0x78] sm:$0xf]
  %v614 = vld [vmem:[%s12 + $0x7c] sm:$0xf]
  %v615 = vld [vmem:[%s13] sm:$0x1]
  %v616 = vpack.c.bf16 %v48, %v48
  %v619 = vlaneseq
  %v620 = vshrl.u32 %v619, 7
  %v621 = vsub.s32 0, %v620
  %v622 = vrot.slane %v61, %v621
  %v623 = vlaneseq
  %v624 = vshrl.u32 %v623, 7
  %v625 = vsub.s32 1, %v624
  %v626 = vrot.slane %v61, %v625
  %v627 = vlaneseq
  %v628 = vshrl.u32 %v627, 7
  %v629 = vsub.s32 2, %v628
  %v630 = vrot.slane %v61, %v629
  %v631 = vlaneseq
  %v632 = vshrl.u32 %v631, 7
  %v633 = vsub.s32 3, %v632
  %v634 = vrot.slane %v61, %v633
  %v635 = vlaneseq
  %v636 = vshrl.u32 %v635, 7
  %v637 = vsub.s32 4, %v636
  %v638 = vrot.slane %v61, %v637
  %v639 = vlaneseq
  %v640 = vshrl.u32 %v639, 7
  %v641 = vsub.s32 5, %v640
  %v642 = vrot.slane %v61, %v641
  %v643 = vlaneseq
  %v644 = vshrl.u32 %v643, 7
  %v645 = vsub.s32 6, %v644
  %v646 = vrot.slane %v61, %v645
  %v647 = vlaneseq
  %v648 = vshrl.u32 %v647, 7
  %v649 = vsub.s32 7, %v648
  %v650 = vrot.slane %v61, %v649
  %v651 = vlaneseq
  %v652 = vshrl.u32 %v651, 7
  %v653 = vsub.s32 0, %v652
  %v654 = vrot.slane %v62, %v653
  %v655 = vlaneseq
  %v656 = vshrl.u32 %v655, 7
  %v657 = vsub.s32 1, %v656
  %v658 = vrot.slane %v62, %v657
  %v679 = vunpack.c.l.b16 %v51
  %v680 = vunpack.c.h.b16 %v51
  %v681 = vunpack.c.l.b16 %v52
  %v682 = vunpack.c.h.b16 %v52
  %v683 = vunpack.c.l.b16 %v53
  %v684 = vunpack.c.h.b16 %v53
  %v685 = vunpack.c.l.b16 %v54
  %v686 = vunpack.c.h.b16 %v54
  %v687 = vunpack.c.l.b16 %v55
  %v688 = vunpack.c.h.b16 %v55
  %v689 = vunpack.c.l.b16 %v56
  %v690 = vunpack.c.h.b16 %v56
  %v691 = vunpack.c.l.b16 %v57
  %v692 = vunpack.c.h.b16 %v57
  %v693 = vunpack.c.l.b16 %v58
  %v694 = vunpack.c.h.b16 %v58
  %v695 = vunpack.c.l.b16 %v59
  %v696 = vunpack.c.h.b16 %v59
  %v697 = vunpack.c.l.b16 %v60
  %v698 = vunpack.c.h.b16 %v60
  %v699 = vpack.c.b16 %v689, %v679
  %v700 = vpack.c.b16 %v690, %v680
  %v701 = vpack.c.b16 %v691, %v681
  %v702 = vpack.c.b16 %v692, %v682
  %v703 = vpack.c.b16 %v693, %v683
  %v704 = vpack.c.b16 %v694, %v684
  %v705 = vpack.c.b16 %v695, %v685
  %v706 = vpack.c.b16 %v696, %v686
  %v707 = vpack.c.b16 %v697, %v687
  %v708 = vpack.c.b16 %v698, %v688
  %vm709 = vcmask 80896
  %v711 = vsel %vm709, %v616, 0
  %vm713 = vcmask 1044480
  %v715 = vsel %vm713, %v699, 0
  %v718 = vsel %vm713, %v700, 0
  %v721 = vsel %vm713, %v701, 0
  %v724 = vsel %vm713, %v702, 0
  %v727 = vsel %vm713, %v703, 0
  %v730 = vsel %vm713, %v704, 0
  %v733 = vsel %vm713, %v705, 0
  %v736 = vsel %vm713, %v706, 0
  %v739 = vsel %vm713, %v707, 0
  %v742 = vsel %vm713, %v708, 0
  %744 = vmatprep.subr.bf16.mxu0 0
  %745 = vmatpush1.bf16.msra.mxu0 0
  %746 = vmatprep.subr.bf16.mxu0 0
  %747 = vmatpush1.bf16.msra.mxu0 0
  %748 = vmatprep.subr.bf16.mxu0 0
  %749 = vmatpush1.bf16.msra.mxu0 0
  %750 = vmatprep.subr.bf16.mxu0 0
  %751 = vmatpush1.bf16.msra.mxu0 0
  %752 = vmatprep.subr.bf16.mxu0 0
  %753 = vmatpush1.bf16.msra.mxu0 0
  %754 = vmatprep.subr.bf16.mxu0 0
  %755 = vmatpush1.bf16.msra.mxu0 0
  %756 = vmatprep.subr.bf16.mxu0 0
  %757 = vmatpush1.bf16.msra.mxu0 0
  %758 = vmatprep.subr.bf16.mxu0 %v718
  %759 = vmatpush1.bf16.msra.mxu0 %v715
  %760 = vmatprep.subr.bf16.mxu0 0
  %761 = vmatpush2.bf16.msra.mxu0 0
  %762 = vmatprep.subr.bf16.mxu0 0
  %763 = vmatpush2.bf16.msra.mxu0 0
  %764 = vmatprep.subr.bf16.mxu0 0
  %765 = vmatpush2.bf16.msra.mxu0 0
  %766 = vmatprep.subr.bf16.mxu0 0
  %767 = vmatpush2.bf16.msra.mxu0 0
  %768 = vmatprep.subr.bf16.mxu0 0
  %769 = vmatpush2.bf16.msra.mxu0 0
  %770 = vmatprep.subr.bf16.mxu0 0
  %771 = vmatpush2.bf16.msra.mxu0 0
  %772 = vmatprep.subr.bf16.mxu0 0
  %773 = vmatpush2.bf16.msra.mxu0 0
  %774 = vmatprep.subr.bf16.mxu0 0
  %775 = vmatpush2.bf16.msra.mxu0 0
  %776 = vmatprep.mubr.bf16.mxu0 0
  %777 = vmatmul.mubr.bf16.gmra.mxu0 %v711
  %v778 = vpop.f32.mrf.mxu0
  %v779 = vadd.f32 %v622, %v778
  %v780 = vpop.f32.mrf.mxu0
  %v781 = vadd.f32 %v626, %v780
  %v782 = vpop.f32.mrf.mxu0
  %v783 = vpop.f32.mrf.mxu0
  %784 = vdwg.mxu0
  %785 = vmatprep.subr.bf16.mxu0 0
  %786 = vmatpush1.bf16.msra.mxu0 0
  %787 = vmatprep.subr.bf16.mxu0 0
  %788 = vmatpush1.bf16.msra.mxu0 0
  %789 = vmatprep.subr.bf16.mxu0 0
  %790 = vmatpush1.bf16.msra.mxu0 0
  %791 = vmatprep.subr.bf16.mxu0 0
  %792 = vmatpush1.bf16.msra.mxu0 0
  %793 = vmatprep.subr.bf16.mxu0 0
  %794 = vmatpush1.bf16.msra.mxu0 0
  %795 = vmatprep.subr.bf16.mxu0 0
  %796 = vmatpush1.bf16.msra.mxu0 0
  %797 = vmatprep.subr.bf16.mxu0 0
  %798 = vmatpush1.bf16.msra.mxu0 0
  %799 = vmatprep.subr.bf16.mxu0 %v724
  %800 = vmatpush1.bf16.msra.mxu0 %v721
  %801 = vmatprep.subr.bf16.mxu0 0
  %802 = vmatpush2.bf16.msra.mxu0 0
  %803 = vmatprep.subr.bf16.mxu0 0
  %804 = vmatpush2.bf16.msra.mxu0 0
  %805 = vmatprep.subr.bf16.mxu0 0
  %806 = vmatpush2.bf16.msra.mxu0 0
  %807 = vmatprep.subr.bf16.mxu0 0
  %808 = vmatpush2.bf16.msra.mxu0 0
  %809 = vmatprep.subr.bf16.mxu0 0
  %810 = vmatpush2.bf16.msra.mxu0 0
  %811 = vmatprep.subr.bf16.mxu0 0
  %812 = vmatpush2.bf16.msra.mxu0 0
  %813 = vmatprep.subr.bf16.mxu0 0
  %814 = vmatpush2.bf16.msra.mxu0 0
  %815 = vmatprep.subr.bf16.mxu0 0
  %816 = vmatpush2.bf16.msra.mxu0 0
  %817 = vmatprep.mubr.bf16.mxu0 0
  %818 = vmatmul.mubr.bf16.gmra.mxu0 %v711
  %v819 = vpop.f32.mrf.mxu0
  %v820 = vadd.f32 %v630, %v819
  %v821 = vpop.f32.mrf.mxu0
  %v822 = vadd.f32 %v634, %v821
  %v823 = vpop.f32.mrf.mxu0
  %v824 = vpop.f32.mrf.mxu0
  %825 = vdwg.mxu0
  %826 = vmatprep.subr.bf16.mxu0 0
  %827 = vmatpush1.bf16.msra.mxu0 0
  %828 = vmatprep.subr.bf16.mxu0 0
  %829 = vmatpush1.bf16.msra.mxu0 0
  %830 = vmatprep.subr.bf16.mxu0 0
  %831 = vmatpush1.bf16.msra.mxu0 0
  %832 = vmatprep.subr.bf16.mxu0 0
  %833 = vmatpush1.bf16.msra.mxu0 0
  %834 = vmatprep.subr.bf16.mxu0 0
  %835 = vmatpush1.bf16.msra.mxu0 0
  %836 = vmatprep.subr.bf16.mxu0 0
  %837 = vmatpush1.bf16.msra.mxu0 0
  %838 = vmatprep.subr.bf16.mxu0 0
  %839 = vmatpush1.bf16.msra.mxu0 0
  %840 = vmatprep.subr.bf16.mxu0 %v730
  %841 = vmatpush1.bf16.msra.mxu0 %v727
  %842 = vmatprep.subr.bf16.mxu0 0
  %843 = vmatpush2.bf16.msra.mxu0 0
  %844 = vmatprep.subr.bf16.mxu0 0
  %845 = vmatpush2.bf16.msra.mxu0 0
  %846 = vmatprep.subr.bf16.mxu0 0
  %847 = vmatpush2.bf16.msra.mxu0 0
  %848 = vmatprep.subr.bf16.mxu0 0
  %849 = vmatpush2.bf16.msra.mxu0 0
  %850 = vmatprep.subr.bf16.mxu0 0
  %851 = vmatpush2.bf16.msra.mxu0 0
  %852 = vmatprep.subr.bf16.mxu0 0
  %853 = vmatpush2.bf16.msra.mxu0 0
  %854 = vmatprep.subr.bf16.mxu0 0
  %855 = vmatpush2.bf16.msra.mxu0 0
  %856 = vmatprep.subr.bf16.mxu0 0
  %857 = vmatpush2.bf16.msra.mxu0 0
  %858 = vmatprep.mubr.bf16.mxu0 0
  %859 = vmatmul.mubr.bf16.gmra.mxu0 %v711
  %v860 = vpop.f32.mrf.mxu0
  %v861 = vadd.f32 %v638, %v860
  %v862 = vpop.f32.mrf.mxu0
  %v863 = vadd.f32 %v642, %v862
  %v864 = vpop.f32.mrf.mxu0
  %v865 = vpop.f32.mrf.mxu0
  %866 = vdwg.mxu0
  %867 = vmatprep.subr.bf16.mxu0 0
  %868 = vmatpush1.bf16.msra.mxu0 0
  %869 = vmatprep.subr.bf16.mxu0 0
  %870 = vmatpush1.bf16.msra.mxu0 0
  %871 = vmatprep.subr.bf16.mxu0 0
  %872 = vmatpush1.bf16.msra.mxu0 0
  %873 = vmatprep.subr.bf16.mxu0 0
  %874 = vmatpush1.bf16.msra.mxu0 0
  %875 = vmatprep.subr.bf16.mxu0 0
  %876 = vmatpush1.bf16.msra.mxu0 0
  %877 = vmatprep.subr.bf16.mxu0 0
  %878 = vmatpush1.bf16.msra.mxu0 0
  %879 = vmatprep.subr.bf16.mxu0 0
  %880 = vmatpush1.bf16.msra.mxu0 0
  %881 = vmatprep.subr.bf16.mxu0 %v736
  %882 = vmatpush1.bf16.msra.mxu0 %v733
  %883 = vmatprep.subr.bf16.mxu0 0
  %884 = vmatpush2.bf16.msra.mxu0 0
  %885 = vmatprep.subr.bf16.mxu0 0
  %886 = vmatpush2.bf16.msra.mxu0 0
  %887 = vmatprep.subr.bf16.mxu0 0
  %888 = vmatpush2.bf16.msra.mxu0 0
  %889 = vmatprep.subr.bf16.mxu0 0
  %890 = vmatpush2.bf16.msra.mxu0 0
  %891 = vmatprep.subr.bf16.mxu0 0
  %892 = vmatpush2.bf16.msra.mxu0 0
  %893 = vmatprep.subr.bf16.mxu0 0
  %894 = vmatpush2.bf16.msra.mxu0 0
  %895 = vmatprep.subr.bf16.mxu0 0
  %896 = vmatpush2.bf16.msra.mxu0 0
  %897 = vmatprep.subr.bf16.mxu0 0
  %898 = vmatpush2.bf16.msra.mxu0 0
  %899 = vmatprep.mubr.bf16.mxu0 0
  %900 = vmatmul.mubr.bf16.gmra.mxu0 %v711
  %v901 = vpop.f32.mrf.mxu0
  %v902 = vadd.f32 %v646, %v901
  %v903 = vpop.f32.mrf.mxu0
  %v904 = vadd.f32 %v650, %v903
  %v905 = vpop.f32.mrf.mxu0
  %v906 = vpop.f32.mrf.mxu0
  %907 = vdwg.mxu0
  %908 = vmatprep.subr.bf16.mxu0 0
  %909 = vmatpush1.bf16.msra.mxu0 0
  %910 = vmatprep.subr.bf16.mxu0 0
  %911 = vmatpush1.bf16.msra.mxu0 0
  %912 = vmatprep.subr.bf16.mxu0 0
  %913 = vmatpush1.bf16.msra.mxu0 0
  %914 = vmatprep.subr.bf16.mxu0 0
  %915 = vmatpush1.bf16.msra.mxu0 0
  %916 = vmatprep.subr.bf16.mxu0 0
  %917 = vmatpush1.bf16.msra.mxu0 0
  %918 = vmatprep.subr.bf16.mxu0 0
  %919 = vmatpush1.bf16.msra.mxu0 0
  %920 = vmatprep.subr.bf16.mxu0 0
  %921 = vmatpush1.bf16.msra.mxu0 0
  %922 = vmatprep.subr.bf16.mxu0 %v742
  %923 = vmatpush1.bf16.msra.mxu0 %v739
  %924 = vmatprep.subr.bf16.mxu0 0
  %925 = vmatpush2.bf16.msra.mxu0 0
  %926 = vmatprep.subr.bf16.mxu0 0
  %927 = vmatpush2.bf16.msra.mxu0 0
  %928 = vmatprep.subr.bf16.mxu0 0
  %929 = vmatpush2.bf16.msra.mxu0 0
  %930 = vmatprep.subr.bf16.mxu0 0
  %931 = vmatpush2.bf16.msra.mxu0 0
  %932 = vmatprep.subr.bf16.mxu0 0
  %933 = vmatpush2.bf16.msra.mxu0 0
  %934 = vmatprep.subr.bf16.mxu0 0
  %935 = vmatpush2.bf16.msra.mxu0 0
  %936 = vmatprep.subr.bf16.mxu0 0
  %937 = vmatpush2.bf16.msra.mxu0 0
  %938 = vmatprep.subr.bf16.mxu0 0
  %939 = vmatpush2.bf16.msra.mxu0 0
  %940 = vmatprep.mubr.bf16.mxu0 0
  %941 = vmatmul.mubr.bf16.gmra.mxu0 %v711
  %v942 = vpop.f32.mrf.mxu0
  %v943 = vadd.f32 %v654, %v942
  %v944 = vpop.f32.mrf.mxu0
  %v945 = vadd.f32 %v658, %v944
  %v946 = vpop.f32.mrf.mxu0
  %v947 = vpop.f32.mrf.mxu0
  %948 = vdwg.mxu0
  %v949 = vmax.f32 %v779, 0.0
  %v950 = vmax.f32 %v781, 0.0
  %v951 = vmax.f32 %v820, 0.0
  %v952 = vmax.f32 %v822, 0.0
  %v953 = vmax.f32 %v861, 0.0
  %v954 = vmax.f32 %v863, 0.0
  %v955 = vmax.f32 %v902, 0.0
  %v956 = vmax.f32 %v904, 0.0
  %v957 = vmax.f32 %v943, 0.0
  %v958 = vmax.f32 %v945, 0.0
  %v959 = vpack.c.bf16 %v949, %v949
  %v960 = vpack.c.bf16 %v950, %v950
  %v961 = vpack.c.bf16 %v951, %v951
  %v962 = vpack.c.bf16 %v952, %v952
  %v963 = vpack.c.bf16 %v953, %v953
  %v964 = vpack.c.bf16 %v954, %v954
  %v965 = vpack.c.bf16 %v955, %v955
  %v966 = vpack.c.bf16 %v956, %v956
  %v967 = vpack.c.bf16 %v957, %v957
  %v968 = vpack.c.bf16 %v958, %v958
  %v970 = vlaneseq
  %v971 = vshrl.u32 %v970, 7
  %v972 = vsub.s32 0, %v971
  %v973 = vrot.slane %v383, %v972
  %v974 = vlaneseq
  %v975 = vshrl.u32 %v974, 7
  %v976 = vsub.s32 1, %v975
  %v977 = vrot.slane %v383, %v976
  %v978 = vlaneseq
  %v979 = vshrl.u32 %v978, 7
  %v980 = vsub.s32 2, %v979
  %v981 = vrot.slane %v383, %v980
  %v1305 = vunpack.c.l.b16 %v63
  %v1306 = vunpack.c.h.b16 %v63
  %v1307 = vunpack.c.l.b16 %v64
  %v1308 = vunpack.c.l.b16 %v65
  %v1309 = vunpack.c.h.b16 %v65
  %v1310 = vunpack.c.l.b16 %v66
  %v1311 = vunpack.c.l.b16 %v67
  %v1312 = vunpack.c.h.b16 %v67
  %v1313 = vunpack.c.l.b16 %v68
  %v1314 = vunpack.c.l.b16 %v69
  %v1315 = vunpack.c.h.b16 %v69
  %v1316 = vunpack.c.l.b16 %v70
  %v1317 = vunpack.c.l.b16 %v71
  %v1318 = vunpack.c.h.b16 %v71
  %v1319 = vunpack.c.l.b16 %v72
  %v1320 = vunpack.c.l.b16 %v73
  %v1321 = vunpack.c.h.b16 %v73
  %v1322 = vunpack.c.l.b16 %v74
  %v1323 = vunpack.c.l.b16 %v75
  %v1324 = vunpack.c.h.b16 %v75
  %v1325 = vunpack.c.l.b16 %v76
  %v1326 = vunpack.c.l.b16 %v77
  %v1327 = vunpack.c.h.b16 %v77
  %v1328 = vunpack.c.l.b16 %v78
  %v1329 = vunpack.c.l.b16 %v79
  %v1330 = vunpack.c.h.b16 %v79
  %v1331 = vunpack.c.l.b16 %v80
  %v1332 = vunpack.c.l.b16 %v81
  %v1333 = vunpack.c.h.b16 %v81
  %v1334 = vunpack.c.l.b16 %v82
  %v1335 = vunpack.c.l.b16 %v83
  %v1336 = vunpack.c.h.b16 %v83
  %v1337 = vunpack.c.l.b16 %v84
  %v1338 = vunpack.c.l.b16 %v85
  %v1339 = vunpack.c.h.b16 %v85
  %v1340 = vunpack.c.l.b16 %v86
  %v1341 = vunpack.c.l.b16 %v87
  %v1342 = vunpack.c.h.b16 %v87
  %v1343 = vunpack.c.l.b16 %v88
  %v1344 = vunpack.c.l.b16 %v89
  %v1345 = vunpack.c.h.b16 %v89
  %v1346 = vunpack.c.l.b16 %v90
  %v1347 = vunpack.c.l.b16 %v91
  %v1348 = vunpack.c.h.b16 %v91
  %v1349 = vunpack.c.l.b16 %v92
  %v1350 = vunpack.c.l.b16 %v93
  %v1351 = vunpack.c.h.b16 %v93
  %v1352 = vunpack.c.l.b16 %v94
  %v1353 = vunpack.c.l.b16 %v95
  %v1354 = vunpack.c.h.b16 %v95
  %v1355 = vunpack.c.l.b16 %v96
  %v1356 = vunpack.c.l.b16 %v97
  %v1357 = vunpack.c.h.b16 %v97
  %v1358 = vunpack.c.l.b16 %v98
  %v1359 = vunpack.c.l.b16 %v99
  %v1360 = vunpack.c.h.b16 %v99
  %v1361 = vunpack.c.l.b16 %v100
  %v1362 = vunpack.c.l.b16 %v101
  %v1363 = vunpack.c.h.b16 %v101
  %v1364 = vunpack.c.l.b16 %v102
  %v1365 = vunpack.c.l.b16 %v103
  %v1366 = vunpack.c.h.b16 %v103
  %v1367 = vunpack.c.l.b16 %v104
  %v1368 = vunpack.c.l.b16 %v105
  %v1369 = vunpack.c.h.b16 %v105
  %v1370 = vunpack.c.l.b16 %v106
  %v1371 = vunpack.c.l.b16 %v107
  %v1372 = vunpack.c.h.b16 %v107
  %v1373 = vunpack.c.l.b16 %v108
  %v1374 = vunpack.c.l.b16 %v109
  %v1375 = vunpack.c.h.b16 %v109
  %v1376 = vunpack.c.l.b16 %v110
  %v1377 = vunpack.c.l.b16 %v111
  %v1378 = vunpack.c.h.b16 %v111
  %v1379 = vunpack.c.l.b16 %v112
  %v1380 = vunpack.c.l.b16 %v113
  %v1381 = vunpack.c.h.b16 %v113
  %v1382 = vunpack.c.l.b16 %v114
  %v1383 = vunpack.c.l.b16 %v115
  %v1384 = vunpack.c.h.b16 %v115
  %v1385 = vunpack.c.l.b16 %v116
  %v1386 = vunpack.c.l.b16 %v117
  %v1387 = vunpack.c.h.b16 %v117
  %v1388 = vunpack.c.l.b16 %v118
  %v1389 = vunpack.c.l.b16 %v119
  %v1390 = vunpack.c.h.b16 %v119
  %v1391 = vunpack.c.l.b16 %v120
  %v1392 = vunpack.c.l.b16 %v121
  %v1393 = vunpack.c.h.b16 %v121
  %v1394 = vunpack.c.l.b16 %v122
  %v1395 = vunpack.c.l.b16 %v123
  %v1396 = vunpack.c.h.b16 %v123
  %v1397 = vunpack.c.l.b16 %v124
  %v1398 = vunpack.c.l.b16 %v125
  %v1399 = vunpack.c.h.b16 %v125
  %v1400 = vunpack.c.l.b16 %v126
  %v1401 = vunpack.c.l.b16 %v127
  %v1402 = vunpack.c.h.b16 %v127
  %v1403 = vunpack.c.l.b16 %v128
  %v1404 = vunpack.c.l.b16 %v129
  %v1405 = vunpack.c.h.b16 %v129
  %v1406 = vunpack.c.l.b16 %v130
  %v1407 = vunpack.c.l.b16 %v131
  %v1408 = vunpack.c.h.b16 %v131
  %v1409 = vunpack.c.l.b16 %v132
  %v1410 = vunpack.c.l.b16 %v133
  %v1411 = vunpack.c.h.b16 %v133
  %v1412 = vunpack.c.l.b16 %v134
  %v1413 = vunpack.c.l.b16 %v135
  %v1414 = vunpack.c.h.b16 %v135
  %v1415 = vunpack.c.l.b16 %v136
  %v1416 = vunpack.c.l.b16 %v137
  %v1417 = vunpack.c.h.b16 %v137
  %v1418 = vunpack.c.l.b16 %v138
  %v1419 = vunpack.c.l.b16 %v139
  %v1420 = vunpack.c.h.b16 %v139
  %v1421 = vunpack.c.l.b16 %v140
  %v1422 = vunpack.c.l.b16 %v141
  %v1423 = vunpack.c.h.b16 %v141
  %v1424 = vunpack.c.l.b16 %v142
  %v1425 = vunpack.c.l.b16 %v143
  %v1426 = vunpack.c.h.b16 %v143
  %v1427 = vunpack.c.l.b16 %v144
  %v1428 = vunpack.c.l.b16 %v145
  %v1429 = vunpack.c.h.b16 %v145
  %v1430 = vunpack.c.l.b16 %v146
  %v1431 = vunpack.c.l.b16 %v147
  %v1432 = vunpack.c.h.b16 %v147
  %v1433 = vunpack.c.l.b16 %v148
  %v1434 = vunpack.c.l.b16 %v149
  %v1435 = vunpack.c.h.b16 %v149
  %v1436 = vunpack.c.l.b16 %v150
  %v1437 = vunpack.c.l.b16 %v151
  %v1438 = vunpack.c.h.b16 %v151
  %v1439 = vunpack.c.l.b16 %v152
  %v1440 = vunpack.c.l.b16 %v153
  %v1441 = vunpack.c.h.b16 %v153
  %v1442 = vunpack.c.l.b16 %v154
  %v1443 = vunpack.c.l.b16 %v155
  %v1444 = vunpack.c.h.b16 %v155
  %v1445 = vunpack.c.l.b16 %v156
  %v1446 = vunpack.c.l.b16 %v157
  %v1447 = vunpack.c.h.b16 %v157
  %v1448 = vunpack.c.l.b16 %v158
  %v1449 = vunpack.c.l.b16 %v159
  %v1450 = vunpack.c.h.b16 %v159
  %v1451 = vunpack.c.l.b16 %v160
  %v1452 = vunpack.c.l.b16 %v161
  %v1453 = vunpack.c.h.b16 %v161
  %v1454 = vunpack.c.l.b16 %v162
  %v1455 = vunpack.c.l.b16 %v163
  %v1456 = vunpack.c.h.b16 %v163
  %v1457 = vunpack.c.l.b16 %v164
  %v1458 = vunpack.c.l.b16 %v165
  %v1459 = vunpack.c.h.b16 %v165
  %v1460 = vunpack.c.l.b16 %v166
  %v1461 = vunpack.c.l.b16 %v167
  %v1462 = vunpack.c.h.b16 %v167
  %v1463 = vunpack.c.l.b16 %v168
  %v1464 = vunpack.c.l.b16 %v169
  %v1465 = vunpack.c.h.b16 %v169
  %v1466 = vunpack.c.l.b16 %v170
  %v1467 = vunpack.c.l.b16 %v171
  %v1468 = vunpack.c.h.b16 %v171
  %v1469 = vunpack.c.l.b16 %v172
  %v1470 = vunpack.c.l.b16 %v173
  %v1471 = vunpack.c.h.b16 %v173
  %v1472 = vunpack.c.l.b16 %v174
  %v1473 = vunpack.c.l.b16 %v175
  %v1474 = vunpack.c.h.b16 %v175
  %v1475 = vunpack.c.l.b16 %v176
  %v1476 = vunpack.c.l.b16 %v177
  %v1477 = vunpack.c.h.b16 %v177
  %v1478 = vunpack.c.l.b16 %v178
  %v1479 = vunpack.c.l.b16 %v179
  %v1480 = vunpack.c.h.b16 %v179
  %v1481 = vunpack.c.l.b16 %v180
  %v1482 = vunpack.c.l.b16 %v181
  %v1483 = vunpack.c.h.b16 %v181
  %v1484 = vunpack.c.l.b16 %v182
  %v1485 = vunpack.c.l.b16 %v183
  %v1486 = vunpack.c.h.b16 %v183
  %v1487 = vunpack.c.l.b16 %v184
  %v1488 = vunpack.c.l.b16 %v185
  %v1489 = vunpack.c.h.b16 %v185
  %v1490 = vunpack.c.l.b16 %v186
  %v1491 = vunpack.c.l.b16 %v187
  %v1492 = vunpack.c.h.b16 %v187
  %v1493 = vunpack.c.l.b16 %v188
  %v1494 = vunpack.c.l.b16 %v189
  %v1495 = vunpack.c.h.b16 %v189
  %v1496 = vunpack.c.l.b16 %v190
  %v1497 = vunpack.c.l.b16 %v191
  %v1498 = vunpack.c.h.b16 %v191
  %v1499 = vunpack.c.l.b16 %v192
  %v1500 = vunpack.c.l.b16 %v193
  %v1501 = vunpack.c.h.b16 %v193
  %v1502 = vunpack.c.l.b16 %v194
  %v1503 = vunpack.c.l.b16 %v195
  %v1504 = vunpack.c.h.b16 %v195
  %v1505 = vunpack.c.l.b16 %v196
  %v1506 = vunpack.c.l.b16 %v197
  %v1507 = vunpack.c.h.b16 %v197
  %v1508 = vunpack.c.l.b16 %v198
  %v1509 = vunpack.c.l.b16 %v199
  %v1510 = vunpack.c.h.b16 %v199
  %v1511 = vunpack.c.l.b16 %v200
  %v1512 = vunpack.c.l.b16 %v201
  %v1513 = vunpack.c.h.b16 %v201
  %v1514 = vunpack.c.l.b16 %v202
  %v1515 = vunpack.c.l.b16 %v203
  %v1516 = vunpack.c.h.b16 %v203
  %v1517 = vunpack.c.l.b16 %v204
  %v1518 = vunpack.c.l.b16 %v205
  %v1519 = vunpack.c.h.b16 %v205
  %v1520 = vunpack.c.l.b16 %v206
  %v1521 = vunpack.c.l.b16 %v207
  %v1522 = vunpack.c.h.b16 %v207
  %v1523 = vunpack.c.l.b16 %v208
  %v1524 = vunpack.c.l.b16 %v209
  %v1525 = vunpack.c.h.b16 %v209
  %v1526 = vunpack.c.l.b16 %v210
  %v1527 = vunpack.c.l.b16 %v211
  %v1528 = vunpack.c.h.b16 %v211
  %v1529 = vunpack.c.l.b16 %v212
  %v1530 = vunpack.c.l.b16 %v213
  %v1531 = vunpack.c.h.b16 %v213
  %v1532 = vunpack.c.l.b16 %v214
  %v1533 = vunpack.c.l.b16 %v215
  %v1534 = vunpack.c.h.b16 %v215
  %v1535 = vunpack.c.l.b16 %v216
  %v1536 = vunpack.c.l.b16 %v217
  %v1537 = vunpack.c.h.b16 %v217
  %v1538 = vunpack.c.l.b16 %v218
  %v1539 = vunpack.c.l.b16 %v219
  %v1540 = vunpack.c.h.b16 %v219
  %v1541 = vunpack.c.l.b16 %v220
  %v1542 = vunpack.c.l.b16 %v221
  %v1543 = vunpack.c.h.b16 %v221
  %v1544 = vunpack.c.l.b16 %v222
  %v1545 = vunpack.c.l.b16 %v223
  %v1546 = vunpack.c.h.b16 %v223
  %v1547 = vunpack.c.l.b16 %v224
  %v1548 = vunpack.c.l.b16 %v225
  %v1549 = vunpack.c.h.b16 %v225
  %v1550 = vunpack.c.l.b16 %v226
  %v1551 = vunpack.c.l.b16 %v227
  %v1552 = vunpack.c.h.b16 %v227
  %v1553 = vunpack.c.l.b16 %v228
  %v1554 = vunpack.c.l.b16 %v229
  %v1555 = vunpack.c.h.b16 %v229
  %v1556 = vunpack.c.l.b16 %v230
  %v1557 = vunpack.c.l.b16 %v231
  %v1558 = vunpack.c.h.b16 %v231
  %v1559 = vunpack.c.l.b16 %v232
  %v1560 = vunpack.c.l.b16 %v233
  %v1561 = vunpack.c.h.b16 %v233
  %v1562 = vunpack.c.l.b16 %v234
  %v1563 = vunpack.c.l.b16 %v235
  %v1564 = vunpack.c.h.b16 %v235
  %v1565 = vunpack.c.l.b16 %v236
  %v1566 = vunpack.c.l.b16 %v237
  %v1567 = vunpack.c.h.b16 %v237
  %v1568 = vunpack.c.l.b16 %v238
  %v1569 = vunpack.c.l.b16 %v239
  %v1570 = vunpack.c.h.b16 %v239
  %v1571 = vunpack.c.l.b16 %v240
  %v1572 = vunpack.c.l.b16 %v241
  %v1573 = vunpack.c.h.b16 %v241
  %v1574 = vunpack.c.l.b16 %v242
  %v1575 = vunpack.c.l.b16 %v243
  %v1576 = vunpack.c.h.b16 %v243
  %v1577 = vunpack.c.l.b16 %v244
  %v1578 = vunpack.c.l.b16 %v245
  %v1579 = vunpack.c.h.b16 %v245
  %v1580 = vunpack.c.l.b16 %v246
  %v1581 = vunpack.c.l.b16 %v247
  %v1582 = vunpack.c.h.b16 %v247
  %v1583 = vunpack.c.l.b16 %v248
  %v1584 = vunpack.c.l.b16 %v249
  %v1585 = vunpack.c.h.b16 %v249
  %v1586 = vunpack.c.l.b16 %v250
  %v1587 = vunpack.c.l.b16 %v251
  %v1588 = vunpack.c.h.b16 %v251
  %v1589 = vunpack.c.l.b16 %v252
  %v1590 = vunpack.c.l.b16 %v253
  %v1591 = vunpack.c.h.b16 %v253
  %v1592 = vunpack.c.l.b16 %v254
  %v1593 = vunpack.c.l.b16 %v255
  %v1594 = vunpack.c.h.b16 %v255
  %v1595 = vunpack.c.l.b16 %v256
  %v1596 = vunpack.c.l.b16 %v257
  %v1597 = vunpack.c.h.b16 %v257
  %v1598 = vunpack.c.l.b16 %v258
  %v1599 = vunpack.c.l.b16 %v259
  %v1600 = vunpack.c.h.b16 %v259
  %v1601 = vunpack.c.l.b16 %v260
  %v1602 = vunpack.c.l.b16 %v261
  %v1603 = vunpack.c.h.b16 %v261
  %v1604 = vunpack.c.l.b16 %v262
  %v1605 = vunpack.c.l.b16 %v263
  %v1606 = vunpack.c.h.b16 %v263
  %v1607 = vunpack.c.l.b16 %v264
  %v1608 = vunpack.c.l.b16 %v265
  %v1609 = vunpack.c.h.b16 %v265
  %v1610 = vunpack.c.l.b16 %v266
  %v1611 = vunpack.c.l.b16 %v267
  %v1612 = vunpack.c.h.b16 %v267
  %v1613 = vunpack.c.l.b16 %v268
  %v1614 = vunpack.c.l.b16 %v269
  %v1615 = vunpack.c.h.b16 %v269
  %v1616 = vunpack.c.l.b16 %v270
  %v1617 = vunpack.c.l.b16 %v271
  %v1618 = vunpack.c.h.b16 %v271
  %v1619 = vunpack.c.l.b16 %v272
  %v1620 = vunpack.c.l.b16 %v273
  %v1621 = vunpack.c.h.b16 %v273
  %v1622 = vunpack.c.l.b16 %v274
  %v1623 = vunpack.c.l.b16 %v275
  %v1624 = vunpack.c.h.b16 %v275
  %v1625 = vunpack.c.l.b16 %v276
  %v1626 = vunpack.c.l.b16 %v277
  %v1627 = vunpack.c.h.b16 %v277
  %v1628 = vunpack.c.l.b16 %v278
  %v1629 = vunpack.c.l.b16 %v279
  %v1630 = vunpack.c.h.b16 %v279
  %v1631 = vunpack.c.l.b16 %v280
  %v1632 = vunpack.c.l.b16 %v281
  %v1633 = vunpack.c.h.b16 %v281
  %v1634 = vunpack.c.l.b16 %v282
  %v1635 = vunpack.c.l.b16 %v283
  %v1636 = vunpack.c.h.b16 %v283
  %v1637 = vunpack.c.l.b16 %v284
  %v1638 = vunpack.c.l.b16 %v285
  %v1639 = vunpack.c.h.b16 %v285
  %v1640 = vunpack.c.l.b16 %v286
  %v1641 = vunpack.c.l.b16 %v287
  %v1642 = vunpack.c.h.b16 %v287
  %v1643 = vunpack.c.l.b16 %v288
  %v1644 = vunpack.c.l.b16 %v289
  %v1645 = vunpack.c.h.b16 %v289
  %v1646 = vunpack.c.l.b16 %v290
  %v1647 = vunpack.c.l.b16 %v291
  %v1648 = vunpack.c.h.b16 %v291
  %v1649 = vunpack.c.l.b16 %v292
  %v1650 = vunpack.c.l.b16 %v293
  %v1651 = vunpack.c.h.b16 %v293
  %v1652 = vunpack.c.l.b16 %v294
  %v1653 = vunpack.c.l.b16 %v295
  %v1654 = vunpack.c.h.b16 %v295
  %v1655 = vunpack.c.l.b16 %v296
  %v1656 = vunpack.c.l.b16 %v297
  %v1657 = vunpack.c.h.b16 %v297
  %v1658 = vunpack.c.l.b16 %v298
  %v1659 = vunpack.c.l.b16 %v299
  %v1660 = vunpack.c.h.b16 %v299
  %v1661 = vunpack.c.l.b16 %v300
  %v1662 = vunpack.c.l.b16 %v301
  %v1663 = vunpack.c.h.b16 %v301
  %v1664 = vunpack.c.l.b16 %v302
  %v1665 = vunpack.c.l.b16 %v303
  %v1666 = vunpack.c.h.b16 %v303
  %v1667 = vunpack.c.l.b16 %v304
  %v1668 = vunpack.c.l.b16 %v305
  %v1669 = vunpack.c.h.b16 %v305
  %v1670 = vunpack.c.l.b16 %v306
  %v1671 = vunpack.c.l.b16 %v307
  %v1672 = vunpack.c.h.b16 %v307
  %v1673 = vunpack.c.l.b16 %v308
  %v1674 = vunpack.c.l.b16 %v309
  %v1675 = vunpack.c.h.b16 %v309
  %v1676 = vunpack.c.l.b16 %v310
  %v1677 = vunpack.c.l.b16 %v311
  %v1678 = vunpack.c.h.b16 %v311
  %v1679 = vunpack.c.l.b16 %v312
  %v1680 = vunpack.c.l.b16 %v313
  %v1681 = vunpack.c.h.b16 %v313
  %v1682 = vunpack.c.l.b16 %v314
  %v1683 = vunpack.c.l.b16 %v315
  %v1684 = vunpack.c.h.b16 %v315
  %v1685 = vunpack.c.l.b16 %v316
  %v1686 = vunpack.c.l.b16 %v317
  %v1687 = vunpack.c.h.b16 %v317
  %v1688 = vunpack.c.l.b16 %v318
  %v1689 = vunpack.c.l.b16 %v319
  %v1690 = vunpack.c.h.b16 %v319
  %v1691 = vunpack.c.l.b16 %v320
  %v1692 = vunpack.c.l.b16 %v321
  %v1693 = vunpack.c.h.b16 %v321
  %v1694 = vunpack.c.l.b16 %v322
  %v1695 = vunpack.c.l.b16 %v323
  %v1696 = vunpack.c.h.b16 %v323
  %v1697 = vunpack.c.l.b16 %v324
  %v1698 = vunpack.c.l.b16 %v325
  %v1699 = vunpack.c.h.b16 %v325
  %v1700 = vunpack.c.l.b16 %v326
  %v1701 = vunpack.c.l.b16 %v327
  %v1702 = vunpack.c.h.b16 %v327
  %v1703 = vunpack.c.l.b16 %v328
  %v1704 = vunpack.c.l.b16 %v329
  %v1705 = vunpack.c.h.b16 %v329
  %v1706 = vunpack.c.l.b16 %v330
  %v1707 = vunpack.c.l.b16 %v331
  %v1708 = vunpack.c.h.b16 %v331
  %v1709 = vunpack.c.l.b16 %v332
  %v1710 = vunpack.c.l.b16 %v333
  %v1711 = vunpack.c.h.b16 %v333
  %v1712 = vunpack.c.l.b16 %v334
  %v1713 = vunpack.c.l.b16 %v335
  %v1714 = vunpack.c.h.b16 %v335
  %v1715 = vunpack.c.l.b16 %v336
  %v1716 = vunpack.c.l.b16 %v337
  %v1717 = vunpack.c.h.b16 %v337
  %v1718 = vunpack.c.l.b16 %v338
  %v1719 = vunpack.c.l.b16 %v339
  %v1720 = vunpack.c.h.b16 %v339
  %v1721 = vunpack.c.l.b16 %v340
  %v1722 = vunpack.c.l.b16 %v341
  %v1723 = vunpack.c.h.b16 %v341
  %v1724 = vunpack.c.l.b16 %v342
  %v1725 = vunpack.c.l.b16 %v343
  %v1726 = vunpack.c.h.b16 %v343
  %v1727 = vunpack.c.l.b16 %v344
  %v1728 = vunpack.c.l.b16 %v345
  %v1729 = vunpack.c.h.b16 %v345
  %v1730 = vunpack.c.l.b16 %v346
  %v1731 = vunpack.c.l.b16 %v347
  %v1732 = vunpack.c.h.b16 %v347
  %v1733 = vunpack.c.l.b16 %v348
  %v1734 = vunpack.c.l.b16 %v349
  %v1735 = vunpack.c.h.b16 %v349
  %v1736 = vunpack.c.l.b16 %v350
  %v1737 = vunpack.c.l.b16 %v351
  %v1738 = vunpack.c.h.b16 %v351
  %v1739 = vunpack.c.l.b16 %v352
  %v1740 = vunpack.c.l.b16 %v353
  %v1741 = vunpack.c.h.b16 %v353
  %v1742 = vunpack.c.l.b16 %v354
  %v1743 = vunpack.c.l.b16 %v355
  %v1744 = vunpack.c.h.b16 %v355
  %v1745 = vunpack.c.l.b16 %v356
  %v1746 = vunpack.c.l.b16 %v357
  %v1747 = vunpack.c.h.b16 %v357
  %v1748 = vunpack.c.l.b16 %v358
  %v1749 = vunpack.c.l.b16 %v359
  %v1750 = vunpack.c.h.b16 %v359
  %v1751 = vunpack.c.l.b16 %v360
  %v1752 = vunpack.c.l.b16 %v361
  %v1753 = vunpack.c.h.b16 %v361
  %v1754 = vunpack.c.l.b16 %v362
  %v1755 = vunpack.c.l.b16 %v363
  %v1756 = vunpack.c.h.b16 %v363
  %v1757 = vunpack.c.l.b16 %v364
  %v1758 = vunpack.c.l.b16 %v365
  %v1759 = vunpack.c.h.b16 %v365
  %v1760 = vunpack.c.l.b16 %v366
  %v1761 = vunpack.c.l.b16 %v367
  %v1762 = vunpack.c.h.b16 %v367
  %v1763 = vunpack.c.l.b16 %v368
  %v1764 = vunpack.c.l.b16 %v369
  %v1765 = vunpack.c.h.b16 %v369
  %v1766 = vunpack.c.l.b16 %v370
  %v1767 = vunpack.c.l.b16 %v371
  %v1768 = vunpack.c.h.b16 %v371
  %v1769 = vunpack.c.l.b16 %v372
  %v1770 = vunpack.c.l.b16 %v373
  %v1771 = vunpack.c.h.b16 %v373
  %v1772 = vunpack.c.l.b16 %v374
  %v1773 = vunpack.c.l.b16 %v375
  %v1774 = vunpack.c.h.b16 %v375
  %v1775 = vunpack.c.l.b16 %v376
  %v1776 = vunpack.c.l.b16 %v377
  %v1777 = vunpack.c.h.b16 %v377
  %v1778 = vunpack.c.l.b16 %v378
  %v1779 = vunpack.c.l.b16 %v379
  %v1780 = vunpack.c.h.b16 %v379
  %v1781 = vunpack.c.l.b16 %v380
  %v1782 = vunpack.c.l.b16 %v381
  %v1783 = vunpack.c.h.b16 %v381
  %v1784 = vunpack.c.l.b16 %v382
  %v1785 = vpack.c.b16 %v1308, %v1305
  %v1786 = vpack.c.b16 %v1309, %v1306
  %v1787 = vpack.c.b16 %v1310, %v1307
  %v1788 = vpack.c.b16 %v1314, %v1311
  %v1789 = vpack.c.b16 %v1315, %v1312
  %v1790 = vpack.c.b16 %v1316, %v1313
  %v1791 = vpack.c.b16 %v1320, %v1317
  %v1792 = vpack.c.b16 %v1321, %v1318
  %v1793 = vpack.c.b16 %v1322, %v1319
  %v1794 = vpack.c.b16 %v1326, %v1323
  %v1795 = vpack.c.b16 %v1327, %v1324
  %v1796 = vpack.c.b16 %v1328, %v1325
  %v1797 = vpack.c.b16 %v1332, %v1329
  %v1798 = vpack.c.b16 %v1333, %v1330
  %v1799 = vpack.c.b16 %v1334, %v1331
  %v1800 = vpack.c.b16 %v1338, %v1335
  %v1801 = vpack.c.b16 %v1339, %v1336
  %v1802 = vpack.c.b16 %v1340, %v1337
  %v1803 = vpack.c.b16 %v1344, %v1341
  %v1804 = vpack.c.b16 %v1345, %v1342
  %v1805 = vpack.c.b16 %v1346, %v1343
  %v1806 = vpack.c.b16 %v1350, %v1347
  %v1807 = vpack.c.b16 %v1351, %v1348
  %v1808 = vpack.c.b16 %v1352, %v1349
  %v1809 = vpack.c.b16 %v1356, %v1353
  %v1810 = vpack.c.b16 %v1357, %v1354
  %v1811 = vpack.c.b16 %v1358, %v1355
  %v1812 = vpack.c.b16 %v1362, %v1359
  %v1813 = vpack.c.b16 %v1363, %v1360
  %v1814 = vpack.c.b16 %v1364, %v1361
  %v1815 = vpack.c.b16 %v1368, %v1365
  %v1816 = vpack.c.b16 %v1369, %v1366
  %v1817 = vpack.c.b16 %v1370, %v1367
  %v1818 = vpack.c.b16 %v1374, %v1371
  %v1819 = vpack.c.b16 %v1375, %v1372
  %v1820 = vpack.c.b16 %v1376, %v1373
  %v1821 = vpack.c.b16 %v1380, %v1377
  %v1822 = vpack.c.b16 %v1381, %v1378
  %v1823 = vpack.c.b16 %v1382, %v1379
  %v1824 = vpack.c.b16 %v1386, %v1383
  %v1825 = vpack.c.b16 %v1387, %v1384
  %v1826 = vpack.c.b16 %v1388, %v1385
  %v1827 = vpack.c.b16 %v1392, %v1389
  %v1828 = vpack.c.b16 %v1393, %v1390
  %v1829 = vpack.c.b16 %v1394, %v1391
  %v1830 = vpack.c.b16 %v1398, %v1395
  %v1831 = vpack.c.b16 %v1399, %v1396
  %v1832 = vpack.c.b16 %v1400, %v1397
  %v1833 = vpack.c.b16 %v1404, %v1401
  %v1834 = vpack.c.b16 %v1405, %v1402
  %v1835 = vpack.c.b16 %v1406, %v1403
  %v1836 = vpack.c.b16 %v1410, %v1407
  %v1837 = vpack.c.b16 %v1411, %v1408
  %v1838 = vpack.c.b16 %v1412, %v1409
  %v1839 = vpack.c.b16 %v1416, %v1413
  %v1840 = vpack.c.b16 %v1417, %v1414
  %v1841 = vpack.c.b16 %v1418, %v1415
  %v1842 = vpack.c.b16 %v1422, %v1419
  %v1843 = vpack.c.b16 %v1423, %v1420
  %v1844 = vpack.c.b16 %v1424, %v1421
  %v1845 = vpack.c.b16 %v1428, %v1425
  %v1846 = vpack.c.b16 %v1429, %v1426
  %v1847 = vpack.c.b16 %v1430, %v1427
  %v1848 = vpack.c.b16 %v1434, %v1431
  %v1849 = vpack.c.b16 %v1435, %v1432
  %v1850 = vpack.c.b16 %v1436, %v1433
  %v1851 = vpack.c.b16 %v1440, %v1437
  %v1852 = vpack.c.b16 %v1441, %v1438
  %v1853 = vpack.c.b16 %v1442, %v1439
  %v1854 = vpack.c.b16 %v1446, %v1443
  %v1855 = vpack.c.b16 %v1447, %v1444
  %v1856 = vpack.c.b16 %v1448, %v1445
  %v1857 = vpack.c.b16 %v1452, %v1449
  %v1858 = vpack.c.b16 %v1453, %v1450
  %v1859 = vpack.c.b16 %v1454, %v1451
  %v1860 = vpack.c.b16 %v1458, %v1455
  %v1861 = vpack.c.b16 %v1459, %v1456
  %v1862 = vpack.c.b16 %v1460, %v1457
  %v1863 = vpack.c.b16 %v1464, %v1461
  %v1864 = vpack.c.b16 %v1465, %v1462
  %v1865 = vpack.c.b16 %v1466, %v1463
  %v1866 = vpack.c.b16 %v1470, %v1467
  %v1867 = vpack.c.b16 %v1471, %v1468
  %v1868 = vpack.c.b16 %v1472, %v1469
  %v1869 = vpack.c.b16 %v1476, %v1473
  %v1870 = vpack.c.b16 %v1477, %v1474
  %v1871 = vpack.c.b16 %v1478, %v1475
  %v1872 = vpack.c.b16 %v1482, %v1479
  %v1873 = vpack.c.b16 %v1483, %v1480
  %v1874 = vpack.c.b16 %v1484, %v1481
  %v1875 = vpack.c.b16 %v1488, %v1485
  %v1876 = vpack.c.b16 %v1489, %v1486
  %v1877 = vpack.c.b16 %v1490, %v1487
  %v1878 = vpack.c.b16 %v1494, %v1491
  %v1879 = vpack.c.b16 %v1495, %v1492
  %v1880 = vpack.c.b16 %v1496, %v1493
  %v1881 = vpack.c.b16 %v1500, %v1497
  %v1882 = vpack.c.b16 %v1501, %v1498
  %v1883 = vpack.c.b16 %v1502, %v1499
  %v1884 = vpack.c.b16 %v1506, %v1503
  %v1885 = vpack.c.b16 %v1507, %v1504
  %v1886 = vpack.c.b16 %v1508, %v1505
  %v1887 = vpack.c.b16 %v1512, %v1509
  %v1888 = vpack.c.b16 %v1513, %v1510
  %v1889 = vpack.c.b16 %v1514, %v1511
  %v1890 = vpack.c.b16 %v1518, %v1515
  %v1891 = vpack.c.b16 %v1519, %v1516
  %v1892 = vpack.c.b16 %v1520, %v1517
  %v1893 = vpack.c.b16 %v1524, %v1521
  %v1894 = vpack.c.b16 %v1525, %v1522
  %v1895 = vpack.c.b16 %v1526, %v1523
  %v1896 = vpack.c.b16 %v1530, %v1527
  %v1897 = vpack.c.b16 %v1531, %v1528
  %v1898 = vpack.c.b16 %v1532, %v1529
  %v1899 = vpack.c.b16 %v1536, %v1533
  %v1900 = vpack.c.b16 %v1537, %v1534
  %v1901 = vpack.c.b16 %v1538, %v1535
  %v1902 = vpack.c.b16 %v1542, %v1539
  %v1903 = vpack.c.b16 %v1543, %v1540
  %v1904 = vpack.c.b16 %v1544, %v1541
  %v1905 = vpack.c.b16 %v1548, %v1545
  %v1906 = vpack.c.b16 %v1549, %v1546
  %v1907 = vpack.c.b16 %v1550, %v1547
  %v1908 = vpack.c.b16 %v1554, %v1551
  %v1909 = vpack.c.b16 %v1555, %v1552
  %v1910 = vpack.c.b16 %v1556, %v1553
  %v1911 = vpack.c.b16 %v1560, %v1557
  %v1912 = vpack.c.b16 %v1561, %v1558
  %v1913 = vpack.c.b16 %v1562, %v1559
  %v1914 = vpack.c.b16 %v1566, %v1563
  %v1915 = vpack.c.b16 %v1567, %v1564
  %v1916 = vpack.c.b16 %v1568, %v1565
  %v1917 = vpack.c.b16 %v1572, %v1569
  %v1918 = vpack.c.b16 %v1573, %v1570
  %v1919 = vpack.c.b16 %v1574, %v1571
  %v1920 = vpack.c.b16 %v1578, %v1575
  %v1921 = vpack.c.b16 %v1579, %v1576
  %v1922 = vpack.c.b16 %v1580, %v1577
  %v1923 = vpack.c.b16 %v1584, %v1581
  %v1924 = vpack.c.b16 %v1585, %v1582
  %v1925 = vpack.c.b16 %v1586, %v1583
  %v1926 = vpack.c.b16 %v1590, %v1587
  %v1927 = vpack.c.b16 %v1591, %v1588
  %v1928 = vpack.c.b16 %v1592, %v1589
  %v1929 = vpack.c.b16 %v1596, %v1593
  %v1930 = vpack.c.b16 %v1597, %v1594
  %v1931 = vpack.c.b16 %v1598, %v1595
  %v1932 = vpack.c.b16 %v1602, %v1599
  %v1933 = vpack.c.b16 %v1603, %v1600
  %v1934 = vpack.c.b16 %v1604, %v1601
  %v1935 = vpack.c.b16 %v1608, %v1605
  %v1936 = vpack.c.b16 %v1609, %v1606
  %v1937 = vpack.c.b16 %v1610, %v1607
  %v1938 = vpack.c.b16 %v1614, %v1611
  %v1939 = vpack.c.b16 %v1615, %v1612
  %v1940 = vpack.c.b16 %v1616, %v1613
  %v1941 = vpack.c.b16 %v1620, %v1617
  %v1942 = vpack.c.b16 %v1621, %v1618
  %v1943 = vpack.c.b16 %v1622, %v1619
  %v1944 = vpack.c.b16 %v1626, %v1623
  %v1945 = vpack.c.b16 %v1627, %v1624
  %v1946 = vpack.c.b16 %v1628, %v1625
  %v1947 = vpack.c.b16 %v1632, %v1629
  %v1948 = vpack.c.b16 %v1633, %v1630
  %v1949 = vpack.c.b16 %v1634, %v1631
  %v1950 = vpack.c.b16 %v1638, %v1635
  %v1951 = vpack.c.b16 %v1639, %v1636
  %v1952 = vpack.c.b16 %v1640, %v1637
  %v1953 = vpack.c.b16 %v1644, %v1641
  %v1954 = vpack.c.b16 %v1645, %v1642
  %v1955 = vpack.c.b16 %v1646, %v1643
  %v1956 = vpack.c.b16 %v1650, %v1647
  %v1957 = vpack.c.b16 %v1651, %v1648
  %v1958 = vpack.c.b16 %v1652, %v1649
  %v1959 = vpack.c.b16 %v1656, %v1653
  %v1960 = vpack.c.b16 %v1657, %v1654
  %v1961 = vpack.c.b16 %v1658, %v1655
  %v1962 = vpack.c.b16 %v1662, %v1659
  %v1963 = vpack.c.b16 %v1663, %v1660
  %v1964 = vpack.c.b16 %v1664, %v1661
  %v1965 = vpack.c.b16 %v1668, %v1665
  %v1966 = vpack.c.b16 %v1669, %v1666
  %v1967 = vpack.c.b16 %v1670, %v1667
  %v1968 = vpack.c.b16 %v1674, %v1671
  %v1969 = vpack.c.b16 %v1675, %v1672
  %v1970 = vpack.c.b16 %v1676, %v1673
  %v1971 = vpack.c.b16 %v1680, %v1677
  %v1972 = vpack.c.b16 %v1681, %v1678
  %v1973 = vpack.c.b16 %v1682, %v1679
  %v1974 = vpack.c.b16 %v1686, %v1683
  %v1975 = vpack.c.b16 %v1687, %v1684
  %v1976 = vpack.c.b16 %v1688, %v1685
  %v1977 = vpack.c.b16 %v1692, %v1689
  %v1978 = vpack.c.b16 %v1693, %v1690
  %v1979 = vpack.c.b16 %v1694, %v1691
  %v1980 = vpack.c.b16 %v1698, %v1695
  %v1981 = vpack.c.b16 %v1699, %v1696
  %v1982 = vpack.c.b16 %v1700, %v1697
  %v1983 = vpack.c.b16 %v1704, %v1701
  %v1984 = vpack.c.b16 %v1705, %v1702
  %v1985 = vpack.c.b16 %v1706, %v1703
  %v1986 = vpack.c.b16 %v1710, %v1707
  %v1987 = vpack.c.b16 %v1711, %v1708
  %v1988 = vpack.c.b16 %v1712, %v1709
  %v1989 = vpack.c.b16 %v1716, %v1713
  %v1990 = vpack.c.b16 %v1717, %v1714
  %v1991 = vpack.c.b16 %v1718, %v1715
  %v1992 = vpack.c.b16 %v1722, %v1719
  %v1993 = vpack.c.b16 %v1723, %v1720
  %v1994 = vpack.c.b16 %v1724, %v1721
  %v1995 = vpack.c.b16 %v1728, %v1725
  %v1996 = vpack.c.b16 %v1729, %v1726
  %v1997 = vpack.c.b16 %v1730, %v1727
  %v1998 = vpack.c.b16 %v1734, %v1731
  %v1999 = vpack.c.b16 %v1735, %v1732
  %v2000 = vpack.c.b16 %v1736, %v1733
  %v2001 = vpack.c.b16 %v1740, %v1737
  %v2002 = vpack.c.b16 %v1741, %v1738
  %v2003 = vpack.c.b16 %v1742, %v1739
  %v2004 = vpack.c.b16 %v1746, %v1743
  %v2005 = vpack.c.b16 %v1747, %v1744
  %v2006 = vpack.c.b16 %v1748, %v1745
  %v2007 = vpack.c.b16 %v1752, %v1749
  %v2008 = vpack.c.b16 %v1753, %v1750
  %v2009 = vpack.c.b16 %v1754, %v1751
  %v2010 = vpack.c.b16 %v1758, %v1755
  %v2011 = vpack.c.b16 %v1759, %v1756
  %v2012 = vpack.c.b16 %v1760, %v1757
  %v2013 = vpack.c.b16 %v1764, %v1761
  %v2014 = vpack.c.b16 %v1765, %v1762
  %v2015 = vpack.c.b16 %v1766, %v1763
  %v2016 = vpack.c.b16 %v1770, %v1767
  %v2017 = vpack.c.b16 %v1771, %v1768
  %v2018 = vpack.c.b16 %v1772, %v1769
  %v2019 = vpack.c.b16 %v1776, %v1773
  %v2020 = vpack.c.b16 %v1777, %v1774
  %v2021 = vpack.c.b16 %v1778, %v1775
  %v2022 = vpack.c.b16 %v1782, %v1779
  %v2023 = vpack.c.b16 %v1783, %v1780
  %v2024 = vpack.c.b16 %v1784, %v1781
  %2265 = vmatprep.subr.bf16.mxu0 %v1807
  %2266 = vmatpush1.bf16.msra.mxu0 %v1806
  %2267 = vmatprep.subr.bf16.mxu0 %v1804
  %2268 = vmatpush1.bf16.msra.mxu0 %v1803
  %2269 = vmatprep.subr.bf16.mxu0 %v1801
  %2270 = vmatpush1.bf16.msra.mxu0 %v1800
  %2271 = vmatprep.subr.bf16.mxu0 %v1798
  %2272 = vmatpush1.bf16.msra.mxu0 %v1797
  %2273 = vmatprep.subr.bf16.mxu0 %v1795
  %2274 = vmatpush1.bf16.msra.mxu0 %v1794
  %2275 = vmatprep.subr.bf16.mxu0 %v1792
  %2276 = vmatpush1.bf16.msra.mxu0 %v1791
  %2277 = vmatprep.subr.bf16.mxu0 %v1789
  %2278 = vmatpush1.bf16.msra.mxu0 %v1788
  %2279 = vmatprep.subr.bf16.mxu0 %v1786
  %2280 = vmatpush1.bf16.msra.mxu0 %v1785
  %2281 = vmatprep.subr.bf16.mxu0 %v1831
  %2282 = vmatpush2.bf16.msra.mxu0 %v1830
  %2283 = vmatprep.subr.bf16.mxu0 %v1828
  %2284 = vmatpush2.bf16.msra.mxu0 %v1827
  %2285 = vmatprep.subr.bf16.mxu0 %v1825
  %2286 = vmatpush2.bf16.msra.mxu0 %v1824
  %2287 = vmatprep.subr.bf16.mxu0 %v1822
  %2288 = vmatpush2.bf16.msra.mxu0 %v1821
  %2289 = vmatprep.subr.bf16.mxu0 %v1819
  %2290 = vmatpush2.bf16.msra.mxu0 %v1818
  %2291 = vmatprep.subr.bf16.mxu0 %v1816
  %2292 = vmatpush2.bf16.msra.mxu0 %v1815
  %2293 = vmatprep.subr.bf16.mxu0 %v1813
  %2294 = vmatpush2.bf16.msra.mxu0 %v1812
  %2295 = vmatprep.subr.bf16.mxu0 %v1810
  %2296 = vmatpush2.bf16.msra.mxu0 %v1809
  %2297 = vmatprep.mubr.bf16.mxu0 %v960
  %2298 = vmatmul.mubr.bf16.gmra.mxu0 %v959
  %v2299 = vpop.f32.mrf.mxu0
  %v2300 = vadd.f32 %v973, %v2299
  %v2301 = vpop.f32.mrf.mxu0
  %v2302 = vadd.f32 %v977, %v2301
  %v2303 = vpop.f32.mrf.mxu0
  %v2304 = vpop.f32.mrf.mxu0
  %2305 = vdwg.mxu0
  %2306 = vmatprep.subr.bf16.mxu0 %v1855
  %2307 = vmatpush1.bf16.msra.mxu0 %v1854
  %2308 = vmatprep.subr.bf16.mxu0 %v1852
  %2309 = vmatpush1.bf16.msra.mxu0 %v1851
  %2310 = vmatprep.subr.bf16.mxu0 %v1849
  %2311 = vmatpush1.bf16.msra.mxu0 %v1848
  %2312 = vmatprep.subr.bf16.mxu0 %v1846
  %2313 = vmatpush1.bf16.msra.mxu0 %v1845
  %2314 = vmatprep.subr.bf16.mxu0 %v1843
  %2315 = vmatpush1.bf16.msra.mxu0 %v1842
  %2316 = vmatprep.subr.bf16.mxu0 %v1840
  %2317 = vmatpush1.bf16.msra.mxu0 %v1839
  %2318 = vmatprep.subr.bf16.mxu0 %v1837
  %2319 = vmatpush1.bf16.msra.mxu0 %v1836
  %2320 = vmatprep.subr.bf16.mxu0 %v1834
  %2321 = vmatpush1.bf16.msra.mxu0 %v1833
  %2322 = vmatprep.subr.bf16.mxu0 %v1879
  %2323 = vmatpush2.bf16.msra.mxu0 %v1878
  %2324 = vmatprep.subr.bf16.mxu0 %v1876
  %2325 = vmatpush2.bf16.msra.mxu0 %v1875
  %2326 = vmatprep.subr.bf16.mxu0 %v1873
  %2327 = vmatpush2.bf16.msra.mxu0 %v1872
  %2328 = vmatprep.subr.bf16.mxu0 %v1870
  %2329 = vmatpush2.bf16.msra.mxu0 %v1869
  %2330 = vmatprep.subr.bf16.mxu0 %v1867
  %2331 = vmatpush2.bf16.msra.mxu0 %v1866
  %2332 = vmatprep.subr.bf16.mxu0 %v1864
  %2333 = vmatpush2.bf16.msra.mxu0 %v1863
  %2334 = vmatprep.subr.bf16.mxu0 %v1861
  %2335 = vmatpush2.bf16.msra.mxu0 %v1860
  %2336 = vmatprep.subr.bf16.mxu0 %v1858
  %2337 = vmatpush2.bf16.msra.mxu0 %v1857
  %2338 = vmatprep.mubr.bf16.mxu0 %v962
  %2339 = vmatmul.mubr.bf16.gmra.mxu0 %v961
  %v2340 = vpop.f32.mrf.mxu0
  %v2341 = vadd.f32 %v2300, %v2340
  %v2342 = vpop.f32.mrf.mxu0
  %v2343 = vadd.f32 %v2302, %v2342
  %v2344 = vpop.f32.mrf.mxu0
  %v2345 = vpop.f32.mrf.mxu0
  %2346 = vdwg.mxu0
  %2347 = vmatprep.subr.bf16.mxu0 %v1903
  %2348 = vmatpush1.bf16.msra.mxu0 %v1902
  %2349 = vmatprep.subr.bf16.mxu0 %v1900
  %2350 = vmatpush1.bf16.msra.mxu0 %v1899
  %2351 = vmatprep.subr.bf16.mxu0 %v1897
  %2352 = vmatpush1.bf16.msra.mxu0 %v1896
  %2353 = vmatprep.subr.bf16.mxu0 %v1894
  %2354 = vmatpush1.bf16.msra.mxu0 %v1893
  %2355 = vmatprep.subr.bf16.mxu0 %v1891
  %2356 = vmatpush1.bf16.msra.mxu0 %v1890
  %2357 = vmatprep.subr.bf16.mxu0 %v1888
  %2358 = vmatpush1.bf16.msra.mxu0 %v1887
  %2359 = vmatprep.subr.bf16.mxu0 %v1885
  %2360 = vmatpush1.bf16.msra.mxu0 %v1884
  %2361 = vmatprep.subr.bf16.mxu0 %v1882
  %2362 = vmatpush1.bf16.msra.mxu0 %v1881
  %2363 = vmatprep.subr.bf16.mxu0 %v1927
  %2364 = vmatpush2.bf16.msra.mxu0 %v1926
  %2365 = vmatprep.subr.bf16.mxu0 %v1924
  %2366 = vmatpush2.bf16.msra.mxu0 %v1923
  %2367 = vmatprep.subr.bf16.mxu0 %v1921
  %2368 = vmatpush2.bf16.msra.mxu0 %v1920
  %2369 = vmatprep.subr.bf16.mxu0 %v1918
  %2370 = vmatpush2.bf16.msra.mxu0 %v1917
  %2371 = vmatprep.subr.bf16.mxu0 %v1915
  %2372 = vmatpush2.bf16.msra.mxu0 %v1914
  %2373 = vmatprep.subr.bf16.mxu0 %v1912
  %2374 = vmatpush2.bf16.msra.mxu0 %v1911
  %2375 = vmatprep.subr.bf16.mxu0 %v1909
  %2376 = vmatpush2.bf16.msra.mxu0 %v1908
  %2377 = vmatprep.subr.bf16.mxu0 %v1906
  %2378 = vmatpush2.bf16.msra.mxu0 %v1905
  %2379 = vmatprep.mubr.bf16.mxu0 %v964
  %2380 = vmatmul.mubr.bf16.gmra.mxu0 %v963
  %v2381 = vpop.f32.mrf.mxu0
  %v2382 = vadd.f32 %v2341, %v2381
  %v2383 = vpop.f32.mrf.mxu0
  %v2384 = vadd.f32 %v2343, %v2383
  %v2385 = vpop.f32.mrf.mxu0
  %v2386 = vpop.f32.mrf.mxu0
  %2387 = vdwg.mxu0
  %2388 = vmatprep.subr.bf16.mxu0 %v1951
  %2389 = vmatpush1.bf16.msra.mxu0 %v1950
  %2390 = vmatprep.subr.bf16.mxu0 %v1948
  %2391 = vmatpush1.bf16.msra.mxu0 %v1947
  %2392 = vmatprep.subr.bf16.mxu0 %v1945
  %2393 = vmatpush1.bf16.msra.mxu0 %v1944
  %2394 = vmatprep.subr.bf16.mxu0 %v1942
  %2395 = vmatpush1.bf16.msra.mxu0 %v1941
  %2396 = vmatprep.subr.bf16.mxu0 %v1939
  %2397 = vmatpush1.bf16.msra.mxu0 %v1938
  %2398 = vmatprep.subr.bf16.mxu0 %v1936
  %2399 = vmatpush1.bf16.msra.mxu0 %v1935
  %2400 = vmatprep.subr.bf16.mxu0 %v1933
  %2401 = vmatpush1.bf16.msra.mxu0 %v1932
  %2402 = vmatprep.subr.bf16.mxu0 %v1930
  %2403 = vmatpush1.bf16.msra.mxu0 %v1929
  %2404 = vmatprep.subr.bf16.mxu0 %v1975
  %2405 = vmatpush2.bf16.msra.mxu0 %v1974
  %2406 = vmatprep.subr.bf16.mxu0 %v1972
  %2407 = vmatpush2.bf16.msra.mxu0 %v1971
  %2408 = vmatprep.subr.bf16.mxu0 %v1969
  %2409 = vmatpush2.bf16.msra.mxu0 %v1968
  %2410 = vmatprep.subr.bf16.mxu0 %v1966
  %2411 = vmatpush2.bf16.msra.mxu0 %v1965
  %2412 = vmatprep.subr.bf16.mxu0 %v1963
  %2413 = vmatpush2.bf16.msra.mxu0 %v1962
  %2414 = vmatprep.subr.bf16.mxu0 %v1960
  %2415 = vmatpush2.bf16.msra.mxu0 %v1959
  %2416 = vmatprep.subr.bf16.mxu0 %v1957
  %2417 = vmatpush2.bf16.msra.mxu0 %v1956
  %2418 = vmatprep.subr.bf16.mxu0 %v1954
  %2419 = vmatpush2.bf16.msra.mxu0 %v1953
  %2420 = vmatprep.mubr.bf16.mxu0 %v966
  %2421 = vmatmul.mubr.bf16.gmra.mxu0 %v965
  %v2422 = vpop.f32.mrf.mxu0
  %v2423 = vadd.f32 %v2382, %v2422
  %v2424 = vpop.f32.mrf.mxu0
  %v2425 = vadd.f32 %v2384, %v2424
  %v2426 = vpop.f32.mrf.mxu0
  %v2427 = vpop.f32.mrf.mxu0
  %2428 = vdwg.mxu0
  %2429 = vmatprep.subr.bf16.mxu0 %v1999
  %2430 = vmatpush1.bf16.msra.mxu0 %v1998
  %2431 = vmatprep.subr.bf16.mxu0 %v1996
  %2432 = vmatpush1.bf16.msra.mxu0 %v1995
  %2433 = vmatprep.subr.bf16.mxu0 %v1993
  %2434 = vmatpush1.bf16.msra.mxu0 %v1992
  %2435 = vmatprep.subr.bf16.mxu0 %v1990
  %2436 = vmatpush1.bf16.msra.mxu0 %v1989
  %2437 = vmatprep.subr.bf16.mxu0 %v1987
  %2438 = vmatpush1.bf16.msra.mxu0 %v1986
  %2439 = vmatprep.subr.bf16.mxu0 %v1984
  %2440 = vmatpush1.bf16.msra.mxu0 %v1983
  %2441 = vmatprep.subr.bf16.mxu0 %v1981
  %2442 = vmatpush1.bf16.msra.mxu0 %v1980
  %2443 = vmatprep.subr.bf16.mxu0 %v1978
  %2444 = vmatpush1.bf16.msra.mxu0 %v1977
  %2445 = vmatprep.subr.bf16.mxu0 %v2023
  %2446 = vmatpush2.bf16.msra.mxu0 %v2022
  %2447 = vmatprep.subr.bf16.mxu0 %v2020
  %2448 = vmatpush2.bf16.msra.mxu0 %v2019
  %2449 = vmatprep.subr.bf16.mxu0 %v2017
  %2450 = vmatpush2.bf16.msra.mxu0 %v2016
  %2451 = vmatprep.subr.bf16.mxu0 %v2014
  %2452 = vmatpush2.bf16.msra.mxu0 %v2013
  %2453 = vmatprep.subr.bf16.mxu0 %v2011
  %2454 = vmatpush2.bf16.msra.mxu0 %v2010
  %2455 = vmatprep.subr.bf16.mxu0 %v2008
  %2456 = vmatpush2.bf16.msra.mxu0 %v2007
  %2457 = vmatprep.subr.bf16.mxu0 %v2005
  %2458 = vmatpush2.bf16.msra.mxu0 %v2004
  %2459 = vmatprep.subr.bf16.mxu0 %v2002
  %2460 = vmatpush2.bf16.msra.mxu0 %v2001
  %2461 = vmatprep.mubr.bf16.mxu0 %v968
  %2462 = vmatmul.mubr.bf16.gmra.mxu0 %v967
  %v2463 = vpop.f32.mrf.mxu0
  %v2464 = vadd.f32 %v2423, %v2463
  %v2465 = vpop.f32.mrf.mxu0
  %v2466 = vadd.f32 %v2425, %v2465
  %v2467 = vpop.f32.mrf.mxu0
  %v2468 = vpop.f32.mrf.mxu0
  %2469 = vdwg.mxu0
  %2470 = vmatprep.subr.bf16.mxu0 0
  %2471 = vmatpush1.bf16.msra.mxu0 %v1808
  %2472 = vmatprep.subr.bf16.mxu0 0
  %2473 = vmatpush1.bf16.msra.mxu0 %v1805
  %2474 = vmatprep.subr.bf16.mxu0 0
  %2475 = vmatpush1.bf16.msra.mxu0 %v1802
  %2476 = vmatprep.subr.bf16.mxu0 0
  %2477 = vmatpush1.bf16.msra.mxu0 %v1799
  %2478 = vmatprep.subr.bf16.mxu0 0
  %2479 = vmatpush1.bf16.msra.mxu0 %v1796
  %2480 = vmatprep.subr.bf16.mxu0 0
  %2481 = vmatpush1.bf16.msra.mxu0 %v1793
  %2482 = vmatprep.subr.bf16.mxu0 0
  %2483 = vmatpush1.bf16.msra.mxu0 %v1790
  %2484 = vmatprep.subr.bf16.mxu0 0
  %2485 = vmatpush1.bf16.msra.mxu0 %v1787
  %2486 = vmatprep.subr.bf16.mxu0 0
  %2487 = vmatpush2.bf16.msra.mxu0 %v1832
  %2488 = vmatprep.subr.bf16.mxu0 0
  %2489 = vmatpush2.bf16.msra.mxu0 %v1829
  %2490 = vmatprep.subr.bf16.mxu0 0
  %2491 = vmatpush2.bf16.msra.mxu0 %v1826
  %2492 = vmatprep.subr.bf16.mxu0 0
  %2493 = vmatpush2.bf16.msra.mxu0 %v1823
  %2494 = vmatprep.subr.bf16.mxu0 0
  %2495 = vmatpush2.bf16.msra.mxu0 %v1820
  %2496 = vmatprep.subr.bf16.mxu0 0
  %2497 = vmatpush2.bf16.msra.mxu0 %v1817
  %2498 = vmatprep.subr.bf16.mxu0 0
  %2499 = vmatpush2.bf16.msra.mxu0 %v1814
  %2500 = vmatprep.subr.bf16.mxu0 0
  %2501 = vmatpush2.bf16.msra.mxu0 %v1811
  %2502 = vmatprep.mubr.bf16.mxu0 %v960
  %2503 = vmatmul.mubr.bf16.gmra.mxu0 %v959
  %v2504 = vpop.f32.mrf.mxu0
  %v2505 = vadd.f32 %v981, %v2504
  %v2506 = vpop.f32.mrf.mxu0
  %v2507 = vpop.f32.mrf.mxu0
  %v2508 = vpop.f32.mrf.mxu0
  %2509 = vdwg.mxu0
  %2510 = vmatprep.subr.bf16.mxu0 0
  %2511 = vmatpush1.bf16.msra.mxu0 %v1856
  %2512 = vmatprep.subr.bf16.mxu0 0
  %2513 = vmatpush1.bf16.msra.mxu0 %v1853
  %2514 = vmatprep.subr.bf16.mxu0 0
  %2515 = vmatpush1.bf16.msra.mxu0 %v1850
  %2516 = vmatprep.subr.bf16.mxu0 0
  %2517 = vmatpush1.bf16.msra.mxu0 %v1847
  %2518 = vmatprep.subr.bf16.mxu0 0
  %2519 = vmatpush1.bf16.msra.mxu0 %v1844
  %2520 = vmatprep.subr.bf16.mxu0 0
  %2521 = vmatpush1.bf16.msra.mxu0 %v1841
  %2522 = vmatprep.subr.bf16.mxu0 0
  %2523 = vmatpush1.bf16.msra.mxu0 %v1838
  %2524 = vmatprep.subr.bf16.mxu0 0
  %2525 = vmatpush1.bf16.msra.mxu0 %v1835
  %2526 = vmatprep.subr.bf16.mxu0 0
  %2527 = vmatpush2.bf16.msra.mxu0 %v1880
  %2528 = vmatprep.subr.bf16.mxu0 0
  %2529 = vmatpush2.bf16.msra.mxu0 %v1877
  %2530 = vmatprep.subr.bf16.mxu0 0
  %2531 = vmatpush2.bf16.msra.mxu0 %v1874
  %2532 = vmatprep.subr.bf16.mxu0 0
  %2533 = vmatpush2.bf16.msra.mxu0 %v1871
  %2534 = vmatprep.subr.bf16.mxu0 0
  %2535 = vmatpush2.bf16.msra.mxu0 %v1868
  %2536 = vmatprep.subr.bf16.mxu0 0
  %2537 = vmatpush2.bf16.msra.mxu0 %v1865
  %2538 = vmatprep.subr.bf16.mxu0 0
  %2539 = vmatpush2.bf16.msra.mxu0 %v1862
  %2540 = vmatprep.subr.bf16.mxu0 0
  %2541 = vmatpush2.bf16.msra.mxu0 %v1859
  %2542 = vmatprep.mubr.bf16.mxu0 %v962
  %2543 = vmatmul.mubr.bf16.gmra.mxu0 %v961
  %v2544 = vpop.f32.mrf.mxu0
  %v2545 = vadd.f32 %v2505, %v2544
  %v2546 = vpop.f32.mrf.mxu0
  %v2547 = vpop.f32.mrf.mxu0
  %v2548 = vpop.f32.mrf.mxu0
  %2549 = vdwg.mxu0
  %2550 = vmatprep.subr.bf16.mxu0 0
  %2551 = vmatpush1.bf16.msra.mxu0 %v1904
  %2552 = vmatprep.subr.bf16.mxu0 0
  %2553 = vmatpush1.bf16.msra.mxu0 %v1901
  %2554 = vmatprep.subr.bf16.mxu0 0
  %2555 = vmatpush1.bf16.msra.mxu0 %v1898
  %2556 = vmatprep.subr.bf16.mxu0 0
  %2557 = vmatpush1.bf16.msra.mxu0 %v1895
  %2558 = vmatprep.subr.bf16.mxu0 0
  %2559 = vmatpush1.bf16.msra.mxu0 %v1892
  %2560 = vmatprep.subr.bf16.mxu0 0
  %2561 = vmatpush1.bf16.msra.mxu0 %v1889
  %2562 = vmatprep.subr.bf16.mxu0 0
  %2563 = vmatpush1.bf16.msra.mxu0 %v1886
  %2564 = vmatprep.subr.bf16.mxu0 0
  %2565 = vmatpush1.bf16.msra.mxu0 %v1883
  %2566 = vmatprep.subr.bf16.mxu0 0
  %2567 = vmatpush2.bf16.msra.mxu0 %v1928
  %2568 = vmatprep.subr.bf16.mxu0 0
  %2569 = vmatpush2.bf16.msra.mxu0 %v1925
  %2570 = vmatprep.subr.bf16.mxu0 0
  %2571 = vmatpush2.bf16.msra.mxu0 %v1922
  %2572 = vmatprep.subr.bf16.mxu0 0
  %2573 = vmatpush2.bf16.msra.mxu0 %v1919
  %2574 = vmatprep.subr.bf16.mxu0 0
  %2575 = vmatpush2.bf16.msra.mxu0 %v1916
  %2576 = vmatprep.subr.bf16.mxu0 0
  %2577 = vmatpush2.bf16.msra.mxu0 %v1913
  %2578 = vmatprep.subr.bf16.mxu0 0
  %2579 = vmatpush2.bf16.msra.mxu0 %v1910
  %2580 = vmatprep.subr.bf16.mxu0 0
  %2581 = vmatpush2.bf16.msra.mxu0 %v1907
  %2582 = vmatprep.mubr.bf16.mxu0 %v964
  %2583 = vmatmul.mubr.bf16.gmra.mxu0 %v963
  %v2584 = vpop.f32.mrf.mxu0
  %v2585 = vadd.f32 %v2545, %v2584
  %v2586 = vpop.f32.mrf.mxu0
  %v2587 = vpop.f32.mrf.mxu0
  %v2588 = vpop.f32.mrf.mxu0
  %2589 = vdwg.mxu0
  %2590 = vmatprep.subr.bf16.mxu0 0
  %2591 = vmatpush1.bf16.msra.mxu0 %v1952
  %2592 = vmatprep.subr.bf16.mxu0 0
  %2593 = vmatpush1.bf16.msra.mxu0 %v1949
  %2594 = vmatprep.subr.bf16.mxu0 0
  %2595 = vmatpush1.bf16.msra.mxu0 %v1946
  %2596 = vmatprep.subr.bf16.mxu0 0
  %2597 = vmatpush1.bf16.msra.mxu0 %v1943
  %2598 = vmatprep.subr.bf16.mxu0 0
  %2599 = vmatpush1.bf16.msra.mxu0 %v1940
  %2600 = vmatprep.subr.bf16.mxu0 0
  %2601 = vmatpush1.bf16.msra.mxu0 %v1937
  %2602 = vmatprep.subr.bf16.mxu0 0
  %2603 = vmatpush1.bf16.msra.mxu0 %v1934
  %2604 = vmatprep.subr.bf16.mxu0 0
  %2605 = vmatpush1.bf16.msra.mxu0 %v1931
  %2606 = vmatprep.subr.bf16.mxu0 0
  %2607 = vmatpush2.bf16.msra.mxu0 %v1976
  %2608 = vmatprep.subr.bf16.mxu0 0
  %2609 = vmatpush2.bf16.msra.mxu0 %v1973
  %2610 = vmatprep.subr.bf16.mxu0 0
  %2611 = vmatpush2.bf16.msra.mxu0 %v1970
  %2612 = vmatprep.subr.bf16.mxu0 0
  %2613 = vmatpush2.bf16.msra.mxu0 %v1967
  %2614 = vmatprep.subr.bf16.mxu0 0
  %2615 = vmatpush2.bf16.msra.mxu0 %v1964
  %2616 = vmatprep.subr.bf16.mxu0 0
  %2617 = vmatpush2.bf16.msra.mxu0 %v1961
  %2618 = vmatprep.subr.bf16.mxu0 0
  %2619 = vmatpush2.bf16.msra.mxu0 %v1958
  %2620 = vmatprep.subr.bf16.mxu0 0
  %2621 = vmatpush2.bf16.msra.mxu0 %v1955
  %2622 = vmatprep.mubr.bf16.mxu0 %v966
  %2623 = vmatmul.mubr.bf16.gmra.mxu0 %v965
  %v2624 = vpop.f32.mrf.mxu0
  %v2625 = vadd.f32 %v2585, %v2624
  %v2626 = vpop.f32.mrf.mxu0
  %v2627 = vpop.f32.mrf.mxu0
  %v2628 = vpop.f32.mrf.mxu0
  %2629 = vdwg.mxu0
  %2630 = vmatprep.subr.bf16.mxu0 0
  %2631 = vmatpush1.bf16.msra.mxu0 %v2000
  %2632 = vmatprep.subr.bf16.mxu0 0
  %2633 = vmatpush1.bf16.msra.mxu0 %v1997
  %2634 = vmatprep.subr.bf16.mxu0 0
  %2635 = vmatpush1.bf16.msra.mxu0 %v1994
  %2636 = vmatprep.subr.bf16.mxu0 0
  %2637 = vmatpush1.bf16.msra.mxu0 %v1991
  %2638 = vmatprep.subr.bf16.mxu0 0
  %2639 = vmatpush1.bf16.msra.mxu0 %v1988
  %2640 = vmatprep.subr.bf16.mxu0 0
  %2641 = vmatpush1.bf16.msra.mxu0 %v1985
  %2642 = vmatprep.subr.bf16.mxu0 0
  %2643 = vmatpush1.bf16.msra.mxu0 %v1982
  %2644 = vmatprep.subr.bf16.mxu0 0
  %2645 = vmatpush1.bf16.msra.mxu0 %v1979
  %2646 = vmatprep.subr.bf16.mxu0 0
  %2647 = vmatpush2.bf16.msra.mxu0 %v2024
  %2648 = vmatprep.subr.bf16.mxu0 0
  %2649 = vmatpush2.bf16.msra.mxu0 %v2021
  %2650 = vmatprep.subr.bf16.mxu0 0
  %2651 = vmatpush2.bf16.msra.mxu0 %v2018
  %2652 = vmatprep.subr.bf16.mxu0 0
  %2653 = vmatpush2.bf16.msra.mxu0 %v2015
  %2654 = vmatprep.subr.bf16.mxu0 0
  %2655 = vmatpush2.bf16.msra.mxu0 %v2012
  %2656 = vmatprep.subr.bf16.mxu0 0
  %2657 = vmatpush2.bf16.msra.mxu0 %v2009
  %2658 = vmatprep.subr.bf16.mxu0 0
  %2659 = vmatpush2.bf16.msra.mxu0 %v2006
  %2660 = vmatprep.subr.bf16.mxu0 0
  %2661 = vmatpush2.bf16.msra.mxu0 %v2003
  %2662 = vmatprep.mubr.bf16.mxu0 %v968
  %2663 = vmatmul.mubr.bf16.gmra.mxu0 %v967
  %v2664 = vpop.f32.mrf.mxu0
  %v2665 = vadd.f32 %v2625, %v2664
  %v2666 = vpop.f32.mrf.mxu0
  %v2667 = vpop.f32.mrf.mxu0
  %v2668 = vpop.f32.mrf.mxu0
  %2669 = vdwg.mxu0
  %v2670 = vpack.c.bf16 %v49, %v49
  %v2677 = vunpack.c.l.b16 %v384
  %v2678 = vunpack.c.h.b16 %v384
  %v2679 = vunpack.c.l.b16 %v385
  %v2680 = vunpack.c.h.b16 %v385
  %v2681 = vunpack.c.l.b16 %v386
  %v2682 = vunpack.c.h.b16 %v386
  %v2683 = vunpack.c.l.b16 %v387
  %v2684 = vunpack.c.h.b16 %v387
  %v2685 = vunpack.c.l.b16 %v388
  %v2686 = vunpack.c.h.b16 %v388
  %v2687 = vunpack.c.l.b16 %v389
  %v2688 = vunpack.c.h.b16 %v389
  %v2689 = vpack.c.b16 %v2679, %v2677
  %v2690 = vpack.c.b16 %v2680, %v2678
  %v2691 = vpack.c.b16 %v2683, %v2681
  %v2692 = vpack.c.b16 %v2684, %v2682
  %v2693 = vpack.c.b16 %v2687, %v2685
  %v2694 = vpack.c.b16 %v2688, %v2686
  %vm2701 = vcmask 392192
  %v2703 = vsel %vm2701, %v2670, 0
  %2705 = vmatprep.subr.bf16.mxu0 0
  %2706 = vmatpush1.bf16.msra.mxu0 0
  %2707 = vmatprep.subr.bf16.mxu0 0
  %2708 = vmatpush1.bf16.msra.mxu0 0
  %2709 = vmatprep.subr.bf16.mxu0 0
  %2710 = vmatpush1.bf16.msra.mxu0 0
  %2711 = vmatprep.subr.bf16.mxu0 0
  %2712 = vmatpush1.bf16.msra.mxu0 0
  %2713 = vmatprep.subr.bf16.mxu0 0
  %2714 = vmatpush1.bf16.msra.mxu0 0
  %2715 = vmatprep.subr.bf16.mxu0 %v2694
  %2716 = vmatpush1.bf16.msra.mxu0 %v2693
  %2717 = vmatprep.subr.bf16.mxu0 %v2692
  %2718 = vmatpush1.bf16.msra.mxu0 %v2691
  %2719 = vmatprep.subr.bf16.mxu0 %v2690
  %2720 = vmatpush1.bf16.msra.mxu0 %v2689
  %2721 = vmatprep.subr.bf16.mxu0 0
  %2722 = vmatpush2.bf16.msra.mxu0 0
  %2723 = vmatprep.subr.bf16.mxu0 0
  %2724 = vmatpush2.bf16.msra.mxu0 0
  %2725 = vmatprep.subr.bf16.mxu0 0
  %2726 = vmatpush2.bf16.msra.mxu0 0
  %2727 = vmatprep.subr.bf16.mxu0 0
  %2728 = vmatpush2.bf16.msra.mxu0 0
  %2729 = vmatprep.subr.bf16.mxu0 0
  %2730 = vmatpush2.bf16.msra.mxu0 0
  %2731 = vmatprep.subr.bf16.mxu0 0
  %2732 = vmatpush2.bf16.msra.mxu0 0
  %2733 = vmatprep.subr.bf16.mxu0 0
  %2734 = vmatpush2.bf16.msra.mxu0 0
  %2735 = vmatprep.subr.bf16.mxu0 0
  %2736 = vmatpush2.bf16.msra.mxu0 0
  %2737 = vmatprep.mubr.bf16.mxu0 0
  %2738 = vmatmul.mubr.bf16.gmra.mxu0 %v2703
  %v2739 = vpop.f32.mrf.mxu0
  %v2740 = vadd.f32 0.0, %v2739
  %v2741 = vpop.f32.mrf.mxu0
  %v2742 = vadd.f32 0.0, %v2741
  %v2743 = vpop.f32.mrf.mxu0
  %v2744 = vpop.f32.mrf.mxu0
  %2745 = vdwg.mxu0
  %v2746 = vadd.f32 %v2464, %v2740
  %v2747 = vadd.f32 %v2466, %v2742
  %v2748 = vmax.f32 %v2466, 0.0
  %v2749 = vmax.f32 %v2665, 0.0
  %v2750 = vxor.u32 %v2746, 2147483648
  %v2751 = vmul.f32 %v2750, 1.442695
  %v2752 = vpow.pop %v2751
  %v2753 = vadd.f32 %v2752, 1.0
  %v2754 = vrcp.pop %v2753
  %v2755 = vmul.f32 1.0, %v2754
  %v2756 = vtanh.pop %v2746
  %v2757 = vtanh.pop %v2747
  %v2758 = vxor.u32 %v2747, 2147483648
  %v2759 = vmul.f32 %v2758, 1.442695
  %v2760 = vpow.pop %v2759
  %v2761 = vadd.f32 %v2760, 1.0
  %v2762 = vrcp.pop %v2761
  %v2763 = vmul.f32 1.0, %v2762
  %2765 = vrot.lane.b32.xlu0 %v50, 48
  %v2766 = vpop.permute.xlu0 %2765
  %v2768 = vmul.f32 %v2755, %v2766
  %2771 = vrot.lane.b32.xlu0 %v2756, 32
  %v2772 = vpop.permute.xlu0 %2771
  %2773 = vrot.lane.b32.xlu0 %v2757, 32
  %v2774 = vpop.permute.xlu0 %2773
  %vm2775 = vcmask 261120
  %v2776 = vsel %vm2775, %v2772, %v2774
  %v2778 = vmul.f32 %v2755, %v2776
  %2780 = vrot.lane.b32.xlu0 %v2778, 48
  %v2781 = vpop.permute.xlu0 %2780
  %v2783 = vadd.f32 %v2768, %v2781
  %v2784 = vtanh.pop %v2783
  %2786 = vrot.lane.b32.xlu0 %v2784, 96
  %v2787 = vpop.permute.xlu0 %2786
  %v2789 = vmul.f32 %v2763, %v2787
  %v2790 = vpack.c.bf16 %v2789, %v2789
  %v2793 = vlaneseq
  %v2794 = vshrl.u32 %v2793, 7
  %v2795 = vsub.s32 0, %v2794
  %v2796 = vrot.slane %v420, %v2795
  %v2797 = vlaneseq
  %v2798 = vshrl.u32 %v2797, 7
  %v2799 = vsub.s32 1, %v2798
  %v2800 = vrot.slane %v420, %v2799
  %v2801 = vlaneseq
  %v2802 = vshrl.u32 %v2801, 7
  %v2803 = vsub.s32 2, %v2802
  %v2804 = vrot.slane %v420, %v2803
  %v2805 = vlaneseq
  %v2806 = vshrl.u32 %v2805, 7
  %v2807 = vsub.s32 3, %v2806
  %v2808 = vrot.slane %v420, %v2807
  %v2809 = vlaneseq
  %v2810 = vshrl.u32 %v2809, 7
  %v2811 = vsub.s32 4, %v2810
  %v2812 = vrot.slane %v420, %v2811
  %v2813 = vlaneseq
  %v2814 = vshrl.u32 %v2813, 7
  %v2815 = vsub.s32 5, %v2814
  %v2816 = vrot.slane %v420, %v2815
  %v2817 = vlaneseq
  %v2818 = vshrl.u32 %v2817, 7
  %v2819 = vsub.s32 6, %v2818
  %v2820 = vrot.slane %v420, %v2819
  %v2821 = vlaneseq
  %v2822 = vshrl.u32 %v2821, 7
  %v2823 = vsub.s32 7, %v2822
  %v2824 = vrot.slane %v420, %v2823
  %v2825 = vlaneseq
  %v2826 = vshrl.u32 %v2825, 7
  %v2827 = vsub.s32 0, %v2826
  %v2828 = vrot.slane %v421, %v2827
  %v2829 = vlaneseq
  %v2830 = vshrl.u32 %v2829, 7
  %v2831 = vsub.s32 1, %v2830
  %v2832 = vrot.slane %v421, %v2831
  %2844 = vrot.lane.b32.xlu0 %v2790, 112
  %v2845 = vpop.permute.xlu0 %2844
  %v2876 = vunpack.c.l.b16 %v390
  %v2877 = vunpack.c.h.b16 %v390
  %v2878 = vunpack.c.l.b16 %v391
  %v2879 = vunpack.c.h.b16 %v391
  %v2880 = vunpack.c.l.b16 %v392
  %v2881 = vunpack.c.h.b16 %v392
  %v2882 = vunpack.c.l.b16 %v393
  %v2883 = vunpack.c.h.b16 %v393
  %v2884 = vunpack.c.l.b16 %v394
  %v2885 = vunpack.c.h.b16 %v394
  %v2886 = vunpack.c.l.b16 %v395
  %v2887 = vunpack.c.h.b16 %v395
  %v2888 = vunpack.c.l.b16 %v396
  %v2889 = vunpack.c.h.b16 %v396
  %v2890 = vunpack.c.l.b16 %v397
  %v2891 = vunpack.c.h.b16 %v397
  %v2892 = vunpack.c.l.b16 %v398
  %v2893 = vunpack.c.h.b16 %v398
  %v2894 = vunpack.c.l.b16 %v399
  %v2895 = vunpack.c.h.b16 %v399
  %v2896 = vunpack.c.l.b16 %v400
  %v2897 = vunpack.c.h.b16 %v400
  %v2898 = vunpack.c.l.b16 %v401
  %v2899 = vunpack.c.h.b16 %v401
  %v2900 = vunpack.c.l.b16 %v402
  %v2901 = vunpack.c.h.b16 %v402
  %v2902 = vunpack.c.l.b16 %v403
  %v2903 = vunpack.c.h.b16 %v403
  %v2904 = vunpack.c.l.b16 %v404
  %v2905 = vunpack.c.h.b16 %v404
  %v2906 = vunpack.c.l.b16 %v405
  %v2907 = vunpack.c.h.b16 %v405
  %v2908 = vunpack.c.l.b16 %v406
  %v2909 = vunpack.c.h.b16 %v406
  %v2910 = vunpack.c.l.b16 %v407
  %v2911 = vunpack.c.h.b16 %v407
  %v2912 = vunpack.c.l.b16 %v408
  %v2913 = vunpack.c.h.b16 %v408
  %v2914 = vunpack.c.l.b16 %v409
  %v2915 = vunpack.c.h.b16 %v409
  %v2916 = vunpack.c.l.b16 %v410
  %v2917 = vunpack.c.h.b16 %v410
  %v2918 = vunpack.c.l.b16 %v411
  %v2919 = vunpack.c.h.b16 %v411
  %v2920 = vunpack.c.l.b16 %v412
  %v2921 = vunpack.c.h.b16 %v412
  %v2922 = vunpack.c.l.b16 %v413
  %v2923 = vunpack.c.h.b16 %v413
  %v2924 = vunpack.c.l.b16 %v414
  %v2925 = vunpack.c.h.b16 %v414
  %v2926 = vunpack.c.l.b16 %v415
  %v2927 = vunpack.c.h.b16 %v415
  %v2928 = vunpack.c.l.b16 %v416
  %v2929 = vunpack.c.h.b16 %v416
  %v2930 = vunpack.c.l.b16 %v417
  %v2931 = vunpack.c.h.b16 %v417
  %v2932 = vunpack.c.l.b16 %v418
  %v2933 = vunpack.c.h.b16 %v418
  %v2934 = vunpack.c.l.b16 %v419
  %v2935 = vunpack.c.h.b16 %v419
  %v2936 = vpack.c.b16 %v2886, %v2876
  %v2937 = vpack.c.b16 %v2887, %v2877
  %v2938 = vpack.c.b16 %v2888, %v2878
  %v2939 = vpack.c.b16 %v2889, %v2879
  %v2940 = vpack.c.b16 %v2890, %v2880
  %v2941 = vpack.c.b16 %v2891, %v2881
  %v2942 = vpack.c.b16 %v2892, %v2882
  %v2943 = vpack.c.b16 %v2893, %v2883
  %v2944 = vpack.c.b16 %v2894, %v2884
  %v2945 = vpack.c.b16 %v2895, %v2885
  %v2946 = vpack.c.b16 %v2906, %v2896
  %v2947 = vpack.c.b16 %v2907, %v2897
  %v2948 = vpack.c.b16 %v2908, %v2898
  %v2949 = vpack.c.b16 %v2909, %v2899
  %v2950 = vpack.c.b16 %v2910, %v2900
  %v2951 = vpack.c.b16 %v2911, %v2901
  %v2952 = vpack.c.b16 %v2912, %v2902
  %v2953 = vpack.c.b16 %v2913, %v2903
  %v2954 = vpack.c.b16 %v2914, %v2904
  %v2955 = vpack.c.b16 %v2915, %v2905
  %v2956 = vpack.c.b16 %v2926, %v2916
  %v2957 = vpack.c.b16 %v2927, %v2917
  %v2958 = vpack.c.b16 %v2928, %v2918
  %v2959 = vpack.c.b16 %v2929, %v2919
  %v2960 = vpack.c.b16 %v2930, %v2920
  %v2961 = vpack.c.b16 %v2931, %v2921
  %v2962 = vpack.c.b16 %v2932, %v2922
  %v2963 = vpack.c.b16 %v2933, %v2923
  %v2964 = vpack.c.b16 %v2934, %v2924
  %v2965 = vpack.c.b16 %v2935, %v2925
  %v2997 = vsel %vm2701, %v2845, 0
  %2999 = vmatprep.subr.bf16.mxu0 0
  %3000 = vmatpush1.bf16.msra.mxu0 0
  %3001 = vmatprep.subr.bf16.mxu0 0
  %3002 = vmatpush1.bf16.msra.mxu0 0
  %3003 = vmatprep.subr.bf16.mxu0 0
  %3004 = vmatpush1.bf16.msra.mxu0 0
  %3005 = vmatprep.subr.bf16.mxu0 0
  %3006 = vmatpush1.bf16.msra.mxu0 0
  %3007 = vmatprep.subr.bf16.mxu0 0
  %3008 = vmatpush1.bf16.msra.mxu0 0
  %3009 = vmatprep.subr.bf16.mxu0 %v2957
  %3010 = vmatpush1.bf16.msra.mxu0 %v2956
  %3011 = vmatprep.subr.bf16.mxu0 %v2947
  %3012 = vmatpush1.bf16.msra.mxu0 %v2946
  %3013 = vmatprep.subr.bf16.mxu0 %v2937
  %3014 = vmatpush1.bf16.msra.mxu0 %v2936
  %3015 = vmatprep.subr.bf16.mxu0 0
  %3016 = vmatpush2.bf16.msra.mxu0 0
  %3017 = vmatprep.subr.bf16.mxu0 0
  %3018 = vmatpush2.bf16.msra.mxu0 0
  %3019 = vmatprep.subr.bf16.mxu0 0
  %3020 = vmatpush2.bf16.msra.mxu0 0
  %3021 = vmatprep.subr.bf16.mxu0 0
  %3022 = vmatpush2.bf16.msra.mxu0 0
  %3023 = vmatprep.subr.bf16.mxu0 0
  %3024 = vmatpush2.bf16.msra.mxu0 0
  %3025 = vmatprep.subr.bf16.mxu0 0
  %3026 = vmatpush2.bf16.msra.mxu0 0
  %3027 = vmatprep.subr.bf16.mxu0 0
  %3028 = vmatpush2.bf16.msra.mxu0 0
  %3029 = vmatprep.subr.bf16.mxu0 0
  %3030 = vmatpush2.bf16.msra.mxu0 0
  %3031 = vmatprep.mubr.bf16.mxu0 0
  %3032 = vmatmul.mubr.bf16.gmra.mxu0 %v2997
  %v3033 = vpop.f32.mrf.mxu0
  %v3034 = vadd.f32 %v2796, %v3033
  %v3035 = vpop.f32.mrf.mxu0
  %v3036 = vadd.f32 %v2800, %v3035
  %v3037 = vpop.f32.mrf.mxu0
  %v3038 = vpop.f32.mrf.mxu0
  %3039 = vdwg.mxu0
  %3040 = vmatprep.subr.bf16.mxu0 0
  %3041 = vmatpush1.bf16.msra.mxu0 0
  %3042 = vmatprep.subr.bf16.mxu0 0
  %3043 = vmatpush1.bf16.msra.mxu0 0
  %3044 = vmatprep.subr.bf16.mxu0 0
  %3045 = vmatpush1.bf16.msra.mxu0 0
  %3046 = vmatprep.subr.bf16.mxu0 0
  %3047 = vmatpush1.bf16.msra.mxu0 0
  %3048 = vmatprep.subr.bf16.mxu0 0
  %3049 = vmatpush1.bf16.msra.mxu0 0
  %3050 = vmatprep.subr.bf16.mxu0 %v2959
  %3051 = vmatpush1.bf16.msra.mxu0 %v2958
  %3052 = vmatprep.subr.bf16.mxu0 %v2949
  %3053 = vmatpush1.bf16.msra.mxu0 %v2948
  %3054 = vmatprep.subr.bf16.mxu0 %v2939
  %3055 = vmatpush1.bf16.msra.mxu0 %v2938
  %3056 = vmatprep.subr.bf16.mxu0 0
  %3057 = vmatpush2.bf16.msra.mxu0 0
  %3058 = vmatprep.subr.bf16.mxu0 0
  %3059 = vmatpush2.bf16.msra.mxu0 0
  %3060 = vmatprep.subr.bf16.mxu0 0
  %3061 = vmatpush2.bf16.msra.mxu0 0
  %3062 = vmatprep.subr.bf16.mxu0 0
  %3063 = vmatpush2.bf16.msra.mxu0 0
  %3064 = vmatprep.subr.bf16.mxu0 0
  %3065 = vmatpush2.bf16.msra.mxu0 0
  %3066 = vmatprep.subr.bf16.mxu0 0
  %3067 = vmatpush2.bf16.msra.mxu0 0
  %3068 = vmatprep.subr.bf16.mxu0 0
  %3069 = vmatpush2.bf16.msra.mxu0 0
  %3070 = vmatprep.subr.bf16.mxu0 0
  %3071 = vmatpush2.bf16.msra.mxu0 0
  %3072 = vmatprep.mubr.bf16.mxu0 0
  %3073 = vmatmul.mubr.bf16.gmra.mxu0 %v2997
  %v3074 = vpop.f32.mrf.mxu0
  %v3075 = vadd.f32 %v2804, %v3074
  %v3076 = vpop.f32.mrf.mxu0
  %v3077 = vadd.f32 %v2808, %v3076
  %v3078 = vpop.f32.mrf.mxu0
  %v3079 = vpop.f32.mrf.mxu0
  %3080 = vdwg.mxu0
  %3081 = vmatprep.subr.bf16.mxu0 0
  %3082 = vmatpush1.bf16.msra.mxu0 0
  %3083 = vmatprep.subr.bf16.mxu0 0
  %3084 = vmatpush1.bf16.msra.mxu0 0
  %3085 = vmatprep.subr.bf16.mxu0 0
  %3086 = vmatpush1.bf16.msra.mxu0 0
  %3087 = vmatprep.subr.bf16.mxu0 0
  %3088 = vmatpush1.bf16.msra.mxu0 0
  %3089 = vmatprep.subr.bf16.mxu0 0
  %3090 = vmatpush1.bf16.msra.mxu0 0
  %3091 = vmatprep.subr.bf16.mxu0 %v2961
  %3092 = vmatpush1.bf16.msra.mxu0 %v2960
  %3093 = vmatprep.subr.bf16.mxu0 %v2951
  %3094 = vmatpush1.bf16.msra.mxu0 %v2950
  %3095 = vmatprep.subr.bf16.mxu0 %v2941
  %3096 = vmatpush1.bf16.msra.mxu0 %v2940
  %3097 = vmatprep.subr.bf16.mxu0 0
  %3098 = vmatpush2.bf16.msra.mxu0 0
  %3099 = vmatprep.subr.bf16.mxu0 0
  %3100 = vmatpush2.bf16.msra.mxu0 0
  %3101 = vmatprep.subr.bf16.mxu0 0
  %3102 = vmatpush2.bf16.msra.mxu0 0
  %3103 = vmatprep.subr.bf16.mxu0 0
  %3104 = vmatpush2.bf16.msra.mxu0 0
  %3105 = vmatprep.subr.bf16.mxu0 0
  %3106 = vmatpush2.bf16.msra.mxu0 0
  %3107 = vmatprep.subr.bf16.mxu0 0
  %3108 = vmatpush2.bf16.msra.mxu0 0
  %3109 = vmatprep.subr.bf16.mxu0 0
  %3110 = vmatpush2.bf16.msra.mxu0 0
  %3111 = vmatprep.subr.bf16.mxu0 0
  %3112 = vmatpush2.bf16.msra.mxu0 0
  %3113 = vmatprep.mubr.bf16.mxu0 0
  %3114 = vmatmul.mubr.bf16.gmra.mxu0 %v2997
  %v3115 = vpop.f32.mrf.mxu0
  %v3116 = vadd.f32 %v2812, %v3115
  %v3117 = vpop.f32.mrf.mxu0
  %v3118 = vadd.f32 %v2816, %v3117
  %v3119 = vpop.f32.mrf.mxu0
  %v3120 = vpop.f32.mrf.mxu0
  %3121 = vdwg.mxu0
  %3122 = vmatprep.subr.bf16.mxu0 0
  %3123 = vmatpush1.bf16.msra.mxu0 0
  %3124 = vmatprep.subr.bf16.mxu0 0
  %3125 = vmatpush1.bf16.msra.mxu0 0
  %3126 = vmatprep.subr.bf16.mxu0 0
  %3127 = vmatpush1.bf16.msra.mxu0 0
  %3128 = vmatprep.subr.bf16.mxu0 0
  %3129 = vmatpush1.bf16.msra.mxu0 0
  %3130 = vmatprep.subr.bf16.mxu0 0
  %3131 = vmatpush1.bf16.msra.mxu0 0
  %3132 = vmatprep.subr.bf16.mxu0 %v2963
  %3133 = vmatpush1.bf16.msra.mxu0 %v2962
  %3134 = vmatprep.subr.bf16.mxu0 %v2953
  %3135 = vmatpush1.bf16.msra.mxu0 %v2952
  %3136 = vmatprep.subr.bf16.mxu0 %v2943
  %3137 = vmatpush1.bf16.msra.mxu0 %v2942
  %3138 = vmatprep.subr.bf16.mxu0 0
  %3139 = vmatpush2.bf16.msra.mxu0 0
  %3140 = vmatprep.subr.bf16.mxu0 0
  %3141 = vmatpush2.bf16.msra.mxu0 0
  %3142 = vmatprep.subr.bf16.mxu0 0
  %3143 = vmatpush2.bf16.msra.mxu0 0
  %3144 = vmatprep.subr.bf16.mxu0 0
  %3145 = vmatpush2.bf16.msra.mxu0 0
  %3146 = vmatprep.subr.bf16.mxu0 0
  %3147 = vmatpush2.bf16.msra.mxu0 0
  %3148 = vmatprep.subr.bf16.mxu0 0
  %3149 = vmatpush2.bf16.msra.mxu0 0
  %3150 = vmatprep.subr.bf16.mxu0 0
  %3151 = vmatpush2.bf16.msra.mxu0 0
  %3152 = vmatprep.subr.bf16.mxu0 0
  %3153 = vmatpush2.bf16.msra.mxu0 0
  %3154 = vmatprep.mubr.bf16.mxu0 0
  %3155 = vmatmul.mubr.bf16.gmra.mxu0 %v2997
  %v3156 = vpop.f32.mrf.mxu0
  %v3157 = vadd.f32 %v2820, %v3156
  %v3158 = vpop.f32.mrf.mxu0
  %v3159 = vadd.f32 %v2824, %v3158
  %v3160 = vpop.f32.mrf.mxu0
  %v3161 = vpop.f32.mrf.mxu0
  %3162 = vdwg.mxu0
  %3163 = vmatprep.subr.bf16.mxu0 0
  %3164 = vmatpush1.bf16.msra.mxu0 0
  %3165 = vmatprep.subr.bf16.mxu0 0
  %3166 = vmatpush1.bf16.msra.mxu0 0
  %3167 = vmatprep.subr.bf16.mxu0 0
  %3168 = vmatpush1.bf16.msra.mxu0 0
  %3169 = vmatprep.subr.bf16.mxu0 0
  %3170 = vmatpush1.bf16.msra.mxu0 0
  %3171 = vmatprep.subr.bf16.mxu0 0
  %3172 = vmatpush1.bf16.msra.mxu0 0
  %3173 = vmatprep.subr.bf16.mxu0 %v2965
  %3174 = vmatpush1.bf16.msra.mxu0 %v2964
  %3175 = vmatprep.subr.bf16.mxu0 %v2955
  %3176 = vmatpush1.bf16.msra.mxu0 %v2954
  %3177 = vmatprep.subr.bf16.mxu0 %v2945
  %3178 = vmatpush1.bf16.msra.mxu0 %v2944
  %3179 = vmatprep.subr.bf16.mxu0 0
  %3180 = vmatpush2.bf16.msra.mxu0 0
  %3181 = vmatprep.subr.bf16.mxu0 0
  %3182 = vmatpush2.bf16.msra.mxu0 0
  %3183 = vmatprep.subr.bf16.mxu0 0
  %3184 = vmatpush2.bf16.msra.mxu0 0
  %3185 = vmatprep.subr.bf16.mxu0 0
  %3186 = vmatpush2.bf16.msra.mxu0 0
  %3187 = vmatprep.subr.bf16.mxu0 0
  %3188 = vmatpush2.bf16.msra.mxu0 0
  %3189 = vmatprep.subr.bf16.mxu0 0
  %3190 = vmatpush2.bf16.msra.mxu0 0
  %3191 = vmatprep.subr.bf16.mxu0 0
  %3192 = vmatpush2.bf16.msra.mxu0 0
  %3193 = vmatprep.subr.bf16.mxu0 0
  %3194 = vmatpush2.bf16.msra.mxu0 0
  %3195 = vmatprep.mubr.bf16.mxu0 0
  %3196 = vmatmul.mubr.bf16.gmra.mxu0 %v2997
  %v3197 = vpop.f32.mrf.mxu0
  %v3198 = vadd.f32 %v2828, %v3197
  %v3199 = vpop.f32.mrf.mxu0
  %v3200 = vadd.f32 %v2832, %v3199
  %v3201 = vpop.f32.mrf.mxu0
  %v3202 = vpop.f32.mrf.mxu0
  %3203 = vdwg.mxu0
  %v3204 = vmax.f32 %v3034, 0.0
  %v3205 = vmax.f32 %v3036, 0.0
  %v3206 = vmax.f32 %v3075, 0.0
  %v3207 = vmax.f32 %v3077, 0.0
  %v3208 = vmax.f32 %v3116, 0.0
  %v3209 = vmax.f32 %v3118, 0.0
  %v3210 = vmax.f32 %v3157, 0.0
  %v3211 = vmax.f32 %v3159, 0.0
  %v3212 = vmax.f32 %v3198, 0.0
  %v3213 = vmax.f32 %v3200, 0.0
  %v3214 = vpack.c.bf16 %v3204, %v3204
  %v3215 = vpack.c.bf16 %v3205, %v3205
  %v3216 = vpack.c.bf16 %v3206, %v3206
  %v3217 = vpack.c.bf16 %v3207, %v3207
  %v3218 = vpack.c.bf16 %v3208, %v3208
  %v3219 = vpack.c.bf16 %v3209, %v3209
  %v3220 = vpack.c.bf16 %v3210, %v3210
  %v3221 = vpack.c.bf16 %v3211, %v3211
  %v3222 = vpack.c.bf16 %v3212, %v3212
  %v3223 = vpack.c.bf16 %v3213, %v3213
  %v3225 = vlaneseq
  %v3226 = vshrl.u32 %v3225, 7
  %v3227 = vsub.s32 0, %v3226
  %v3228 = vrot.slane %v582, %v3227
  %v3390 = vunpack.c.l.b16 %v422
  %v3391 = vunpack.c.l.b16 %v423
  %v3392 = vunpack.c.l.b16 %v424
  %v3393 = vunpack.c.l.b16 %v425
  %v3394 = vunpack.c.l.b16 %v426
  %v3395 = vunpack.c.l.b16 %v427
  %v3396 = vunpack.c.l.b16 %v428
  %v3397 = vunpack.c.l.b16 %v429
  %v3398 = vunpack.c.l.b16 %v430
  %v3399 = vunpack.c.l.b16 %v431
  %v3400 = vunpack.c.l.b16 %v432
  %v3401 = vunpack.c.l.b16 %v433
  %v3402 = vunpack.c.l.b16 %v434
  %v3403 = vunpack.c.l.b16 %v435
  %v3404 = vunpack.c.l.b16 %v436
  %v3405 = vunpack.c.l.b16 %v437
  %v3406 = vunpack.c.l.b16 %v438
  %v3407 = vunpack.c.l.b16 %v439
  %v3408 = vunpack.c.l.b16 %v440
  %v3409 = vunpack.c.l.b16 %v441
  %v3410 = vunpack.c.l.b16 %v442
  %v3411 = vunpack.c.l.b16 %v443
  %v3412 = vunpack.c.l.b16 %v444
  %v3413 = vunpack.c.l.b16 %v445
  %v3414 = vunpack.c.l.b16 %v446
  %v3415 = vunpack.c.l.b16 %v447
  %v3416 = vunpack.c.l.b16 %v448
  %v3417 = vunpack.c.l.b16 %v449
  %v3418 = vunpack.c.l.b16 %v450
  %v3419 = vunpack.c.l.b16 %v451
  %v3420 = vunpack.c.l.b16 %v452
  %v3421 = vunpack.c.l.b16 %v453
  %v3422 = vunpack.c.l.b16 %v454
  %v3423 = vunpack.c.l.b16 %v455
  %v3424 = vunpack.c.l.b16 %v456
  %v3425 = vunpack.c.l.b16 %v457
  %v3426 = vunpack.c.l.b16 %v458
  %v3427 = vunpack.c.l.b16 %v459
  %v3428 = vunpack.c.l.b16 %v460
  %v3429 = vunpack.c.l.b16 %v461
  %v3430 = vunpack.c.l.b16 %v462
  %v3431 = vunpack.c.l.b16 %v463
  %v3432 = vunpack.c.l.b16 %v464
  %v3433 = vunpack.c.l.b16 %v465
  %v3434 = vunpack.c.l.b16 %v466
  %v3435 = vunpack.c.l.b16 %v467
  %v3436 = vunpack.c.l.b16 %v468
  %v3437 = vunpack.c.l.b16 %v469
  %v3438 = vunpack.c.l.b16 %v470
  %v3439 = vunpack.c.l.b16 %v471
  %v3440 = vunpack.c.l.b16 %v472
  %v3441 = vunpack.c.l.b16 %v473
  %v3442 = vunpack.c.l.b16 %v474
  %v3443 = vunpack.c.l.b16 %v475
  %v3444 = vunpack.c.l.b16 %v476
  %v3445 = vunpack.c.l.b16 %v477
  %v3446 = vunpack.c.l.b16 %v478
  %v3447 = vunpack.c.l.b16 %v479
  %v3448 = vunpack.c.l.b16 %v480
  %v3449 = vunpack.c.l.b16 %v481
  %v3450 = vunpack.c.l.b16 %v482
  %v3451 = vunpack.c.l.b16 %v483
  %v3452 = vunpack.c.l.b16 %v484
  %v3453 = vunpack.c.l.b16 %v485
  %v3454 = vunpack.c.l.b16 %v486
  %v3455 = vunpack.c.l.b16 %v487
  %v3456 = vunpack.c.l.b16 %v488
  %v3457 = vunpack.c.l.b16 %v489
  %v3458 = vunpack.c.l.b16 %v490
  %v3459 = vunpack.c.l.b16 %v491
  %v3460 = vunpack.c.l.b16 %v492
  %v3461 = vunpack.c.l.b16 %v493
  %v3462 = vunpack.c.l.b16 %v494
  %v3463 = vunpack.c.l.b16 %v495
  %v3464 = vunpack.c.l.b16 %v496
  %v3465 = vunpack.c.l.b16 %v497
  %v3466 = vunpack.c.l.b16 %v498
  %v3467 = vunpack.c.l.b16 %v499
  %v3468 = vunpack.c.l.b16 %v500
  %v3469 = vunpack.c.l.b16 %v501
  %v3470 = vunpack.c.l.b16 %v502
  %v3471 = vunpack.c.l.b16 %v503
  %v3472 = vunpack.c.l.b16 %v504
  %v3473 = vunpack.c.l.b16 %v505
  %v3474 = vunpack.c.l.b16 %v506
  %v3475 = vunpack.c.l.b16 %v507
  %v3476 = vunpack.c.l.b16 %v508
  %v3477 = vunpack.c.l.b16 %v509
  %v3478 = vunpack.c.l.b16 %v510
  %v3479 = vunpack.c.l.b16 %v511
  %v3480 = vunpack.c.l.b16 %v512
  %v3481 = vunpack.c.l.b16 %v513
  %v3482 = vunpack.c.l.b16 %v514
  %v3483 = vunpack.c.l.b16 %v515
  %v3484 = vunpack.c.l.b16 %v516
  %v3485 = vunpack.c.l.b16 %v517
  %v3486 = vunpack.c.l.b16 %v518
  %v3487 = vunpack.c.l.b16 %v519
  %v3488 = vunpack.c.l.b16 %v520
  %v3489 = vunpack.c.l.b16 %v521
  %v3490 = vunpack.c.l.b16 %v522
  %v3491 = vunpack.c.l.b16 %v523
  %v3492 = vunpack.c.l.b16 %v524
  %v3493 = vunpack.c.l.b16 %v525
  %v3494 = vunpack.c.l.b16 %v526
  %v3495 = vunpack.c.l.b16 %v527
  %v3496 = vunpack.c.l.b16 %v528
  %v3497 = vunpack.c.l.b16 %v529
  %v3498 = vunpack.c.l.b16 %v530
  %v3499 = vunpack.c.l.b16 %v531
  %v3500 = vunpack.c.l.b16 %v532
  %v3501 = vunpack.c.l.b16 %v533
  %v3502 = vunpack.c.l.b16 %v534
  %v3503 = vunpack.c.l.b16 %v535
  %v3504 = vunpack.c.l.b16 %v536
  %v3505 = vunpack.c.l.b16 %v537
  %v3506 = vunpack.c.l.b16 %v538
  %v3507 = vunpack.c.l.b16 %v539
  %v3508 = vunpack.c.l.b16 %v540
  %v3509 = vunpack.c.l.b16 %v541
  %v3510 = vunpack.c.l.b16 %v542
  %v3511 = vunpack.c.l.b16 %v543
  %v3512 = vunpack.c.l.b16 %v544
  %v3513 = vunpack.c.l.b16 %v545
  %v3514 = vunpack.c.l.b16 %v546
  %v3515 = vunpack.c.l.b16 %v547
  %v3516 = vunpack.c.l.b16 %v548
  %v3517 = vunpack.c.l.b16 %v549
  %v3518 = vunpack.c.l.b16 %v550
  %v3519 = vunpack.c.l.b16 %v551
  %v3520 = vunpack.c.l.b16 %v552
  %v3521 = vunpack.c.l.b16 %v553
  %v3522 = vunpack.c.l.b16 %v554
  %v3523 = vunpack.c.l.b16 %v555
  %v3524 = vunpack.c.l.b16 %v556
  %v3525 = vunpack.c.l.b16 %v557
  %v3526 = vunpack.c.l.b16 %v558
  %v3527 = vunpack.c.l.b16 %v559
  %v3528 = vunpack.c.l.b16 %v560
  %v3529 = vunpack.c.l.b16 %v561
  %v3530 = vunpack.c.l.b16 %v562
  %v3531 = vunpack.c.l.b16 %v563
  %v3532 = vunpack.c.l.b16 %v564
  %v3533 = vunpack.c.l.b16 %v565
  %v3534 = vunpack.c.l.b16 %v566
  %v3535 = vunpack.c.l.b16 %v567
  %v3536 = vunpack.c.l.b16 %v568
  %v3537 = vunpack.c.l.b16 %v569
  %v3538 = vunpack.c.l.b16 %v570
  %v3539 = vunpack.c.l.b16 %v571
  %v3540 = vunpack.c.l.b16 %v572
  %v3541 = vunpack.c.l.b16 %v573
  %v3542 = vunpack.c.l.b16 %v574
  %v3543 = vunpack.c.l.b16 %v575
  %v3544 = vunpack.c.l.b16 %v576
  %v3545 = vunpack.c.l.b16 %v577
  %v3546 = vunpack.c.l.b16 %v578
  %v3547 = vunpack.c.l.b16 %v579
  %v3548 = vunpack.c.l.b16 %v580
  %v3549 = vunpack.c.l.b16 %v581
  %v3550 = vpack.c.b16 %v3391, %v3390
  %v3551 = vpack.c.b16 %v3393, %v3392
  %v3552 = vpack.c.b16 %v3395, %v3394
  %v3553 = vpack.c.b16 %v3397, %v3396
  %v3554 = vpack.c.b16 %v3399, %v3398
  %v3555 = vpack.c.b16 %v3401, %v3400
  %v3556 = vpack.c.b16 %v3403, %v3402
  %v3557 = vpack.c.b16 %v3405, %v3404
  %v3558 = vpack.c.b16 %v3407, %v3406
  %v3559 = vpack.c.b16 %v3409, %v3408
  %v3560 = vpack.c.b16 %v3411, %v3410
  %v3561 = vpack.c.b16 %v3413, %v3412
  %v3562 = vpack.c.b16 %v3415, %v3414
  %v3563 = vpack.c.b16 %v3417, %v3416
  %v3564 = vpack.c.b16 %v3419, %v3418
  %v3565 = vpack.c.b16 %v3421, %v3420
  %v3566 = vpack.c.b16 %v3423, %v3422
  %v3567 = vpack.c.b16 %v3425, %v3424
  %v3568 = vpack.c.b16 %v3427, %v3426
  %v3569 = vpack.c.b16 %v3429, %v3428
  %v3570 = vpack.c.b16 %v3431, %v3430
  %v3571 = vpack.c.b16 %v3433, %v3432
  %v3572 = vpack.c.b16 %v3435, %v3434
  %v3573 = vpack.c.b16 %v3437, %v3436
  %v3574 = vpack.c.b16 %v3439, %v3438
  %v3575 = vpack.c.b16 %v3441, %v3440
  %v3576 = vpack.c.b16 %v3443, %v3442
  %v3577 = vpack.c.b16 %v3445, %v3444
  %v3578 = vpack.c.b16 %v3447, %v3446
  %v3579 = vpack.c.b16 %v3449, %v3448
  %v3580 = vpack.c.b16 %v3451, %v3450
  %v3581 = vpack.c.b16 %v3453, %v3452
  %v3582 = vpack.c.b16 %v3455, %v3454
  %v3583 = vpack.c.b16 %v3457, %v3456
  %v3584 = vpack.c.b16 %v3459, %v3458
  %v3585 = vpack.c.b16 %v3461, %v3460
  %v3586 = vpack.c.b16 %v3463, %v3462
  %v3587 = vpack.c.b16 %v3465, %v3464
  %v3588 = vpack.c.b16 %v3467, %v3466
  %v3589 = vpack.c.b16 %v3469, %v3468
  %v3590 = vpack.c.b16 %v3471, %v3470
  %v3591 = vpack.c.b16 %v3473, %v3472
  %v3592 = vpack.c.b16 %v3475, %v3474
  %v3593 = vpack.c.b16 %v3477, %v3476
  %v3594 = vpack.c.b16 %v3479, %v3478
  %v3595 = vpack.c.b16 %v3481, %v3480
  %v3596 = vpack.c.b16 %v3483, %v3482
  %v3597 = vpack.c.b16 %v3485, %v3484
  %v3598 = vpack.c.b16 %v3487, %v3486
  %v3599 = vpack.c.b16 %v3489, %v3488
  %v3600 = vpack.c.b16 %v3491, %v3490
  %v3601 = vpack.c.b16 %v3493, %v3492
  %v3602 = vpack.c.b16 %v3495, %v3494
  %v3603 = vpack.c.b16 %v3497, %v3496
  %v3604 = vpack.c.b16 %v3499, %v3498
  %v3605 = vpack.c.b16 %v3501, %v3500
  %v3606 = vpack.c.b16 %v3503, %v3502
  %v3607 = vpack.c.b16 %v3505, %v3504
  %v3608 = vpack.c.b16 %v3507, %v3506
  %v3609 = vpack.c.b16 %v3509, %v3508
  %v3610 = vpack.c.b16 %v3511, %v3510
  %v3611 = vpack.c.b16 %v3513, %v3512
  %v3612 = vpack.c.b16 %v3515, %v3514
  %v3613 = vpack.c.b16 %v3517, %v3516
  %v3614 = vpack.c.b16 %v3519, %v3518
  %v3615 = vpack.c.b16 %v3521, %v3520
  %v3616 = vpack.c.b16 %v3523, %v3522
  %v3617 = vpack.c.b16 %v3525, %v3524
  %v3618 = vpack.c.b16 %v3527, %v3526
  %v3619 = vpack.c.b16 %v3529, %v3528
  %v3620 = vpack.c.b16 %v3531, %v3530
  %v3621 = vpack.c.b16 %v3533, %v3532
  %v3622 = vpack.c.b16 %v3535, %v3534
  %v3623 = vpack.c.b16 %v3537, %v3536
  %v3624 = vpack.c.b16 %v3539, %v3538
  %v3625 = vpack.c.b16 %v3541, %v3540
  %v3626 = vpack.c.b16 %v3543, %v3542
  %v3627 = vpack.c.b16 %v3545, %v3544
  %v3628 = vpack.c.b16 %v3547, %v3546
  %v3629 = vpack.c.b16 %v3549, %v3548
  %3710 = vmatprep.subr.bf16.mxu0 0
  %3711 = vmatpush1.bf16.msra.mxu0 %v3557
  %3712 = vmatprep.subr.bf16.mxu0 0
  %3713 = vmatpush1.bf16.msra.mxu0 %v3556
  %3714 = vmatprep.subr.bf16.mxu0 0
  %3715 = vmatpush1.bf16.msra.mxu0 %v3555
  %3716 = vmatprep.subr.bf16.mxu0 0
  %3717 = vmatpush1.bf16.msra.mxu0 %v3554
  %3718 = vmatprep.subr.bf16.mxu0 0
  %3719 = vmatpush1.bf16.msra.mxu0 %v3553
  %3720 = vmatprep.subr.bf16.mxu0 0
  %3721 = vmatpush1.bf16.msra.mxu0 %v3552
  %3722 = vmatprep.subr.bf16.mxu0 0
  %3723 = vmatpush1.bf16.msra.mxu0 %v3551
  %3724 = vmatprep.subr.bf16.mxu0 0
  %3725 = vmatpush1.bf16.msra.mxu0 %v3550
  %3726 = vmatprep.subr.bf16.mxu0 0
  %3727 = vmatpush2.bf16.msra.mxu0 %v3565
  %3728 = vmatprep.subr.bf16.mxu0 0
  %3729 = vmatpush2.bf16.msra.mxu0 %v3564
  %3730 = vmatprep.subr.bf16.mxu0 0
  %3731 = vmatpush2.bf16.msra.mxu0 %v3563
  %3732 = vmatprep.subr.bf16.mxu0 0
  %3733 = vmatpush2.bf16.msra.mxu0 %v3562
  %3734 = vmatprep.subr.bf16.mxu0 0
  %3735 = vmatpush2.bf16.msra.mxu0 %v3561
  %3736 = vmatprep.subr.bf16.mxu0 0
  %3737 = vmatpush2.bf16.msra.mxu0 %v3560
  %3738 = vmatprep.subr.bf16.mxu0 0
  %3739 = vmatpush2.bf16.msra.mxu0 %v3559
  %3740 = vmatprep.subr.bf16.mxu0 0
  %3741 = vmatpush2.bf16.msra.mxu0 %v3558
  %3742 = vmatprep.mubr.bf16.mxu0 %v3215
  %3743 = vmatmul.mubr.bf16.gmra.mxu0 %v3214
  %v3744 = vpop.f32.mrf.mxu0
  %v3745 = vadd.f32 %v3228, %v3744
  %v3746 = vpop.f32.mrf.mxu0
  %v3747 = vpop.f32.mrf.mxu0
  %v3748 = vpop.f32.mrf.mxu0
  %3749 = vdwg.mxu0
  %3750 = vmatprep.subr.bf16.mxu0 0
  %3751 = vmatpush1.bf16.msra.mxu0 %v3573
  %3752 = vmatprep.subr.bf16.mxu0 0
  %3753 = vmatpush1.bf16.msra.mxu0 %v3572
  %3754 = vmatprep.subr.bf16.mxu0 0
  %3755 = vmatpush1.bf16.msra.mxu0 %v3571
  %3756 = vmatprep.subr.bf16.mxu0 0
  %3757 = vmatpush1.bf16.msra.mxu0 %v3570
  %3758 = vmatprep.subr.bf16.mxu0 0
  %3759 = vmatpush1.bf16.msra.mxu0 %v3569
  %3760 = vmatprep.subr.bf16.mxu0 0
  %3761 = vmatpush1.bf16.msra.mxu0 %v3568
  %3762 = vmatprep.subr.bf16.mxu0 0
  %3763 = vmatpush1.bf16.msra.mxu0 %v3567
  %3764 = vmatprep.subr.bf16.mxu0 0
  %3765 = vmatpush1.bf16.msra.mxu0 %v3566
  %3766 = vmatprep.subr.bf16.mxu0 0
  %3767 = vmatpush2.bf16.msra.mxu0 %v3581
  %3768 = vmatprep.subr.bf16.mxu0 0
  %3769 = vmatpush2.bf16.msra.mxu0 %v3580
  %3770 = vmatprep.subr.bf16.mxu0 0
  %3771 = vmatpush2.bf16.msra.mxu0 %v3579
  %3772 = vmatprep.subr.bf16.mxu0 0
  %3773 = vmatpush2.bf16.msra.mxu0 %v3578
  %3774 = vmatprep.subr.bf16.mxu0 0
  %3775 = vmatpush2.bf16.msra.mxu0 %v3577
  %3776 = vmatprep.subr.bf16.mxu0 0
  %3777 = vmatpush2.bf16.msra.mxu0 %v3576
  %3778 = vmatprep.subr.bf16.mxu0 0
  %3779 = vmatpush2.bf16.msra.mxu0 %v3575
  %3780 = vmatprep.subr.bf16.mxu0 0
  %3781 = vmatpush2.bf16.msra.mxu0 %v3574
  %3782 = vmatprep.mubr.bf16.mxu0 %v3217
  %3783 = vmatmul.mubr.bf16.gmra.mxu0 %v3216
  %v3784 = vpop.f32.mrf.mxu0
  %v3785 = vadd.f32 %v3745, %v3784
  %v3786 = vpop.f32.mrf.mxu0
  %v3787 = vpop.f32.mrf.mxu0
  %v3788 = vpop.f32.mrf.mxu0
  %3789 = vdwg.mxu0
  %3790 = vmatprep.subr.bf16.mxu0 0
  %3791 = vmatpush1.bf16.msra.mxu0 %v3589
  %3792 = vmatprep.subr.bf16.mxu0 0
  %3793 = vmatpush1.bf16.msra.mxu0 %v3588
  %3794 = vmatprep.subr.bf16.mxu0 0
  %3795 = vmatpush1.bf16.msra.mxu0 %v3587
  %3796 = vmatprep.subr.bf16.mxu0 0
  %3797 = vmatpush1.bf16.msra.mxu0 %v3586
  %3798 = vmatprep.subr.bf16.mxu0 0
  %3799 = vmatpush1.bf16.msra.mxu0 %v3585
  %3800 = vmatprep.subr.bf16.mxu0 0
  %3801 = vmatpush1.bf16.msra.mxu0 %v3584
  %3802 = vmatprep.subr.bf16.mxu0 0
  %3803 = vmatpush1.bf16.msra.mxu0 %v3583
  %3804 = vmatprep.subr.bf16.mxu0 0
  %3805 = vmatpush1.bf16.msra.mxu0 %v3582
  %3806 = vmatprep.subr.bf16.mxu0 0
  %3807 = vmatpush2.bf16.msra.mxu0 %v3597
  %3808 = vmatprep.subr.bf16.mxu0 0
  %3809 = vmatpush2.bf16.msra.mxu0 %v3596
  %3810 = vmatprep.subr.bf16.mxu0 0
  %3811 = vmatpush2.bf16.msra.mxu0 %v3595
  %3812 = vmatprep.subr.bf16.mxu0 0
  %3813 = vmatpush2.bf16.msra.mxu0 %v3594
  %3814 = vmatprep.subr.bf16.mxu0 0
  %3815 = vmatpush2.bf16.msra.mxu0 %v3593
  %3816 = vmatprep.subr.bf16.mxu0 0
  %3817 = vmatpush2.bf16.msra.mxu0 %v3592
  %3818 = vmatprep.subr.bf16.mxu0 0
  %3819 = vmatpush2.bf16.msra.mxu0 %v3591
  %3820 = vmatprep.subr.bf16.mxu0 0
  %3821 = vmatpush2.bf16.msra.mxu0 %v3590
  %3822 = vmatprep.mubr.bf16.mxu0 %v3219
  %3823 = vmatmul.mubr.bf16.gmra.mxu0 %v3218
  %v3824 = vpop.f32.mrf.mxu0
  %v3825 = vadd.f32 %v3785, %v3824
  %v3826 = vpop.f32.mrf.mxu0
  %v3827 = vpop.f32.mrf.mxu0
  %v3828 = vpop.f32.mrf.mxu0
  %3829 = vdwg.mxu0
  %3830 = vmatprep.subr.bf16.mxu0 0
  %3831 = vmatpush1.bf16.msra.mxu0 %v3605
  %3832 = vmatprep.subr.bf16.mxu0 0
  %3833 = vmatpush1.bf16.msra.mxu0 %v3604
  %3834 = vmatprep.subr.bf16.mxu0 0
  %3835 = vmatpush1.bf16.msra.mxu0 %v3603
  %3836 = vmatprep.subr.bf16.mxu0 0
  %3837 = vmatpush1.bf16.msra.mxu0 %v3602
  %3838 = vmatprep.subr.bf16.mxu0 0
  %3839 = vmatpush1.bf16.msra.mxu0 %v3601
  %3840 = vmatprep.subr.bf16.mxu0 0
  %3841 = vmatpush1.bf16.msra.mxu0 %v3600
  %3842 = vmatprep.subr.bf16.mxu0 0
  %3843 = vmatpush1.bf16.msra.mxu0 %v3599
  %3844 = vmatprep.subr.bf16.mxu0 0
  %3845 = vmatpush1.bf16.msra.mxu0 %v3598
  %3846 = vmatprep.subr.bf16.mxu0 0
  %3847 = vmatpush2.bf16.msra.mxu0 %v3613
  %3848 = vmatprep.subr.bf16.mxu0 0
  %3849 = vmatpush2.bf16.msra.mxu0 %v3612
  %3850 = vmatprep.subr.bf16.mxu0 0
  %3851 = vmatpush2.bf16.msra.mxu0 %v3611
  %3852 = vmatprep.subr.bf16.mxu0 0
  %3853 = vmatpush2.bf16.msra.mxu0 %v3610
  %3854 = vmatprep.subr.bf16.mxu0 0
  %3855 = vmatpush2.bf16.msra.mxu0 %v3609
  %3856 = vmatprep.subr.bf16.mxu0 0
  %3857 = vmatpush2.bf16.msra.mxu0 %v3608
  %3858 = vmatprep.subr.bf16.mxu0 0
  %3859 = vmatpush2.bf16.msra.mxu0 %v3607
  %3860 = vmatprep.subr.bf16.mxu0 0
  %3861 = vmatpush2.bf16.msra.mxu0 %v3606
  %3862 = vmatprep.mubr.bf16.mxu0 %v3221
  %3863 = vmatmul.mubr.bf16.gmra.mxu0 %v3220
  %v3864 = vpop.f32.mrf.mxu0
  %v3865 = vadd.f32 %v3825, %v3864
  %v3866 = vpop.f32.mrf.mxu0
  %v3867 = vpop.f32.mrf.mxu0
  %v3868 = vpop.f32.mrf.mxu0
  %3869 = vdwg.mxu0
  %3870 = vmatprep.subr.bf16.mxu0 0
  %3871 = vmatpush1.bf16.msra.mxu0 %v3621
  %3872 = vmatprep.subr.bf16.mxu0 0
  %3873 = vmatpush1.bf16.msra.mxu0 %v3620
  %3874 = vmatprep.subr.bf16.mxu0 0
  %3875 = vmatpush1.bf16.msra.mxu0 %v3619
  %3876 = vmatprep.subr.bf16.mxu0 0
  %3877 = vmatpush1.bf16.msra.mxu0 %v3618
  %3878 = vmatprep.subr.bf16.mxu0 0
  %3879 = vmatpush1.bf16.msra.mxu0 %v3617
  %3880 = vmatprep.subr.bf16.mxu0 0
  %3881 = vmatpush1.bf16.msra.mxu0 %v3616
  %3882 = vmatprep.subr.bf16.mxu0 0
  %3883 = vmatpush1.bf16.msra.mxu0 %v3615
  %3884 = vmatprep.subr.bf16.mxu0 0
  %3885 = vmatpush1.bf16.msra.mxu0 %v3614
  %3886 = vmatprep.subr.bf16.mxu0 0
  %3887 = vmatpush2.bf16.msra.mxu0 %v3629
  %3888 = vmatprep.subr.bf16.mxu0 0
  %3889 = vmatpush2.bf16.msra.mxu0 %v3628
  %3890 = vmatprep.subr.bf16.mxu0 0
  %3891 = vmatpush2.bf16.msra.mxu0 %v3627
  %3892 = vmatprep.subr.bf16.mxu0 0
  %3893 = vmatpush2.bf16.msra.mxu0 %v3626
  %3894 = vmatprep.subr.bf16.mxu0 0
  %3895 = vmatpush2.bf16.msra.mxu0 %v3625
  %3896 = vmatprep.subr.bf16.mxu0 0
  %3897 = vmatpush2.bf16.msra.mxu0 %v3624
  %3898 = vmatprep.subr.bf16.mxu0 0
  %3899 = vmatpush2.bf16.msra.mxu0 %v3623
  %3900 = vmatprep.subr.bf16.mxu0 0
  %3901 = vmatpush2.bf16.msra.mxu0 %v3622
  %3902 = vmatprep.mubr.bf16.mxu0 %v3223
  %3903 = vmatmul.mubr.bf16.gmra.mxu0 %v3222
  %v3904 = vpop.f32.mrf.mxu0
  %v3905 = vadd.f32 %v3865, %v3904
  %v3906 = vpop.f32.mrf.mxu0
  %v3907 = vpop.f32.mrf.mxu0
  %v3908 = vpop.f32.mrf.mxu0
  %3909 = vdwg.mxu0
  %v3910 = vmax.f32 %v3905, 0.0
  %3913 = vrot.lane.b32.xlu0 %v2748, 64
  %v3914 = vpop.permute.xlu0 %3913
  %3915 = vrot.lane.b32.xlu0 %v2749, 64
  %v3916 = vpop.permute.xlu0 %3915
  %vm3917 = vcmask 523264
  %v3918 = vsel %vm3917, %v3914, %v3916
  %v3920 = vpack.c.bf16 %v3910, %v3910
  %v3921 = vpack.c.bf16 %v3918, %v3918
  %v3923 = vlaneseq
  %v3924 = vshrl.u32 %v3923, 7
  %v3925 = vsub.s32 0, %v3924
  %v3926 = vrot.slane %v615, %v3925
  %v3960 = vunpack.c.l.b16 %v583
  %v3961 = vunpack.c.l.b16 %v584
  %v3962 = vunpack.c.l.b16 %v585
  %v3963 = vunpack.c.l.b16 %v586
  %v3964 = vunpack.c.l.b16 %v587
  %v3965 = vunpack.c.l.b16 %v588
  %v3966 = vunpack.c.l.b16 %v589
  %v3967 = vunpack.c.l.b16 %v590
  %v3968 = vunpack.c.l.b16 %v591
  %v3969 = vunpack.c.l.b16 %v592
  %v3970 = vunpack.c.l.b16 %v593
  %v3971 = vunpack.c.l.b16 %v594
  %v3972 = vunpack.c.l.b16 %v595
  %v3973 = vunpack.c.l.b16 %v596
  %v3974 = vunpack.c.l.b16 %v597
  %v3975 = vunpack.c.l.b16 %v598
  %v3976 = vunpack.c.l.b16 %v599
  %v3977 = vunpack.c.l.b16 %v600
  %v3978 = vunpack.c.l.b16 %v601
  %v3979 = vunpack.c.l.b16 %v602
  %v3980 = vunpack.c.l.b16 %v603
  %v3981 = vunpack.c.l.b16 %v604
  %v3982 = vunpack.c.l.b16 %v605
  %v3983 = vunpack.c.l.b16 %v606
  %v3984 = vunpack.c.l.b16 %v607
  %v3985 = vunpack.c.l.b16 %v608
  %v3986 = vunpack.c.l.b16 %v609
  %v3987 = vunpack.c.l.b16 %v610
  %v3988 = vunpack.c.l.b16 %v611
  %v3989 = vunpack.c.l.b16 %v612
  %v3990 = vunpack.c.l.b16 %v613
  %v3991 = vunpack.c.l.b16 %v614
  %v3992 = vpack.c.b16 %v3961, %v3960
  %v3993 = vpack.c.b16 %v3963, %v3962
  %v3994 = vpack.c.b16 %v3965, %v3964
  %v3995 = vpack.c.b16 %v3967, %v3966
  %v3996 = vpack.c.b16 %v3969, %v3968
  %v3997 = vpack.c.b16 %v3971, %v3970
  %v3998 = vpack.c.b16 %v3973, %v3972
  %v3999 = vpack.c.b16 %v3975, %v3974
  %v4000 = vpack.c.b16 %v3977, %v3976
  %v4001 = vpack.c.b16 %v3979, %v3978
  %v4002 = vpack.c.b16 %v3981, %v3980
  %v4003 = vpack.c.b16 %v3983, %v3982
  %v4004 = vpack.c.b16 %v3985, %v3984
  %v4005 = vpack.c.b16 %v3987, %v3986
  %v4006 = vpack.c.b16 %v3989, %v3988
  %v4007 = vpack.c.b16 %v3991, %v3990
  %4024 = vmatprep.subr.bf16.mxu0 0
  %4025 = vmatpush1.bf16.msra.mxu0 %v3999
  %4026 = vmatprep.subr.bf16.mxu0 0
  %4027 = vmatpush1.bf16.msra.mxu0 %v3998
  %4028 = vmatprep.subr.bf16.mxu0 0
  %4029 = vmatpush1.bf16.msra.mxu0 %v3997
  %4030 = vmatprep.subr.bf16.mxu0 0
  %4031 = vmatpush1.bf16.msra.mxu0 %v3996
  %4032 = vmatprep.subr.bf16.mxu0 0
  %4033 = vmatpush1.bf16.msra.mxu0 %v3995
  %4034 = vmatprep.subr.bf16.mxu0 0
  %4035 = vmatpush1.bf16.msra.mxu0 %v3994
  %4036 = vmatprep.subr.bf16.mxu0 0
  %4037 = vmatpush1.bf16.msra.mxu0 %v3993
  %4038 = vmatprep.subr.bf16.mxu0 0
  %4039 = vmatpush1.bf16.msra.mxu0 %v3992
  %4040 = vmatprep.subr.bf16.mxu0 0
  %4041 = vmatpush2.bf16.msra.mxu0 %v4007
  %4042 = vmatprep.subr.bf16.mxu0 0
  %4043 = vmatpush2.bf16.msra.mxu0 %v4006
  %4044 = vmatprep.subr.bf16.mxu0 0
  %4045 = vmatpush2.bf16.msra.mxu0 %v4005
  %4046 = vmatprep.subr.bf16.mxu0 0
  %4047 = vmatpush2.bf16.msra.mxu0 %v4004
  %4048 = vmatprep.subr.bf16.mxu0 0
  %4049 = vmatpush2.bf16.msra.mxu0 %v4003
  %4050 = vmatprep.subr.bf16.mxu0 0
  %4051 = vmatpush2.bf16.msra.mxu0 %v4002
  %4052 = vmatprep.subr.bf16.mxu0 0
  %4053 = vmatpush2.bf16.msra.mxu0 %v4001
  %4054 = vmatprep.subr.bf16.mxu0 0
  %4055 = vmatpush2.bf16.msra.mxu0 %v4000
  %4056 = vmatprep.mubr.bf16.mxu0 %v3921
  %4057 = vmatmul.mubr.bf16.gmra.mxu0 %v3920
  %v4058 = vpop.f32.mrf.mxu0
  %v4059 = vadd.f32 %v3926, %v4058
  %v4060 = vpop.f32.mrf.mxu0
  %v4061 = vpop.f32.mrf.mxu0
  %v4062 = vpop.f32.mrf.mxu0
  %4063 = vdwg.mxu0
  %v4064 = vlaneseq
  %v4065 = vand.u32 %v4064, 127
  %vm4066 = vcmp.lt.s32.totalorder %v4065, 5
  %v4067 = vsel %vm4066, %v4059, -1e+30
  %vm4068 = vcmask 74752
  %v4069 = vsel %vm4068, %v4067, -inf
  %4070 = vmax.xlane.f32.xlu0 %v4069
  %v4071 = vpop.xlane.xlu0 %4070
  %v4072 = vsel %vm4066, -1e+30, %v4059
  %v4073 = vsel %vm4068, %v4072, -inf
  %4074 = vmax.xlane.f32.xlu0 %v4073
  %v4075 = vpop.xlane.xlu0 %4074
  %v4076 = vsel %vm4066, %v4071, %v4075
  %v4077 = vsub.f32 %v4059, %v4076
  %v4078 = vmul.f32 %v4077, 1.442695
  %v4079 = vpow.pop %v4078
  %v4080 = vsel %vm4066, %v4079, 0.0
  %v4081 = vsel %vm4068, %v4080, 0.0
  %4082 = vadd.xlane.f32.xlu0 %v4081
  %v4083 = vpop.xlane.xlu0 %4082
  %v4084 = vsel %vm4066, 0.0, %v4079
  %v4085 = vsel %vm4068, %v4084, 0.0
  %4086 = vadd.xlane.f32.xlu0 %v4085
  %v4087 = vpop.xlane.xlu0 %4086
  %v4088 = vsel %vm4066, %v4083, %v4087
  %v4089 = vrcp.pop %v4088
  %v4090 = vmul.f32 %v4079, %v4089
  %4092 = vrot.lane.b32.xlu0 %v2789, 123
  %v4093 = vpop.permute.xlu0 %4092
  %4096 = vrot.lane.b32.xlu0 %v2783, 11
  %v4097 = vpop.permute.xlu0 %4096
  %v4099 = vsel %vm709, %v4090, %v4059
  %vm4100 = vcmask 89088
  %v4101 = vsel %vm4100, %v4099, %v4093
  %vm4102 = vcmask 482304
  %v4103 = vsel %vm4102, %v4101, %v4097
  %vm4104 = vcmask 875520
  %v4105 = vsel %vm4104, %v4103, 0.0
  %4106 = vst [vmem:[%s14] sm:$0x3] %v4105
  // Predicated region
  $region58: #{meta_ac_forward.1} parent=0 // pred_check
    _
  $region59: #{meta_ac_forward.1} parent=0 // pred_check_branch
    %4108 = sbr.rel (0) target = $region61
  $region60: #{meta_ac_forward.1} parent=0 // pred_region
    _
  $region61: #{meta_ac_forward.1} parent=0 // pred_fallthru
    _
  // Predicated region
  $region62: #{meta_ac_forward.1} parent=0 // pred_check
    _
  $region63: #{meta_ac_forward.1} parent=0 // pred_check_branch
    %4110 = sbr.rel (0) target = $region65
  $region64: #{meta_ac_forward.1} parent=0 // pred_region
    _
  $region65: #{meta_ac_forward.1} parent=0 // pred_fallthru
    _

</llo_original>
